<compile_context>
chip_gen: v7x
topology: tpu7x:2x2x1
jax: 0.10.0
libtpu: 0.0.40
codegen_flags: <defaults>
</compile_context>

<pallas_src>
import jax
import jax.numpy as jnp
from jax.experimental import pallas as pl
from jax.experimental.pallas import tpu as pltpu

EPS = 1e-5
LANE = 128
VMEM_LIMIT = 32 * 1024 * 1024  # explicit scoped-VMEM cap; per-tile set is ~4 MiB


def _round_up(x, m):
    return (x + m - 1) // m * m


def _make_conv3x3_kernel(H, W, Cin_p, Cout_p, fuse_bn_relu):
    """3x3 / stride-1 / pad-1 conv over one image tile as a single im2col matmul.

    If `fuse_bn_relu`, the input tile is first affine-normalized with the
    per-channel (scale, shift) operands and ReLU'd (bn_a+relu fused into conv_b).
    Also emits per-tile per-channel (sum, sum_sq) of the raw conv output so the
    wrapper can finalize exact global BatchNorm statistics.
    """
    Hp, Wp = H + 2, W + 2
    HW = H * W

    def kernel(x_ref, w_ref, scale_ref, shift_ref, out_ref, stats_ref,
               xpad_ref, col_ref):
        x = x_ref[...]                                        # (H*W, Cin_p)
        if fuse_bn_relu:
            x = jnp.maximum(x * scale_ref[...] + shift_ref[...], 0.0)

        # Zero only the 1-pixel border of the padded scratch; the interior is
        # fully overwritten below.
        xpad_ref[0:1, :, :] = jnp.zeros((1, Wp, Cin_p), jnp.float32)
        xpad_ref[Hp - 1:Hp, :, :] = jnp.zeros((1, Wp, Cin_p), jnp.float32)
        xpad_ref[:, 0:1, :] = jnp.zeros((Hp, 1, Cin_p), jnp.float32)
        xpad_ref[:, Wp - 1:Wp, :] = jnp.zeros((Hp, 1, Cin_p), jnp.float32)
        xpad_ref[1:H + 1, 1:W + 1, :] = x.reshape(H, W, Cin_p)

        # im2col: build one (H, W, 9*Cin_p) slab once per tile.
        for kh in range(3):
            for kw in range(3):
                t = kh * 3 + kw
                col_ref[:, :, t * Cin_p:(t + 1) * Cin_p] = \
                    xpad_ref[kh:kh + H, kw:kw + W, :]

        # single MXU matmul with K = 9*Cin_p
        acc = jnp.dot(col_ref[...].reshape(HW, 9 * Cin_p), w_ref[...],
                      preferred_element_type=jnp.float32)     # (H*W, Cout_p)
        out_ref[...] = acc

        # per-tile partial BatchNorm statistics: row 0 = sum, row 1 = sum_sq
        s = jnp.sum(acc, axis=0, keepdims=True)
        ss = jnp.sum(acc * acc, axis=0, keepdims=True)
        row = jax.lax.broadcasted_iota(jnp.int32, (8, Cout_p), 0)
        stats_ref[0, :, :] = jnp.where(
            row == 0, jnp.broadcast_to(s, (8, Cout_p)),
            jnp.where(row == 1, jnp.broadcast_to(ss, (8, Cout_p)), 0.0))

    return kernel


def _conv3x3_pass(x2d, w_slab, scale, shift, *, N, H, W, Cin_p, Cout_p,
                  fuse_bn_relu):
    HW = H * W
    kernel = _make_conv3x3_kernel(H, W, Cin_p, Cout_p, fuse_bn_relu)
    out, stats = pl.pallas_call(
        kernel,
        out_shape=(jax.ShapeDtypeStruct((N * HW, Cout_p), jnp.float32),
                   jax.ShapeDtypeStruct((N, 8, Cout_p), jnp.float32)),
        grid_spec=pltpu.PrefetchScalarGridSpec(
            num_scalar_prefetch=0,
            grid=(N,),
            in_specs=[
                pl.BlockSpec((HW, Cin_p), lambda n: (n, 0)),          # act tile
                pl.BlockSpec((9 * Cin_p, Cout_p), lambda n: (0, 0)),  # weights
                pl.BlockSpec((1, Cin_p), lambda n: (0, 0)),           # bn scale
                pl.BlockSpec((1, Cin_p), lambda n: (0, 0)),           # bn shift
            ],
            out_specs=[
                pl.BlockSpec((HW, Cout_p), lambda n: (n, 0)),         # conv raw
                pl.BlockSpec((1, 8, Cout_p), lambda n: (n, 0, 0)),    # stats
            ],
            scratch_shapes=[
                pltpu.VMEM((H + 2, W + 2, Cin_p), jnp.float32),       # padded act
                pltpu.VMEM((H, W, 9 * Cin_p), jnp.float32),           # im2col slab
            ]),
        compiler_params=pltpu.CompilerParams(
            dimension_semantics=("parallel",),
            vmem_limit_bytes=VMEM_LIMIT),
    )(x2d, w_slab, scale, shift)
    return out, stats


def _finalize_kernel(res_ref, zb_ref, scale_ref, shift_ref, out_ref):
    # bn_b (precomputed scale/shift) + residual add + ReLU
    z = zb_ref[...] * scale_ref[...] + shift_ref[...]
    out_ref[...] = jnp.maximum(res_ref[...] + z, 0.0)


def _bn_residual_relu_pass(x2d, z2d, scale, shift, *, N, HW, Cp):
    return pl.pallas_call(
        _finalize_kernel,
        out_shape=jax.ShapeDtypeStruct((N * HW, Cp), jnp.float32),
        grid_spec=pltpu.PrefetchScalarGridSpec(
            num_scalar_prefetch=0,
            grid=(N,),
            in_specs=[
                pl.BlockSpec((HW, Cp), lambda n: (n, 0)),
                pl.BlockSpec((HW, Cp), lambda n: (n, 0)),
                pl.BlockSpec((1, Cp), lambda n: (0, 0)),
                pl.BlockSpec((1, Cp), lambda n: (0, 0)),
            ],
            out_specs=pl.BlockSpec((HW, Cp), lambda n: (n, 0))),
        compiler_params=pltpu.CompilerParams(
            dimension_semantics=("parallel",),
            vmem_limit_bytes=VMEM_LIMIT),
    )(x2d, z2d, scale, shift)


def _bn_scale_shift(stats, gamma_p, beta_p, count):
    """Finalize exact global BN stats from per-tile (sum, sum_sq) partials."""
    total = jnp.sum(stats, axis=0)                      # (8, C_pad)
    mean = total[0] / count
    var = jnp.maximum(total[1] / count - mean * mean, 0.0)   # biased variance
    scale = gamma_p * jax.lax.rsqrt(var + EPS)
    shift = beta_p - mean * scale
    return scale.reshape(1, -1), shift.reshape(1, -1)


def resnet_basicblock(x_nchw, wa_oihw, ga, ba, wb_oihw, gb, bb):
    """x_nchw: (N, C, H, W) float32. Conv weights in PyTorch OIHW layout."""
    N, C, H, W = x_nchw.shape
    Cout = wa_oihw.shape[0]
    assert Cout == C, "module defaults: stride=1, downsample=None => inplanes == planes"

    Cp = _round_up(max(C, Cout), LANE)      # lane-dense channel padding
    HW = H * W
    M = N * HW

    # NCHW -> NHWC, zero-pad channels to the lane width, flatten to (M, Cp).
    x_nhwc = jnp.transpose(x_nchw, (0, 2, 3, 1))
    x2d = jnp.pad(x_nhwc, ((0, 0), (0, 0), (0, 0), (0, Cp - C))).reshape(M, Cp)

    # OIHW -> (9*Cp, Cp) im2col weight slab (zero-padded channels).
    def weight_slab(w_oihw):
        co, ci = w_oihw.shape[0], w_oihw.shape[1]
        w = jnp.transpose(w_oihw, (2, 3, 1, 0))                   # (3,3,Ci,Co)
        w = jnp.pad(w, ((0, 0), (0, 0), (0, Cp - ci), (0, Cp - co)))
        return w.reshape(9 * Cp, Cp)

    wa_slab = weight_slab(wa_oihw)
    wb_slab = weight_slab(wb_oihw)

    pad_vec = lambda v: jnp.pad(v.astype(jnp.float32), (0, Cp - v.shape[0]))
    ga_p, ba_p, gb_p, bb_p = pad_vec(ga), pad_vec(ba), pad_vec(gb), pad_vec(bb)

    unit = jnp.ones((1, Cp), jnp.float32)
    zero = jnp.zeros((1, Cp), jnp.float32)

    # pass 1: conv_a (+ per-tile BN partial stats)
    conv_a_raw, stats_a = _conv3x3_pass(
        x2d, wa_slab, unit, zero,
        N=N, H=H, W=W, Cin_p=Cp, Cout_p=Cp, fuse_bn_relu=False)
    scale_a, shift_a = _bn_scale_shift(stats_a, ga_p, ba_p, M)

    # pass 2: bn_a + ReLU fused into conv_b (+ per-tile BN partial stats)
    conv_b_raw, stats_b = _conv3x3_pass(
        conv_a_raw, wb_slab, scale_a, shift_a,
        N=N, H=H, W=W, Cin_p=Cp, Cout_p=Cp, fuse_bn_relu=True)
    scale_b, shift_b = _bn_scale_shift(stats_b, gb_p, bb_p, M)

    # pass 3: bn_b + residual add + ReLU
    out2d = _bn_residual_relu_pass(x2d, conv_b_raw, scale_b, shift_b,
                                   N=N, HW=HW, Cp=Cp)

    out = out2d.reshape(N, H, W, Cp)[..., :Cout]
    return jnp.transpose(out, (0, 3, 1, 2))  # back to NCHW


def reference_forward(x, wa, ga, ba, wb, gb, bb):
    """Pure-JAX reference (matches PyTorch training-mode BN forward)."""
    def conv(v, w):
        return jax.lax.conv_general_dilated(
            v, w, (1, 1), 'SAME', dimension_numbers=('NCHW', 'OIHW', 'NCHW'))

    def bn(v, g, b):
        m = v.mean(axis=(0, 2, 3), keepdims=True)
        s = ((v - m) ** 2).mean(axis=(0, 2, 3), keepdims=True)
        return (v - m) * jax.lax.rsqrt(s + EPS) * g.reshape(1, -1, 1, 1) \
            + b.reshape(1, -1, 1, 1)

    y = jax.nn.relu(bn(conv(x, wa), ga, ba))
    z = bn(conv(y, wb), gb, bb)
    return jax.nn.relu(x + z)


if __name__ == "__main__":
    key = jax.random.PRNGKey(0)
    N, C, H, W = 2, 4, 16, 16
    planes = C  # stride=1, downsample=None => inplanes == planes

    k_x, k_wa, k_wb = jax.random.split(key, 3)
    x = jax.random.normal(k_x, (N, C, H, W), jnp.float32)

    # deterministic conv weights (kaiming-ish scale), BN affine at PyTorch defaults
    fan_in = C * 3 * 3
    wa = jax.random.normal(k_wa, (planes, C, 3, 3), jnp.float32) * (2.0 / fan_in) ** 0.5
    wb = jax.random.normal(k_wb, (planes, planes, 3, 3), jnp.float32) * (2.0 / (planes * 9)) ** 0.5
    ga = jnp.ones((planes,), jnp.float32)
    ba = jnp.zeros((planes,), jnp.float32)
    gb = jnp.ones((planes,), jnp.float32)
    bb = jnp.zeros((planes,), jnp.float32)

    out = resnet_basicblock(x, wa, ga, ba, wb, gb, bb)
    out = jax.block_until_ready(out)

    ref = reference_forward(x, wa, ga, ba, wb, gb, bb)
    assert out.shape == (N, C, H, W)
    assert jnp.allclose(out, ref, atol=1e-3, rtol=1e-3), "mismatch vs reference"

    print("KERNEL_OK")
</pallas_src>

<mosaic_0001>
module attributes {stable_mosaic.version = 11 : i64} {
  func.func @kernel(%arg0: i32, %arg1: memref<256x128xf32, #tpu.memory_space<vmem>>, %arg2: memref<1152x128xf32, #tpu.memory_space<vmem>>, %arg3: memref<1x128xf32, #tpu.memory_space<vmem>>, %arg4: memref<1x128xf32, #tpu.memory_space<vmem>>, %arg5: memref<256x128xf32, #tpu.memory_space<vmem>>, %arg6: memref<1x8x128xf32, #tpu.memory_space<vmem>>, %arg7: memref<18x18x128xf32, #tpu.memory_space<vmem>>, %arg8: memref<16x16x1152xf32, #tpu.memory_space<vmem>>) attributes {dimension_semantics = [#tpu.dimension_semantics<parallel>], iteration_bounds = array<i64: 2>, scalar_prefetch = 0 : i64, scratch_operands = 2 : i64, tpu.core_type = #tpu.core_type<tc>, window_params = [{transform_indices = @transform_0, window_bounds = array<i64: 256, 128>}, {pipeline_mode = #tpu.pipeline_mode<synchronous>, transform_indices = @transform_1, window_bounds = array<i64: 1152, 128>}, {pipeline_mode = #tpu.pipeline_mode<synchronous>, transform_indices = @transform_2, window_bounds = array<i64: 1, 128>}, {pipeline_mode = #tpu.pipeline_mode<synchronous>, transform_indices = @transform_3, window_bounds = array<i64: 1, 128>}, {transform_indices = @transform_4, window_bounds = array<i64: 256, 128>}, {transform_indices = @transform_5, window_bounds = array<i64: 1, 8, 128>}]} {
    %c0 = arith.constant 0 : index
    %c0_0 = arith.constant 0 : index
    %0 = vector.load %arg1[%c0, %c0_0] : memref<256x128xf32, #tpu.memory_space<vmem>>, vector<256x128xf32>
    %cst = arith.constant 0.000000e+00 : f32
    %1 = vector.broadcast %cst : f32 to vector<1x18x128xf32>
    %c0_1 = arith.constant 0 : index
    %c0_2 = arith.constant 0 : index
    %c0_3 = arith.constant 0 : index
    %2 = vector.load %arg7[%c0_1, %c0_2, %c0_3] : memref<18x18x128xf32, #tpu.memory_space<vmem>>, vector<1x18x128xf32>
    tpu.vector_store %arg7[%c0_1, %c0_2, %c0_3], %1 {strides = array<i32>} : memref<18x18x128xf32, #tpu.memory_space<vmem>>, vector<1x18x128xf32>,
    %cst_4 = arith.constant 0.000000e+00 : f32
    %3 = vector.broadcast %cst_4 : f32 to vector<1x18x128xf32>
    %c17 = arith.constant 17 : index
    %c0_5 = arith.constant 0 : index
    %c0_6 = arith.constant 0 : index
    %4 = vector.load %arg7[%c17, %c0_5, %c0_6] : memref<18x18x128xf32, #tpu.memory_space<vmem>>, vector<1x18x128xf32>
    tpu.vector_store %arg7[%c17, %c0_5, %c0_6], %3 {strides = array<i32>} : memref<18x18x128xf32, #tpu.memory_space<vmem>>, vector<1x18x128xf32>,
    %cst_7 = arith.constant 0.000000e+00 : f32
    %5 = vector.broadcast %cst_7 : f32 to vector<18x1x128xf32>
    %c0_8 = arith.constant 0 : index
    %c0_9 = arith.constant 0 : index
    %c0_10 = arith.constant 0 : index
    %6 = vector.load %arg7[%c0_8, %c0_9, %c0_10] : memref<18x18x128xf32, #tpu.memory_space<vmem>>, vector<18x1x128xf32>
    tpu.vector_store %arg7[%c0_8, %c0_9, %c0_10], %5 {strides = array<i32>} : memref<18x18x128xf32, #tpu.memory_space<vmem>>, vector<18x1x128xf32>,
    %cst_11 = arith.constant 0.000000e+00 : f32
    %7 = vector.broadcast %cst_11 : f32 to vector<18x1x128xf32>
    %c0_12 = arith.constant 0 : index
    %c17_13 = arith.constant 17 : index
    %c0_14 = arith.constant 0 : index
    %8 = vector.load %arg7[%c0_12, %c17_13, %c0_14] : memref<18x18x128xf32, #tpu.memory_space<vmem>>, vector<18x1x128xf32>
    tpu.vector_store %arg7[%c0_12, %c17_13, %c0_14], %7 {strides = array<i32>} : memref<18x18x128xf32, #tpu.memory_space<vmem>>, vector<18x1x128xf32>,
    %9 = vector.shape_cast %0 : vector<256x128xf32> to vector<16x16x128xf32>
    %c1 = arith.constant 1 : index
    %c1_15 = arith.constant 1 : index
    %c0_16 = arith.constant 0 : index
    %10 = vector.load %arg7[%c1, %c1_15, %c0_16] : memref<18x18x128xf32, #tpu.memory_space<vmem>>, vector<16x16x128xf32>
    tpu.vector_store %arg7[%c1, %c1_15, %c0_16], %9 {strides = array<i32>} : memref<18x18x128xf32, #tpu.memory_space<vmem>>, vector<16x16x128xf32>,
    %c0_17 = arith.constant 0 : index
    %c0_18 = arith.constant 0 : index
    %c0_19 = arith.constant 0 : index
    %11 = vector.load %arg7[%c0_17, %c0_18, %c0_19] : memref<18x18x128xf32, #tpu.memory_space<vmem>>, vector<16x16x128xf32>
    %c0_20 = arith.constant 0 : index
    %c0_21 = arith.constant 0 : index
    %c0_22 = arith.constant 0 : index
    %12 = vector.load %arg8[%c0_20, %c0_21, %c0_22] : memref<16x16x1152xf32, #tpu.memory_space<vmem>>, vector<16x16x128xf32>
    tpu.vector_store %arg8[%c0_20, %c0_21, %c0_22], %11 {strides = array<i32>} : memref<16x16x1152xf32, #tpu.memory_space<vmem>>, vector<16x16x128xf32>,
    %c0_23 = arith.constant 0 : index
    %c1_24 = arith.constant 1 : index
    %c0_25 = arith.constant 0 : index
    %13 = vector.load %arg7[%c0_23, %c1_24, %c0_25] : memref<18x18x128xf32, #tpu.memory_space<vmem>>, vector<16x16x128xf32>
    %c0_26 = arith.constant 0 : index
    %c0_27 = arith.constant 0 : index
    %c128 = arith.constant 128 : index
    %14 = vector.load %arg8[%c0_26, %c0_27, %c128] : memref<16x16x1152xf32, #tpu.memory_space<vmem>>, vector<16x16x128xf32>
    tpu.vector_store %arg8[%c0_26, %c0_27, %c128], %13 {strides = array<i32>} : memref<16x16x1152xf32, #tpu.memory_space<vmem>>, vector<16x16x128xf32>,
    %c0_28 = arith.constant 0 : index
    %c2 = arith.constant 2 : index
    %c0_29 = arith.constant 0 : index
    %15 = vector.load %arg7[%c0_28, %c2, %c0_29] : memref<18x18x128xf32, #tpu.memory_space<vmem>>, vector<16x16x128xf32>
    %c0_30 = arith.constant 0 : index
    %c0_31 = arith.constant 0 : index
    %c256 = arith.constant 256 : index
    %16 = vector.load %arg8[%c0_30, %c0_31, %c256] : memref<16x16x1152xf32, #tpu.memory_space<vmem>>, vector<16x16x128xf32>
    tpu.vector_store %arg8[%c0_30, %c0_31, %c256], %15 {strides = array<i32>} : memref<16x16x1152xf32, #tpu.memory_space<vmem>>, vector<16x16x128xf32>,
    %c1_32 = arith.constant 1 : index
    %c0_33 = arith.constant 0 : index
    %c0_34 = arith.constant 0 : index
    %17 = vector.load %arg7[%c1_32, %c0_33, %c0_34] : memref<18x18x128xf32, #tpu.memory_space<vmem>>, vector<16x16x128xf32>
    %c0_35 = arith.constant 0 : index
    %c0_36 = arith.constant 0 : index
    %c384 = arith.constant 384 : index
    %18 = vector.load %arg8[%c0_35, %c0_36, %c384] : memref<16x16x1152xf32, #tpu.memory_space<vmem>>, vector<16x16x128xf32>
    tpu.vector_store %arg8[%c0_35, %c0_36, %c384], %17 {strides = array<i32>} : memref<16x16x1152xf32, #tpu.memory_space<vmem>>, vector<16x16x128xf32>,
    %c1_37 = arith.constant 1 : index
    %c1_38 = arith.constant 1 : index
    %c0_39 = arith.constant 0 : index
    %19 = vector.load %arg7[%c1_37, %c1_38, %c0_39] : memref<18x18x128xf32, #tpu.memory_space<vmem>>, vector<16x16x128xf32>
    %c0_40 = arith.constant 0 : index
    %c0_41 = arith.constant 0 : index
    %c512 = arith.constant 512 : index
    %20 = vector.load %arg8[%c0_40, %c0_41, %c512] : memref<16x16x1152xf32, #tpu.memory_space<vmem>>, vector<16x16x128xf32>
    tpu.vector_store %arg8[%c0_40, %c0_41, %c512], %19 {strides = array<i32>} : memref<16x16x1152xf32, #tpu.memory_space<vmem>>, vector<16x16x128xf32>,
    %c1_42 = arith.constant 1 : index
    %c2_43 = arith.constant 2 : index
    %c0_44 = arith.constant 0 : index
    %21 = vector.load %arg7[%c1_42, %c2_43, %c0_44] : memref<18x18x128xf32, #tpu.memory_space<vmem>>, vector<16x16x128xf32>
    %c0_45 = arith.constant 0 : index
    %c0_46 = arith.constant 0 : index
    %c640 = arith.constant 640 : index
    %22 = vector.load %arg8[%c0_45, %c0_46, %c640] : memref<16x16x1152xf32, #tpu.memory_space<vmem>>, vector<16x16x128xf32>
    tpu.vector_store %arg8[%c0_45, %c0_46, %c640], %21 {strides = array<i32>} : memref<16x16x1152xf32, #tpu.memory_space<vmem>>, vector<16x16x128xf32>,
    %c2_47 = arith.constant 2 : index
    %c0_48 = arith.constant 0 : index
    %c0_49 = arith.constant 0 : index
    %23 = vector.load %arg7[%c2_47, %c0_48, %c0_49] : memref<18x18x128xf32, #tpu.memory_space<vmem>>, vector<16x16x128xf32>
    %c0_50 = arith.constant 0 : index
    %c0_51 = arith.constant 0 : index
    %c768 = arith.constant 768 : index
    %24 = vector.load %arg8[%c0_50, %c0_51, %c768] : memref<16x16x1152xf32, #tpu.memory_space<vmem>>, vector<16x16x128xf32>
    tpu.vector_store %arg8[%c0_50, %c0_51, %c768], %23 {strides = array<i32>} : memref<16x16x1152xf32, #tpu.memory_space<vmem>>, vector<16x16x128xf32>,
    %c2_52 = arith.constant 2 : index
    %c1_53 = arith.constant 1 : index
    %c0_54 = arith.constant 0 : index
    %25 = vector.load %arg7[%c2_52, %c1_53, %c0_54] : memref<18x18x128xf32, #tpu.memory_space<vmem>>, vector<16x16x128xf32>
    %c0_55 = arith.constant 0 : index
    %c0_56 = arith.constant 0 : index
    %c896 = arith.constant 896 : index
    %26 = vector.load %arg8[%c0_55, %c0_56, %c896] : memref<16x16x1152xf32, #tpu.memory_space<vmem>>, vector<16x16x128xf32>
    tpu.vector_store %arg8[%c0_55, %c0_56, %c896], %25 {strides = array<i32>} : memref<16x16x1152xf32, #tpu.memory_space<vmem>>, vector<16x16x128xf32>,
    %c2_57 = arith.constant 2 : index
    %c2_58 = arith.constant 2 : index
    %c0_59 = arith.constant 0 : index
    %27 = vector.load %arg7[%c2_57, %c2_58, %c0_59] : memref<18x18x128xf32, #tpu.memory_space<vmem>>, vector<16x16x128xf32>
    %c0_60 = arith.constant 0 : index
    %c0_61 = arith.constant 0 : index
    %c1024 = arith.constant 1024 : index
    %28 = vector.load %arg8[%c0_60, %c0_61, %c1024] : memref<16x16x1152xf32, #tpu.memory_space<vmem>>, vector<16x16x128xf32>
    tpu.vector_store %arg8[%c0_60, %c0_61, %c1024], %27 {strides = array<i32>} : memref<16x16x1152xf32, #tpu.memory_space<vmem>>, vector<16x16x128xf32>,
    %c0_62 = arith.constant 0 : index
    %c0_63 = arith.constant 0 : index
    %c0_64 = arith.constant 0 : index
    %29 = vector.load %arg8[%c0_62, %c0_63, %c0_64] : memref<16x16x1152xf32, #tpu.memory_space<vmem>>, vector<16x16x1152xf32>
    %30 = vector.shape_cast %29 : vector<16x16x1152xf32> to vector<256x1152xf32>
    %c0_65 = arith.constant 0 : index
    %c0_66 = arith.constant 0 : index
    %31 = vector.load %arg2[%c0_65, %c0_66] : memref<1152x128xf32, #tpu.memory_space<vmem>>, vector<1152x128xf32>
    %cst_67 = arith.constant dense<0.000000e+00> : vector<256x128xf32>
    %32 = tpu.matmul %30, %31, %cst_67 {dimension_numbers = #tpu.dot_dimension_numbers<[1], [0], [0], [1], [0, 0, 1, 1], [], []>} : vector<256x1152xf32>, vector<1152x128xf32>, vector<256x128xf32> -> vector<256x128xf32>
    %c0_68 = arith.constant 0 : index
    %c0_69 = arith.constant 0 : index
    %33 = vector.load %arg5[%c0_68, %c0_69] : memref<256x128xf32, #tpu.memory_space<vmem>>, vector<256x128xf32>
    tpu.vector_store %arg5[%c0_68, %c0_69], %32 {strides = array<i32>} : memref<256x128xf32, #tpu.memory_space<vmem>>, vector<256x128xf32>,
    %cst_70 = arith.constant dense<0.000000e+00> : vector<128xf32>
    %34 = vector.multi_reduction <add>, %32, %cst_70 [0] : vector<256x128xf32> to vector<128xf32>
    %35 = vector.shape_cast %34 : vector<128xf32> to vector<1x128xf32>
    %36 = arith.mulf %32, %32 : vector<256x128xf32>
    %cst_71 = arith.constant dense<0.000000e+00> : vector<128xf32>
    %37 = vector.multi_reduction <add>, %36, %cst_71 [0] : vector<256x128xf32> to vector<128xf32>
    %38 = vector.shape_cast %37 : vector<128xf32> to vector<1x128xf32>
    %39 = tpu.iota {dimensions = array<i32: 0>} : vector<8x128xi32>
    %c0_i32 = arith.constant 0 : i32
    %40 = vector.broadcast %c0_i32 : i32 to vector<8x128xi32>
    %41 = arith.cmpi eq, %39, %40 : vector<8x128xi32>
    %42 = vector.shape_cast %35 : vector<1x128xf32> to vector<1x128xf32>
    %43 = vector.broadcast %42 : vector<1x128xf32> to vector<8x128xf32>
    %c1_i32 = arith.constant 1 : i32
    %44 = vector.broadcast %c1_i32 : i32 to vector<8x128xi32>
    %45 = arith.cmpi eq, %39, %44 : vector<8x128xi32>
    %46 = vector.shape_cast %38 : vector<1x128xf32> to vector<1x128xf32>
    %47 = vector.broadcast %46 : vector<1x128xf32> to vector<8x128xf32>
    %cst_72 = arith.constant 0.000000e+00 : f32
    %48 = vector.broadcast %cst_72 : f32 to vector<8x128xf32>
    %49 = arith.select %45, %47, %48 : vector<8x128xi1>, vector<8x128xf32>
    %50 = arith.select %41, %43, %49 : vector<8x128xi1>, vector<8x128xf32>
    %c0_73 = arith.constant 0 : index
    %c0_74 = arith.constant 0 : index
    %c0_75 = arith.constant 0 : index
    %51 = vector.load %arg6[%c0_73, %c0_74, %c0_75] : memref<1x8x128xf32, #tpu.memory_space<vmem>>, vector<1x8x128xf32>
    %52 = vector.shape_cast %51 : vector<1x8x128xf32> to vector<8x128xf32>
    %53 = vector.shape_cast %50 : vector<8x128xf32> to vector<1x8x128xf32>
    tpu.vector_store %arg6[%c0_73, %c0_74, %c0_75], %53 {strides = array<i32>} : memref<1x8x128xf32, #tpu.memory_space<vmem>>, vector<1x8x128xf32>,
    return
  }
  func.func @transform_0(%arg0: i32) -> (i32, i32) {
    %c0_i32 = arith.constant 0 : i32
    %c0_i32_0 = arith.constant 0 : i32
    return %arg0, %c0_i32 : i32, i32
  }
  func.func @transform_1(%arg0: i32) -> (i32, i32) {
    %c0_i32 = arith.constant 0 : i32
    %c0_i32_0 = arith.constant 0 : i32
    %c0_i32_1 = arith.constant 0 : i32
    return %c0_i32, %c0_i32_0 : i32, i32
  }
  func.func @transform_2(%arg0: i32) -> (i32, i32) {
    %c0_i32 = arith.constant 0 : i32
    %c0_i32_0 = arith.constant 0 : i32
    %c0_i32_1 = arith.constant 0 : i32
    return %c0_i32, %c0_i32_0 : i32, i32
  }
  func.func @transform_3(%arg0: i32) -> (i32, i32) {
    %c0_i32 = arith.constant 0 : i32
    %c0_i32_0 = arith.constant 0 : i32
    %c0_i32_1 = arith.constant 0 : i32
    return %c0_i32, %c0_i32_0 : i32, i32
  }
  func.func @transform_4(%arg0: i32) -> (i32, i32) {
    %c0_i32 = arith.constant 0 : i32
    %c0_i32_0 = arith.constant 0 : i32
    return %arg0, %c0_i32 : i32, i32
  }
  func.func @transform_5(%arg0: i32) -> (i32, i32, i32) {
    %c0_i32 = arith.constant 0 : i32
    %c0_i32_0 = arith.constant 0 : i32
    %c0_i32_1 = arith.constant 0 : i32
    return %arg0, %c0_i32, %c0_i32_0 : i32, i32, i32
  }
}

</mosaic_0001>

<llo_original>
// kernel: tpu_custom_call.1
$region0: #{tpu_custom_call.1}
  #allocation0 [shape = 'u32[]', space=smem, size = 0x4, offset = 0x4, fixed_abs, tag = 'smem constant byte address 0x4 - core index']
  #allocation1 [shape = 'u32[144,128]{1,0:T(1,128)}', space=vmem, size = 0x12000, scoped, tag = 'internal scratch']
  #allocation2 [shape = 'f32[18,18,128]{2,1,0:T(8,128)}', space=vmem, size = 0x36000, scoped, tag = 'scratch operand']
  #allocation3 [shape = 'f32[16,16,1152]{2,1,0:T(8,128)}', space=vmem, size = 0x120000, scoped, tag = 'scratch operand']
  %s0 = inlined_call_operand.hbm [shape: f32[512,128], index: 0, kind: input, shape index: {}]
  %s1 = inlined_call_operand.hbm [shape: f32[1152,128], index: 1, kind: input, shape index: {}]
  %s2 = inlined_call_operand.vmem [shape: f32[1,128], index: 2, kind: input, shape index: {}]
  %s3 = inlined_call_operand.vmem [shape: f32[1,128], index: 3, kind: input, shape index: {}]
  %s4 = inlined_call_operand.hbm [shape: f32[512,128], index: 4, kind: output, shape index: {0}]
  %s5 = inlined_call_operand.hbm [shape: f32[2,8,128], index: 5, kind: output, shape index: {1}]
  %6 = xla_tuple %s4, %s5
  %s7 = sld [smem:[#allocation0]]
  $region65: #{tpu_custom_call.1} parent=0
    _
  %s9 = ssub.s32 1, %s7
  %s10 = scalar_select 0, %s9, %s7
  $region1: #{tpu_custom_call.1} parent=0
    #allocation4 [shape = 'u8[262144]{0}', space=vmem, size = 0x40000, scoped, tag = 'input window, operand 0']
    #allocation5 [shape = 's32[2]{0}', space=sflag, size = 0x8, scoped, tag = 'scoped memory for tpu_custom_call.1']
    #allocation6 [shape = 's32[2]{0}', space=sflag, size = 0x8, scoped, tag = 'scoped memory for tpu_custom_call.1']
    #allocation7 [shape = 'u8[589824]{0}', space=vmem, size = 0x90000, scoped, tag = 'input window, operand 1, single buffered']
    #allocation8 [shape = 's32[1]{0}', space=sflag, size = 0x4, scoped, tag = 'scoped memory for tpu_custom_call.1']
    #allocation9 [shape = 'u8[262144]{0}', space=vmem, size = 0x40000, scoped, tag = 'output window, operand 0']
    #allocation10 [shape = 'u8[8192]{0}', space=vmem, size = 0x2000, scoped, tag = 'output window, operand 1']
    #allocation11 [shape = 's32[2]{0}', space=sflag, size = 0x8, scoped, tag = 'scoped memory for tpu_custom_call.1']
    %11 = vsyncpa [#allocation5], 0
    %s12 = scalar_lea.sflag [#allocation5], 1
    %13 = vsyncpa %s12, 0
    %14 = vsyncpa [#allocation8], 0
    %15 = vsyncpa [#allocation6], 0
    %s16 = scalar_lea.sflag [#allocation6], 1
    %17 = vsyncpa %s16, 0
    %18 = vsyncpa [#allocation11], 0
    %s19 = scalar_lea.sflag [#allocation11], 1
    %20 = vsyncpa %s19, 0
    loop: start=0, step=1, limit=4
    $region2: #{tpu_custom_call.1} parent=1 // loop_pre_header
      _
    $region3: #{tpu_custom_call.1} parent=1 // loop_header
      %s22 = sphi 0, %s26
      %p23 = scmp.ge.s32.totalorder %s22, 4
      %s32 = sphi 0, %s34
      %s35 = sphi 0, %s32
      %s36 = sphi 0, %s35
      %s52 = sphi 0, %s36
      %s56 = sphi 0, %s56
      %s58 = sphi 0, %s56
      %s59 = sphi 0, %s58
      %s73 = sphi 0, %s59
      %s77 = sphi 0, %s77
      %s79 = sphi 0, %s77
      %s80 = sphi 0, %s79
      %s94 = sphi 0, %s80
      %s98 = sphi 0, %s98
      %s100 = sphi 0, %s98
      %s101 = sphi 0, %s100
      %s115 = sphi 0, %s101
      %s121 = sphi 0, %s123
      %s124 = sphi 0, %s121
      %s125 = sphi 0, %s124
      %s141 = sphi 0, %s125
      %s147 = sphi 0, %s149
      %s150 = sphi 0, %s147
      %s151 = sphi 0, %s150
      %s167 = sphi 0, %s151
    $region4: #{tpu_custom_call.1} parent=1 // loop_header_branch
      %25 = sbr.rel (%p23) target = $region8
    $region5: #{tpu_custom_call.1} parent=1 // loop_body
      %s27 = ssub.s32 %s22, 1
      %s28 = ssub.s32 %s22, 2
      %s29 = sadd.s32 %s22, 1
      %s30 = ssub.s32 %s22, %s29
      %p31 = scmp.eq.s32.totalorder %s30, 0
      %s33 = sadd.s32 %s32, 1
      %s34 = scalar_select %p31, %s32, %s33
      %p37 = pneg %p31
      %p38 = scmp.eq.s32.totalorder %s22, 1
      %p39 = por %p37, %p38
      %p40 = scmp.ne.s32.totalorder %s32, %s35
      %p41 = scmp.eq.s32.totalorder %s22, 0
      %p42 = por %p40, %p41
      %p43 = scmp.ne.s32.totalorder %s32, %s35
      %p44 = scmp.eq.s32.totalorder %s27, 1
      %p45 = por %p43, %p44
      %p46 = scmp.ne.s32.totalorder %s35, %s36
      %p47 = scmp.eq.s32.totalorder %s27, 0
      %p48 = por %p46, %p47
      %p49 = scmp.ne.s32.totalorder %s35, %s36
      %p50 = scmp.eq.s32.totalorder %s28, 1
      %p51 = por %p49, %p50
      %p53 = scmp.ne.s32.totalorder %s36, %s52
      %p54 = scmp.eq.s32.totalorder %s28, 0
      %p55 = por %p53, %p54
      %s57 = sadd.s32 %s56, 1
      %p60 = scmp.eq.s32.totalorder %s22, 1
      %p61 = scmp.ne.s32.totalorder %s56, %s58
      %p62 = scmp.eq.s32.totalorder %s22, 0
      %p63 = por %p61, %p62
      %p64 = scmp.ne.s32.totalorder %s56, %s58
      %p65 = scmp.eq.s32.totalorder %s27, 1
      %p66 = por %p64, %p65
      %p67 = scmp.ne.s32.totalorder %s58, %s59
      %p68 = scmp.eq.s32.totalorder %s27, 0
      %p69 = por %p67, %p68
      %p70 = scmp.ne.s32.totalorder %s58, %s59
      %p71 = scmp.eq.s32.totalorder %s28, 1
      %p72 = por %p70, %p71
      %p74 = scmp.ne.s32.totalorder %s59, %s73
      %p75 = scmp.eq.s32.totalorder %s28, 0
      %p76 = por %p74, %p75
      %s78 = sadd.s32 %s77, 1
      %p81 = scmp.eq.s32.totalorder %s22, 1
      %p82 = scmp.ne.s32.totalorder %s77, %s79
      %p83 = scmp.eq.s32.totalorder %s22, 0
      %p84 = por %p82, %p83
      %p85 = scmp.ne.s32.totalorder %s77, %s79
      %p86 = scmp.eq.s32.totalorder %s27, 1
      %p87 = por %p85, %p86
      %p88 = scmp.ne.s32.totalorder %s79, %s80
      %p89 = scmp.eq.s32.totalorder %s27, 0
      %p90 = por %p88, %p89
      %p91 = scmp.ne.s32.totalorder %s79, %s80
      %p92 = scmp.eq.s32.totalorder %s28, 1
      %p93 = por %p91, %p92
      %p95 = scmp.ne.s32.totalorder %s80, %s94
      %p96 = scmp.eq.s32.totalorder %s28, 0
      %p97 = por %p95, %p96
      %s99 = sadd.s32 %s98, 1
      %p102 = scmp.eq.s32.totalorder %s22, 1
      %p103 = scmp.ne.s32.totalorder %s98, %s100
      %p104 = scmp.eq.s32.totalorder %s22, 0
      %p105 = por %p103, %p104
      %p106 = scmp.ne.s32.totalorder %s98, %s100
      %p107 = scmp.eq.s32.totalorder %s27, 1
      %p108 = por %p106, %p107
      %p109 = scmp.ne.s32.totalorder %s100, %s101
      %p110 = scmp.eq.s32.totalorder %s27, 0
      %p111 = por %p109, %p110
      %p112 = scmp.ne.s32.totalorder %s100, %s101
      %p113 = scmp.eq.s32.totalorder %s28, 1
      %p114 = por %p112, %p113
      %p116 = scmp.ne.s32.totalorder %s101, %s115
      %p117 = scmp.eq.s32.totalorder %s28, 0
      %p118 = por %p116, %p117
      %s119 = ssub.s32 %s22, %s29
      %p120 = scmp.eq.s32.totalorder %s119, 0
      %s122 = sadd.s32 %s121, 1
      %s123 = scalar_select %p120, %s121, %s122
      %p126 = pneg %p120
      %p127 = scmp.eq.s32.totalorder %s22, 1
      %p128 = por %p126, %p127
      %p129 = scmp.ne.s32.totalorder %s121, %s124
      %p130 = scmp.eq.s32.totalorder %s22, 0
      %p131 = por %p129, %p130
      %p132 = scmp.ne.s32.totalorder %s121, %s124
      %p133 = scmp.eq.s32.totalorder %s27, 1
      %p134 = por %p132, %p133
      %p135 = scmp.ne.s32.totalorder %s124, %s125
      %p136 = scmp.eq.s32.totalorder %s27, 0
      %p137 = por %p135, %p136
      %p138 = scmp.ne.s32.totalorder %s124, %s125
      %p139 = scmp.eq.s32.totalorder %s28, 1
      %p140 = por %p138, %p139
      %p142 = scmp.ne.s32.totalorder %s125, %s141
      %p143 = scmp.eq.s32.totalorder %s28, 0
      %p144 = por %p142, %p143
      %s145 = ssub.s32 %s22, %s29
      %p146 = scmp.eq.s32.totalorder %s145, 0
      %s148 = sadd.s32 %s147, 1
      %s149 = scalar_select %p146, %s147, %s148
      %p152 = pneg %p146
      %p153 = scmp.eq.s32.totalorder %s22, 1
      %p154 = por %p152, %p153
      %p155 = scmp.ne.s32.totalorder %s147, %s150
      %p156 = scmp.eq.s32.totalorder %s22, 0
      %p157 = por %p155, %p156
      %p158 = scmp.ne.s32.totalorder %s147, %s150
      %p159 = scmp.eq.s32.totalorder %s27, 1
      %p160 = por %p158, %p159
      %p161 = scmp.ne.s32.totalorder %s150, %s151
      %p162 = scmp.eq.s32.totalorder %s27, 0
      %p163 = por %p161, %p162
      %p164 = scmp.ne.s32.totalorder %s150, %s151
      %p165 = scmp.eq.s32.totalorder %s28, 1
      %p166 = por %p164, %p165
      %p168 = scmp.ne.s32.totalorder %s151, %s167
      %p169 = scmp.eq.s32.totalorder %s28, 0
      %p170 = por %p168, %p169
      %p171 = scmp.le.s32.totalorder 1, %s22
      %p172 = scmp.lt.s32.totalorder %s22, 3
      %p173 = pnand %p171, %p172
      %p174 = pneg %p173
      // Predicated region
      $region9: #{tpu_custom_call.1} parent=5 // pred_check
        _
      $region10: #{tpu_custom_call.1} parent=5 // pred_check_branch
        %176 = sbr.rel (%p173) target = $region12
      $region11: #{tpu_custom_call.1} parent=5 // pred_region
        %s177 = ssub.s32 %s22, 1
        // Predicated region
        $region13: #{tpu_custom_call.1} parent=11 // pred_check
          %p178 = pneg %p69
        $region14: #{tpu_custom_call.1} parent=11 // pred_check_branch
          %180 = sbr.rel (%p178) target = $region16
        $region15: #{tpu_custom_call.1} parent=11 // pred_region
          %s182 = ssub.s32 18432, 18432
          %183 = vsyncadd [#allocation8], %s182
          %s184 = sshll.u32 [#allocation7], 4
          %s185 = int_to_ptr.vmem [resolvable:$true] %s184
          %190 = dma.hbm_to_vmem [thread:$0]  %s1, 18432, %s185, [#allocation8], 128, 128, 8
        $region16: #{tpu_custom_call.1} parent=11 // pred_fallthru
          _
        // Predicated region
        $region17: #{tpu_custom_call.1} parent=11 // pred_check
          %p191 = pneg %p90
        $region18: #{tpu_custom_call.1} parent=11 // pred_check_branch
          %193 = sbr.rel (%p191) target = $region20
        $region19: #{tpu_custom_call.1} parent=11 // pred_region
          _
        $region20: #{tpu_custom_call.1} parent=11 // pred_fallthru
          _
        // Predicated region
        $region21: #{tpu_custom_call.1} parent=11 // pred_check
          %p194 = pneg %p111
        $region22: #{tpu_custom_call.1} parent=11 // pred_check_branch
          %196 = sbr.rel (%p194) target = $region24
        $region23: #{tpu_custom_call.1} parent=11 // pred_region
          _
        $region24: #{tpu_custom_call.1} parent=11 // pred_fallthru
          _
      $region12: #{tpu_custom_call.1} parent=5 // pred_fallthru
        _
      %p197 = scmp.lt.s32.totalorder %s22, 2
      // Predicated region
      $region25: #{tpu_custom_call.1} parent=5 // pred_check
        %p198 = pneg %p197
      $region26: #{tpu_custom_call.1} parent=5 // pred_check_branch
        %200 = sbr.rel (%p198) target = $region28
      $region27: #{tpu_custom_call.1} parent=5 // pred_region
        // Predicated region
        $region29: #{tpu_custom_call.1} parent=27 // pred_check
          %p201 = pneg %p42
        $region30: #{tpu_custom_call.1} parent=27 // pred_check_branch
          %203 = sbr.rel (%p201) target = $region32
        $region31: #{tpu_custom_call.1} parent=27 // pred_region
          %s204 = sand.u32 %s32, 1
          %s205 = scalar_lea.sflag [#allocation5], %s204
          %s206 = sand.u32 %s32, 1
          %s207 = smul.addr %s206, 256
          %s208 = scalar_lea.vmem [#allocation4], %s207
          %s209 = smul.u32 32, %s22
          %s211 = ssub.s32 4096, 4096
          %212 = vsyncadd %s205, %s211
          %s213 = smul.addr %s209, 128
          %s214 = scalar_lea.hbm %s0, %s213
          %s215 = sshll.u32 %s208, 4
          %s216 = int_to_ptr.vmem [resolvable:$true] %s215
          %221 = dma.hbm_to_vmem [thread:$0]  %s214, 4096, %s216, %s205, 128, 128, 8
        $region32: #{tpu_custom_call.1} parent=27 // pred_fallthru
          _
      $region28: #{tpu_custom_call.1} parent=5 // pred_fallthru
        _
      %p222 = scmp.le.s32.totalorder 1, %s22
      %p223 = scmp.lt.s32.totalorder %s22, 3
      %p224 = pnand %p222, %p223
      %p225 = pneg %p224
      // Predicated region
      $region33: #{tpu_custom_call.1} parent=5 // pred_check
        _
      $region34: #{tpu_custom_call.1} parent=5 // pred_check_branch
        %227 = sbr.rel (%p224) target = $region36
      $region35: #{tpu_custom_call.1} parent=5 // pred_region
        %s228 = ssub.s32 %s22, 1
        %s229 = sand.u32 %s35, 1
        %s230 = scalar_lea.sflag [#allocation5], %s229
        %s231 = sand.u32 %s35, 1
        %s232 = smul.addr %s231, 256
        %s233 = scalar_lea.vmem [#allocation4], %s232
        // Predicated region
        $region37: #{tpu_custom_call.1} parent=35 // pred_check
          %p234 = pneg %p48
        $region38: #{tpu_custom_call.1} parent=35 // pred_check_branch
          %236 = sbr.rel (%p234) target = $region40
        $region39: #{tpu_custom_call.1} parent=35 // pred_region
          %237 = dma.done %s230, 4096
        $region40: #{tpu_custom_call.1} parent=35 // pred_fallthru
          _
        // Predicated region
        $region41: #{tpu_custom_call.1} parent=35 // pred_check
          %p238 = pneg %p69
        $region42: #{tpu_custom_call.1} parent=35 // pred_check_branch
          %240 = sbr.rel (%p238) target = $region44
        $region43: #{tpu_custom_call.1} parent=35 // pred_region
          %241 = dma.done [#allocation8], 18432
        $region44: #{tpu_custom_call.1} parent=35 // pred_fallthru
          _
        %s242 = sand.u32 %s35, 1
        %s243 = scalar_lea.sflag [#allocation5], %s242
        %s244 = sand.u32 %s35, 1
        %s245 = smul.addr %s244, 256
        %s246 = scalar_lea.vmem [#allocation4], %s245
        %p247 = pneg %p48
        %p248 = pneg %p45
        %p249 = pneg %p69
        %p250 = pneg %p66
        %p251 = pneg %p90
        %p252 = pneg %p87
        %p253 = pneg %p111
        %p254 = pneg %p108
        %p255 = pneg %p137
        %p256 = pneg %p134
        %s257 = sand.u32 %s124, 1
        %s258 = scalar_lea.sflag [#allocation6], %s257
        %s259 = sand.u32 %s124, 1
        %s260 = smul.addr %s259, 256
        %s261 = scalar_lea.vmem [#allocation9], %s260
        %p262 = pneg %p163
        %p263 = pneg %p160
        %s264 = sand.u32 %s150, 1
        %s265 = scalar_lea.sflag [#allocation11], %s264
        %s266 = sand.u32 %s150, 1
        %s267 = smul.addr %s266, 8
        %s268 = scalar_lea.vmem [#allocation10], %s267
        %s269 = smul.u32 32, %s27
        %s270 = smul.u32 32, %s27
        %v271 = vld [vmem:[%s233] sm:$0xff]
        %v272 = vld [vmem:[%s233 + $0x8] sm:$0xff]
        %v273 = vld [vmem:[%s233 + $0x10] sm:$0xff]
        %v274 = vld [vmem:[%s233 + $0x18] sm:$0xff]
        %v275 = vld [vmem:[%s233 + $0x20] sm:$0xff]
        %v276 = vld [vmem:[%s233 + $0x28] sm:$0xff]
        %v277 = vld [vmem:[%s233 + $0x30] sm:$0xff]
        %v278 = vld [vmem:[%s233 + $0x38] sm:$0xff]
        %v279 = vld [vmem:[%s233 + $0x40] sm:$0xff]
        %v280 = vld [vmem:[%s233 + $0x48] sm:$0xff]
        %v281 = vld [vmem:[%s233 + $0x50] sm:$0xff]
        %v282 = vld [vmem:[%s233 + $0x58] sm:$0xff]
        %v283 = vld [vmem:[%s233 + $0x60] sm:$0xff]
        %v284 = vld [vmem:[%s233 + $0x68] sm:$0xff]
        %v285 = vld [vmem:[%s233 + $0x70] sm:$0xff]
        %v286 = vld [vmem:[%s233 + $0x78] sm:$0xff]
        %v287 = vld [vmem:[%s233 + $0x80] sm:$0xff]
        %v288 = vld [vmem:[%s233 + $0x88] sm:$0xff]
        %v289 = vld [vmem:[%s233 + $0x90] sm:$0xff]
        %v290 = vld [vmem:[%s233 + $0x98] sm:$0xff]
        %v291 = vld [vmem:[%s233 + $0xa0] sm:$0xff]
        %v292 = vld [vmem:[%s233 + $0xa8] sm:$0xff]
        %v293 = vld [vmem:[%s233 + $0xb0] sm:$0xff]
        %v294 = vld [vmem:[%s233 + $0xb8] sm:$0xff]
        %v295 = vld [vmem:[%s233 + $0xc0] sm:$0xff]
        %v296 = vld [vmem:[%s233 + $0xc8] sm:$0xff]
        %v297 = vld [vmem:[%s233 + $0xd0] sm:$0xff]
        %v298 = vld [vmem:[%s233 + $0xd8] sm:$0xff]
        %v299 = vld [vmem:[%s233 + $0xe0] sm:$0xff]
        %v300 = vld [vmem:[%s233 + $0xe8] sm:$0xff]
        %v301 = vld [vmem:[%s233 + $0xf0] sm:$0xff]
        %v302 = vld [vmem:[%s233 + $0xf8] sm:$0xff]
        %303 = vst [vmem:[#allocation2] sm:$0xff] 0.0
        %304 = vst [vmem:[#allocation2 + $0x8] sm:$0xff] 0.0
        %305 = vst [vmem:[#allocation2 + $0x10] sm:$0x3] 0.0
        %s306 = scalar_lea.vmem [#allocation2], 408
        %307 = vst [vmem:[%s306] sm:$0xff] 0.0
        %308 = vst [vmem:[%s306 + $0x8] sm:$0xff] 0.0
        %309 = vst [vmem:[%s306 + $0x10] sm:$0x3] 0.0
        %310 = vst [vmem:[#allocation2] sm:$0x1] 0.0
        %311 = vst [vmem:[#allocation2 + $0x18] sm:$0x1] 0.0
        %312 = vst [vmem:[#allocation2 + $0x30] sm:$0x1] 0.0
        %313 = vst [vmem:[#allocation2 + $0x48] sm:$0x1] 0.0
        %314 = vst [vmem:[#allocation2 + $0x60] sm:$0x1] 0.0
        %315 = vst [vmem:[#allocation2 + $0x78] sm:$0x1] 0.0
        %316 = vst [vmem:[#allocation2 + $0x90] sm:$0x1] 0.0
        %317 = vst [vmem:[#allocation2 + $0xa8] sm:$0x1] 0.0
        %318 = vst [vmem:[#allocation2 + $0xc0] sm:$0x1] 0.0
        %319 = vst [vmem:[#allocation2 + $0xd8] sm:$0x1] 0.0
        %320 = vst [vmem:[#allocation2 + $0xf0] sm:$0x1] 0.0
        %321 = vst [vmem:[#allocation2 + $0x108] sm:$0x1] 0.0
        %322 = vst [vmem:[#allocation2 + $0x120] sm:$0x1] 0.0
        %323 = vst [vmem:[#allocation2 + $0x138] sm:$0x1] 0.0
        %324 = vst [vmem:[#allocation2 + $0x150] sm:$0x1] 0.0
        %325 = vst [vmem:[#allocation2 + $0x168] sm:$0x1] 0.0
        %326 = vst [vmem:[#allocation2 + $0x180] sm:$0x1] 0.0
        %327 = vst [vmem:[#allocation2 + $0x198] sm:$0x1] 0.0
        %328 = vst [vmem:[#allocation2 + $0x11] sm:$0x1] 0.0
        %329 = vst [vmem:[#allocation2 + $0x29] sm:$0x1] 0.0
        %330 = vst [vmem:[#allocation2 + $0x41] sm:$0x1] 0.0
        %331 = vst [vmem:[#allocation2 + $0x59] sm:$0x1] 0.0
        %332 = vst [vmem:[#allocation2 + $0x71] sm:$0x1] 0.0
        %333 = vst [vmem:[#allocation2 + $0x89] sm:$0x1] 0.0
        %334 = vst [vmem:[#allocation2 + $0xa1] sm:$0x1] 0.0
        %335 = vst [vmem:[#allocation2 + $0xb9] sm:$0x1] 0.0
        %336 = vst [vmem:[#allocation2 + $0xd1] sm:$0x1] 0.0
        %337 = vst [vmem:[#allocation2 + $0xe9] sm:$0x1] 0.0
        %338 = vst [vmem:[#allocation2 + $0x101] sm:$0x1] 0.0
        %339 = vst [vmem:[#allocation2 + $0x119] sm:$0x1] 0.0
        %340 = vst [vmem:[#allocation2 + $0x131] sm:$0x1] 0.0
        %341 = vst [vmem:[#allocation2 + $0x149] sm:$0x1] 0.0
        %342 = vst [vmem:[#allocation2 + $0x161] sm:$0x1] 0.0
        %343 = vst [vmem:[#allocation2 + $0x179] sm:$0x1] 0.0
        %344 = vst [vmem:[#allocation2 + $0x191] sm:$0x1] 0.0
        %345 = vst [vmem:[#allocation2 + $0x1a9] sm:$0x1] 0.0
        %s346 = scalar_lea.vmem [#allocation2], 24
        %347 = vst [vmem:[%s346 + $0x1] sm:$0xff] %v271
        %348 = vst [vmem:[%s346 + $0x9] sm:$0xff] %v272
        %349 = vst [vmem:[%s346 + $0x19] sm:$0xff] %v273
        %350 = vst [vmem:[%s346 + $0x21] sm:$0xff] %v274
        %351 = vst [vmem:[%s346 + $0x31] sm:$0xff] %v275
        %352 = vst [vmem:[%s346 + $0x39] sm:$0xff] %v276
        %353 = vst [vmem:[%s346 + $0x49] sm:$0xff] %v277
        %354 = vst [vmem:[%s346 + $0x51] sm:$0xff] %v278
        %355 = vst [vmem:[%s346 + $0x61] sm:$0xff] %v279
        %356 = vst [vmem:[%s346 + $0x69] sm:$0xff] %v280
        %357 = vst [vmem:[%s346 + $0x79] sm:$0xff] %v281
        %358 = vst [vmem:[%s346 + $0x81] sm:$0xff] %v282
        %359 = vst [vmem:[%s346 + $0x91] sm:$0xff] %v283
        %360 = vst [vmem:[%s346 + $0x99] sm:$0xff] %v284
        %361 = vst [vmem:[%s346 + $0xa9] sm:$0xff] %v285
        %362 = vst [vmem:[%s346 + $0xb1] sm:$0xff] %v286
        %363 = vst [vmem:[%s346 + $0xc1] sm:$0xff] %v287
        %364 = vst [vmem:[%s346 + $0xc9] sm:$0xff] %v288
        %365 = vst [vmem:[%s346 + $0xd9] sm:$0xff] %v289
        %366 = vst [vmem:[%s346 + $0xe1] sm:$0xff] %v290
        %367 = vst [vmem:[%s346 + $0xf1] sm:$0xff] %v291
        %368 = vst [vmem:[%s346 + $0xf9] sm:$0xff] %v292
        %369 = vst [vmem:[%s346 + $0x109] sm:$0xff] %v293
        %370 = vst [vmem:[%s346 + $0x111] sm:$0xff] %v294
        %371 = vst [vmem:[%s346 + $0x121] sm:$0xff] %v295
        %372 = vst [vmem:[%s346 + $0x129] sm:$0xff] %v296
        %373 = vst [vmem:[%s346 + $0x139] sm:$0xff] %v297
        %374 = vst [vmem:[%s346 + $0x141] sm:$0xff] %v298
        %375 = vst [vmem:[%s346 + $0x151] sm:$0xff] %v299
        %376 = vst [vmem:[%s346 + $0x159] sm:$0xff] %v300
        %377 = vst [vmem:[%s346 + $0x169] sm:$0xff] %v301
        %378 = vst [vmem:[%s346 + $0x171] sm:$0xff] %v302
        %v379 = vld [vmem:[#allocation2] sm:$0xff]
        %v380 = vld [vmem:[#allocation2 + $0x8] sm:$0xff]
        %v381 = vld [vmem:[#allocation2 + $0x18] sm:$0xff]
        %v382 = vld [vmem:[#allocation2 + $0x20] sm:$0xff]
        %v383 = vld [vmem:[#allocation2 + $0x30] sm:$0xff]
        %v384 = vld [vmem:[#allocation2 + $0x38] sm:$0xff]
        %v385 = vld [vmem:[#allocation2 + $0x48] sm:$0xff]
        %v386 = vld [vmem:[#allocation2 + $0x50] sm:$0xff]
        %v387 = vld [vmem:[#allocation2 + $0x60] sm:$0xff]
        %v388 = vld [vmem:[#allocation2 + $0x68] sm:$0xff]
        %v389 = vld [vmem:[#allocation2 + $0x78] sm:$0xff]
        %v390 = vld [vmem:[#allocation2 + $0x80] sm:$0xff]
        %v391 = vld [vmem:[#allocation2 + $0x90] sm:$0xff]
        %v392 = vld [vmem:[#allocation2 + $0x98] sm:$0xff]
        %v393 = vld [vmem:[#allocation2 + $0xa8] sm:$0xff]
        %v394 = vld [vmem:[#allocation2 + $0xb0] sm:$0xff]
        %v395 = vld [vmem:[#allocation2 + $0xc0] sm:$0xff]
        %v396 = vld [vmem:[#allocation2 + $0xc8] sm:$0xff]
        %v397 = vld [vmem:[#allocation2 + $0xd8] sm:$0xff]
        %v398 = vld [vmem:[#allocation2 + $0xe0] sm:$0xff]
        %v399 = vld [vmem:[#allocation2 + $0xf0] sm:$0xff]
        %v400 = vld [vmem:[#allocation2 + $0xf8] sm:$0xff]
        %v401 = vld [vmem:[#allocation2 + $0x108] sm:$0xff]
        %v402 = vld [vmem:[#allocation2 + $0x110] sm:$0xff]
        %v403 = vld [vmem:[#allocation2 + $0x120] sm:$0xff]
        %v404 = vld [vmem:[#allocation2 + $0x128] sm:$0xff]
        %v405 = vld [vmem:[#allocation2 + $0x138] sm:$0xff]
        %v406 = vld [vmem:[#allocation2 + $0x140] sm:$0xff]
        %v407 = vld [vmem:[#allocation2 + $0x150] sm:$0xff]
        %v408 = vld [vmem:[#allocation2 + $0x158] sm:$0xff]
        %v409 = vld [vmem:[#allocation2 + $0x168] sm:$0xff]
        %v410 = vld [vmem:[#allocation2 + $0x170] sm:$0xff]
        %411 = vst [vmem:[#allocation3] sm:$0xff] %v379
        %412 = vst [vmem:[#allocation3 + $0x48] sm:$0xff] %v380
        %413 = vst [vmem:[#allocation3 + $0x90] sm:$0xff] %v381
        %414 = vst [vmem:[#allocation3 + $0xd8] sm:$0xff] %v382
        %415 = vst [vmem:[#allocation3 + $0x120] sm:$0xff] %v383
        %416 = vst [vmem:[#allocation3 + $0x168] sm:$0xff] %v384
        %417 = vst [vmem:[#allocation3 + $0x1b0] sm:$0xff] %v385
        %418 = vst [vmem:[#allocation3 + $0x1f8] sm:$0xff] %v386
        %419 = vst [vmem:[#allocation3 + $0x240] sm:$0xff] %v387
        %420 = vst [vmem:[#allocation3 + $0x288] sm:$0xff] %v388
        %421 = vst [vmem:[#allocation3 + $0x2d0] sm:$0xff] %v389
        %422 = vst [vmem:[#allocation3 + $0x318] sm:$0xff] %v390
        %423 = vst [vmem:[#allocation3 + $0x360] sm:$0xff] %v391
        %424 = vst [vmem:[#allocation3 + $0x3a8] sm:$0xff] %v392
        %425 = vst [vmem:[#allocation3 + $0x3f0] sm:$0xff] %v393
        %426 = vst [vmem:[#allocation3 + $0x438] sm:$0xff] %v394
        %427 = vst [vmem:[#allocation3 + $0x480] sm:$0xff] %v395
        %428 = vst [vmem:[#allocation3 + $0x4c8] sm:$0xff] %v396
        %429 = vst [vmem:[#allocation3 + $0x510] sm:$0xff] %v397
        %430 = vst [vmem:[#allocation3 + $0x558] sm:$0xff] %v398
        %431 = vst [vmem:[#allocation3 + $0x5a0] sm:$0xff] %v399
        %432 = vst [vmem:[#allocation3 + $0x5e8] sm:$0xff] %v400
        %433 = vst [vmem:[#allocation3 + $0x630] sm:$0xff] %v401
        %434 = vst [vmem:[#allocation3 + $0x678] sm:$0xff] %v402
        %435 = vst [vmem:[#allocation3 + $0x6c0] sm:$0xff] %v403
        %436 = vst [vmem:[#allocation3 + $0x708] sm:$0xff] %v404
        %437 = vst [vmem:[#allocation3 + $0x750] sm:$0xff] %v405
        %438 = vst [vmem:[#allocation3 + $0x798] sm:$0xff] %v406
        %439 = vst [vmem:[#allocation3 + $0x7e0] sm:$0xff] %v407
        %440 = vst [vmem:[#allocation3 + $0x828] sm:$0xff] %v408
        %441 = vst [vmem:[#allocation3 + $0x870] sm:$0xff] %v409
        %442 = vst [vmem:[#allocation3 + $0x8b8] sm:$0xff] %v410
        %v443 = vld [vmem:[#allocation2 + $0x1] sm:$0xff]
        %v444 = vld [vmem:[#allocation2 + $0x9] sm:$0xff]
        %v445 = vld [vmem:[#allocation2 + $0x19] sm:$0xff]
        %v446 = vld [vmem:[#allocation2 + $0x21] sm:$0xff]
        %v447 = vld [vmem:[#allocation2 + $0x31] sm:$0xff]
        %v448 = vld [vmem:[#allocation2 + $0x39] sm:$0xff]
        %v449 = vld [vmem:[#allocation2 + $0x49] sm:$0xff]
        %v450 = vld [vmem:[#allocation2 + $0x51] sm:$0xff]
        %v451 = vld [vmem:[#allocation2 + $0x61] sm:$0xff]
        %v452 = vld [vmem:[#allocation2 + $0x69] sm:$0xff]
        %v453 = vld [vmem:[#allocation2 + $0x79] sm:$0xff]
        %v454 = vld [vmem:[#allocation2 + $0x81] sm:$0xff]
        %v455 = vld [vmem:[#allocation2 + $0x91] sm:$0xff]
        %v456 = vld [vmem:[#allocation2 + $0x99] sm:$0xff]
        %v457 = vld [vmem:[#allocation2 + $0xa9] sm:$0xff]
        %v458 = vld [vmem:[#allocation2 + $0xb1] sm:$0xff]
        %v459 = vld [vmem:[#allocation2 + $0xc1] sm:$0xff]
        %v460 = vld [vmem:[#allocation2 + $0xc9] sm:$0xff]
        %v461 = vld [vmem:[#allocation2 + $0xd9] sm:$0xff]
        %v462 = vld [vmem:[#allocation2 + $0xe1] sm:$0xff]
        %v463 = vld [vmem:[#allocation2 + $0xf1] sm:$0xff]
        %v464 = vld [vmem:[#allocation2 + $0xf9] sm:$0xff]
        %v465 = vld [vmem:[#allocation2 + $0x109] sm:$0xff]
        %v466 = vld [vmem:[#allocation2 + $0x111] sm:$0xff]
        %v467 = vld [vmem:[#allocation2 + $0x121] sm:$0xff]
        %v468 = vld [vmem:[#allocation2 + $0x129] sm:$0xff]
        %v469 = vld [vmem:[#allocation2 + $0x139] sm:$0xff]
        %v470 = vld [vmem:[#allocation2 + $0x141] sm:$0xff]
        %v471 = vld [vmem:[#allocation2 + $0x151] sm:$0xff]
        %v472 = vld [vmem:[#allocation2 + $0x159] sm:$0xff]
        %v473 = vld [vmem:[#allocation2 + $0x169] sm:$0xff]
        %v474 = vld [vmem:[#allocation2 + $0x171] sm:$0xff]
        %475 = vst [vmem:[#allocation3 + $0x8] sm:$0xff] %v443
        %476 = vst [vmem:[#allocation3 + $0x50] sm:$0xff] %v444
        %477 = vst [vmem:[#allocation3 + $0x98] sm:$0xff] %v445
        %478 = vst [vmem:[#allocation3 + $0xe0] sm:$0xff] %v446
        %479 = vst [vmem:[#allocation3 + $0x128] sm:$0xff] %v447
        %480 = vst [vmem:[#allocation3 + $0x170] sm:$0xff] %v448
        %481 = vst [vmem:[#allocation3 + $0x1b8] sm:$0xff] %v449
        %482 = vst [vmem:[#allocation3 + $0x200] sm:$0xff] %v450
        %483 = vst [vmem:[#allocation3 + $0x248] sm:$0xff] %v451
        %484 = vst [vmem:[#allocation3 + $0x290] sm:$0xff] %v452
        %485 = vst [vmem:[#allocation3 + $0x2d8] sm:$0xff] %v453
        %486 = vst [vmem:[#allocation3 + $0x320] sm:$0xff] %v454
        %487 = vst [vmem:[#allocation3 + $0x368] sm:$0xff] %v455
        %488 = vst [vmem:[#allocation3 + $0x3b0] sm:$0xff] %v456
        %489 = vst [vmem:[#allocation3 + $0x3f8] sm:$0xff] %v457
        %490 = vst [vmem:[#allocation3 + $0x440] sm:$0xff] %v458
        %491 = vst [vmem:[#allocation3 + $0x488] sm:$0xff] %v459
        %492 = vst [vmem:[#allocation3 + $0x4d0] sm:$0xff] %v460
        %493 = vst [vmem:[#allocation3 + $0x518] sm:$0xff] %v461
        %494 = vst [vmem:[#allocation3 + $0x560] sm:$0xff] %v462
        %495 = vst [vmem:[#allocation3 + $0x5a8] sm:$0xff] %v463
        %496 = vst [vmem:[#allocation3 + $0x5f0] sm:$0xff] %v464
        %497 = vst [vmem:[#allocation3 + $0x638] sm:$0xff] %v465
        %498 = vst [vmem:[#allocation3 + $0x680] sm:$0xff] %v466
        %499 = vst [vmem:[#allocation3 + $0x6c8] sm:$0xff] %v467
        %500 = vst [vmem:[#allocation3 + $0x710] sm:$0xff] %v468
        %501 = vst [vmem:[#allocation3 + $0x758] sm:$0xff] %v469
        %502 = vst [vmem:[#allocation3 + $0x7a0] sm:$0xff] %v470
        %503 = vst [vmem:[#allocation3 + $0x7e8] sm:$0xff] %v471
        %504 = vst [vmem:[#allocation3 + $0x830] sm:$0xff] %v472
        %505 = vst [vmem:[#allocation3 + $0x878] sm:$0xff] %v473
        %506 = vst [vmem:[#allocation3 + $0x8c0] sm:$0xff] %v474
        %v507 = vld [vmem:[#allocation2 + $0x2] sm:$0xff]
        %v508 = vld [vmem:[#allocation2 + $0xa] sm:$0xff]
        %v509 = vld [vmem:[#allocation2 + $0x1a] sm:$0xff]
        %v510 = vld [vmem:[#allocation2 + $0x22] sm:$0xff]
        %v511 = vld [vmem:[#allocation2 + $0x32] sm:$0xff]
        %v512 = vld [vmem:[#allocation2 + $0x3a] sm:$0xff]
        %v513 = vld [vmem:[#allocation2 + $0x4a] sm:$0xff]
        %v514 = vld [vmem:[#allocation2 + $0x52] sm:$0xff]
        %v515 = vld [vmem:[#allocation2 + $0x62] sm:$0xff]
        %v516 = vld [vmem:[#allocation2 + $0x6a] sm:$0xff]
        %v517 = vld [vmem:[#allocation2 + $0x7a] sm:$0xff]
        %v518 = vld [vmem:[#allocation2 + $0x82] sm:$0xff]
        %v519 = vld [vmem:[#allocation2 + $0x92] sm:$0xff]
        %v520 = vld [vmem:[#allocation2 + $0x9a] sm:$0xff]
        %v521 = vld [vmem:[#allocation2 + $0xaa] sm:$0xff]
        %v522 = vld [vmem:[#allocation2 + $0xb2] sm:$0xff]
        %v523 = vld [vmem:[#allocation2 + $0xc2] sm:$0xff]
        %v524 = vld [vmem:[#allocation2 + $0xca] sm:$0xff]
        %v525 = vld [vmem:[#allocation2 + $0xda] sm:$0xff]
        %v526 = vld [vmem:[#allocation2 + $0xe2] sm:$0xff]
        %v527 = vld [vmem:[#allocation2 + $0xf2] sm:$0xff]
        %v528 = vld [vmem:[#allocation2 + $0xfa] sm:$0xff]
        %v529 = vld [vmem:[#allocation2 + $0x10a] sm:$0xff]
        %v530 = vld [vmem:[#allocation2 + $0x112] sm:$0xff]
        %v531 = vld [vmem:[#allocation2 + $0x122] sm:$0xff]
        %v532 = vld [vmem:[#allocation2 + $0x12a] sm:$0xff]
        %v533 = vld [vmem:[#allocation2 + $0x13a] sm:$0xff]
        %v534 = vld [vmem:[#allocation2 + $0x142] sm:$0xff]
        %v535 = vld [vmem:[#allocation2 + $0x152] sm:$0xff]
        %v536 = vld [vmem:[#allocation2 + $0x15a] sm:$0xff]
        %v537 = vld [vmem:[#allocation2 + $0x16a] sm:$0xff]
        %v538 = vld [vmem:[#allocation2 + $0x172] sm:$0xff]
        %539 = vst [vmem:[#allocation3 + $0x10] sm:$0xff] %v507
        %540 = vst [vmem:[#allocation3 + $0x58] sm:$0xff] %v508
        %541 = vst [vmem:[#allocation3 + $0xa0] sm:$0xff] %v509
        %542 = vst [vmem:[#allocation3 + $0xe8] sm:$0xff] %v510
        %543 = vst [vmem:[#allocation3 + $0x130] sm:$0xff] %v511
        %544 = vst [vmem:[#allocation3 + $0x178] sm:$0xff] %v512
        %545 = vst [vmem:[#allocation3 + $0x1c0] sm:$0xff] %v513
        %546 = vst [vmem:[#allocation3 + $0x208] sm:$0xff] %v514
        %547 = vst [vmem:[#allocation3 + $0x250] sm:$0xff] %v515
        %548 = vst [vmem:[#allocation3 + $0x298] sm:$0xff] %v516
        %549 = vst [vmem:[#allocation3 + $0x2e0] sm:$0xff] %v517
        %550 = vst [vmem:[#allocation3 + $0x328] sm:$0xff] %v518
        %551 = vst [vmem:[#allocation3 + $0x370] sm:$0xff] %v519
        %552 = vst [vmem:[#allocation3 + $0x3b8] sm:$0xff] %v520
        %553 = vst [vmem:[#allocation3 + $0x400] sm:$0xff] %v521
        %554 = vst [vmem:[#allocation3 + $0x448] sm:$0xff] %v522
        %555 = vst [vmem:[#allocation3 + $0x490] sm:$0xff] %v523
        %556 = vst [vmem:[#allocation3 + $0x4d8] sm:$0xff] %v524
        %557 = vst [vmem:[#allocation3 + $0x520] sm:$0xff] %v525
        %558 = vst [vmem:[#allocation3 + $0x568] sm:$0xff] %v526
        %559 = vst [vmem:[#allocation3 + $0x5b0] sm:$0xff] %v527
        %560 = vst [vmem:[#allocation3 + $0x5f8] sm:$0xff] %v528
        %561 = vst [vmem:[#allocation3 + $0x640] sm:$0xff] %v529
        %562 = vst [vmem:[#allocation3 + $0x688] sm:$0xff] %v530
        %563 = vst [vmem:[#allocation3 + $0x6d0] sm:$0xff] %v531
        %564 = vst [vmem:[#allocation3 + $0x718] sm:$0xff] %v532
        %565 = vst [vmem:[#allocation3 + $0x760] sm:$0xff] %v533
        %566 = vst [vmem:[#allocation3 + $0x7a8] sm:$0xff] %v534
        %567 = vst [vmem:[#allocation3 + $0x7f0] sm:$0xff] %v535
        %568 = vst [vmem:[#allocation3 + $0x838] sm:$0xff] %v536
        %569 = vst [vmem:[#allocation3 + $0x880] sm:$0xff] %v537
        %570 = vst [vmem:[#allocation3 + $0x8c8] sm:$0xff] %v538
        %v571 = vld [vmem:[%s346] sm:$0xff]
        %v572 = vld [vmem:[%s346 + $0x8] sm:$0xff]
        %v573 = vld [vmem:[%s346 + $0x18] sm:$0xff]
        %v574 = vld [vmem:[%s346 + $0x20] sm:$0xff]
        %v575 = vld [vmem:[%s346 + $0x30] sm:$0xff]
        %v576 = vld [vmem:[%s346 + $0x38] sm:$0xff]
        %v577 = vld [vmem:[%s346 + $0x48] sm:$0xff]
        %v578 = vld [vmem:[%s346 + $0x50] sm:$0xff]
        %v579 = vld [vmem:[%s346 + $0x60] sm:$0xff]
        %v580 = vld [vmem:[%s346 + $0x68] sm:$0xff]
        %v581 = vld [vmem:[%s346 + $0x78] sm:$0xff]
        %v582 = vld [vmem:[%s346 + $0x80] sm:$0xff]
        %v583 = vld [vmem:[%s346 + $0x90] sm:$0xff]
        %v584 = vld [vmem:[%s346 + $0x98] sm:$0xff]
        %v585 = vld [vmem:[%s346 + $0xa8] sm:$0xff]
        %v586 = vld [vmem:[%s346 + $0xb0] sm:$0xff]
        %v587 = vld [vmem:[%s346 + $0xc0] sm:$0xff]
        %v588 = vld [vmem:[%s346 + $0xc8] sm:$0xff]
        %v589 = vld [vmem:[%s346 + $0xd8] sm:$0xff]
        %v590 = vld [vmem:[%s346 + $0xe0] sm:$0xff]
        %v591 = vld [vmem:[%s346 + $0xf0] sm:$0xff]
        %v592 = vld [vmem:[%s346 + $0xf8] sm:$0xff]
        %v593 = vld [vmem:[%s346 + $0x108] sm:$0xff]
        %v594 = vld [vmem:[%s346 + $0x110] sm:$0xff]
        %v595 = vld [vmem:[%s346 + $0x120] sm:$0xff]
        %v596 = vld [vmem:[%s346 + $0x128] sm:$0xff]
        %v597 = vld [vmem:[%s346 + $0x138] sm:$0xff]
        %v598 = vld [vmem:[%s346 + $0x140] sm:$0xff]
        %v599 = vld [vmem:[%s346 + $0x150] sm:$0xff]
        %v600 = vld [vmem:[%s346 + $0x158] sm:$0xff]
        %v601 = vld [vmem:[%s346 + $0x168] sm:$0xff]
        %v602 = vld [vmem:[%s346 + $0x170] sm:$0xff]
        %603 = vst [vmem:[#allocation3 + $0x18] sm:$0xff] %v571
        %604 = vst [vmem:[#allocation3 + $0x60] sm:$0xff] %v572
        %605 = vst [vmem:[#allocation3 + $0xa8] sm:$0xff] %v573
        %606 = vst [vmem:[#allocation3 + $0xf0] sm:$0xff] %v574
        %607 = vst [vmem:[#allocation3 + $0x138] sm:$0xff] %v575
        %608 = vst [vmem:[#allocation3 + $0x180] sm:$0xff] %v576
        %609 = vst [vmem:[#allocation3 + $0x1c8] sm:$0xff] %v577
        %610 = vst [vmem:[#allocation3 + $0x210] sm:$0xff] %v578
        %611 = vst [vmem:[#allocation3 + $0x258] sm:$0xff] %v579
        %612 = vst [vmem:[#allocation3 + $0x2a0] sm:$0xff] %v580
        %613 = vst [vmem:[#allocation3 + $0x2e8] sm:$0xff] %v581
        %614 = vst [vmem:[#allocation3 + $0x330] sm:$0xff] %v582
        %615 = vst [vmem:[#allocation3 + $0x378] sm:$0xff] %v583
        %616 = vst [vmem:[#allocation3 + $0x3c0] sm:$0xff] %v584
        %617 = vst [vmem:[#allocation3 + $0x408] sm:$0xff] %v585
        %618 = vst [vmem:[#allocation3 + $0x450] sm:$0xff] %v586
        %619 = vst [vmem:[#allocation3 + $0x498] sm:$0xff] %v587
        %620 = vst [vmem:[#allocation3 + $0x4e0] sm:$0xff] %v588
        %621 = vst [vmem:[#allocation3 + $0x528] sm:$0xff] %v589
        %622 = vst [vmem:[#allocation3 + $0x570] sm:$0xff] %v590
        %623 = vst [vmem:[#allocation3 + $0x5b8] sm:$0xff] %v591
        %624 = vst [vmem:[#allocation3 + $0x600] sm:$0xff] %v592
        %625 = vst [vmem:[#allocation3 + $0x648] sm:$0xff] %v593
        %626 = vst [vmem:[#allocation3 + $0x690] sm:$0xff] %v594
        %627 = vst [vmem:[#allocation3 + $0x6d8] sm:$0xff] %v595
        %628 = vst [vmem:[#allocation3 + $0x720] sm:$0xff] %v596
        %629 = vst [vmem:[#allocation3 + $0x768] sm:$0xff] %v597
        %630 = vst [vmem:[#allocation3 + $0x7b0] sm:$0xff] %v598
        %631 = vst [vmem:[#allocation3 + $0x7f8] sm:$0xff] %v599
        %632 = vst [vmem:[#allocation3 + $0x840] sm:$0xff] %v600
        %633 = vst [vmem:[#allocation3 + $0x888] sm:$0xff] %v601
        %634 = vst [vmem:[#allocation3 + $0x8d0] sm:$0xff] %v602
        %v635 = vld [vmem:[%s346 + $0x1] sm:$0xff]
        %v636 = vld [vmem:[%s346 + $0x9] sm:$0xff]
        %v637 = vld [vmem:[%s346 + $0x19] sm:$0xff]
        %v638 = vld [vmem:[%s346 + $0x21] sm:$0xff]
        %v639 = vld [vmem:[%s346 + $0x31] sm:$0xff]
        %v640 = vld [vmem:[%s346 + $0x39] sm:$0xff]
        %v641 = vld [vmem:[%s346 + $0x49] sm:$0xff]
        %v642 = vld [vmem:[%s346 + $0x51] sm:$0xff]
        %v643 = vld [vmem:[%s346 + $0x61] sm:$0xff]
        %v644 = vld [vmem:[%s346 + $0x69] sm:$0xff]
        %v645 = vld [vmem:[%s346 + $0x79] sm:$0xff]
        %v646 = vld [vmem:[%s346 + $0x81] sm:$0xff]
        %v647 = vld [vmem:[%s346 + $0x91] sm:$0xff]
        %v648 = vld [vmem:[%s346 + $0x99] sm:$0xff]
        %v649 = vld [vmem:[%s346 + $0xa9] sm:$0xff]
        %v650 = vld [vmem:[%s346 + $0xb1] sm:$0xff]
        %v651 = vld [vmem:[%s346 + $0xc1] sm:$0xff]
        %v652 = vld [vmem:[%s346 + $0xc9] sm:$0xff]
        %v653 = vld [vmem:[%s346 + $0xd9] sm:$0xff]
        %v654 = vld [vmem:[%s346 + $0xe1] sm:$0xff]
        %v655 = vld [vmem:[%s346 + $0xf1] sm:$0xff]
        %v656 = vld [vmem:[%s346 + $0xf9] sm:$0xff]
        %v657 = vld [vmem:[%s346 + $0x109] sm:$0xff]
        %v658 = vld [vmem:[%s346 + $0x111] sm:$0xff]
        %v659 = vld [vmem:[%s346 + $0x121] sm:$0xff]
        %v660 = vld [vmem:[%s346 + $0x129] sm:$0xff]
        %v661 = vld [vmem:[%s346 + $0x139] sm:$0xff]
        %v662 = vld [vmem:[%s346 + $0x141] sm:$0xff]
        %v663 = vld [vmem:[%s346 + $0x151] sm:$0xff]
        %v664 = vld [vmem:[%s346 + $0x159] sm:$0xff]
        %v665 = vld [vmem:[%s346 + $0x169] sm:$0xff]
        %v666 = vld [vmem:[%s346 + $0x171] sm:$0xff]
        %667 = vst [vmem:[#allocation3 + $0x20] sm:$0xff] %v635
        %668 = vst [vmem:[#allocation3 + $0x68] sm:$0xff] %v636
        %669 = vst [vmem:[#allocation3 + $0xb0] sm:$0xff] %v637
        %670 = vst [vmem:[#allocation3 + $0xf8] sm:$0xff] %v638
        %671 = vst [vmem:[#allocation3 + $0x140] sm:$0xff] %v639
        %672 = vst [vmem:[#allocation3 + $0x188] sm:$0xff] %v640
        %673 = vst [vmem:[#allocation3 + $0x1d0] sm:$0xff] %v641
        %674 = vst [vmem:[#allocation3 + $0x218] sm:$0xff] %v642
        %675 = vst [vmem:[#allocation3 + $0x260] sm:$0xff] %v643
        %676 = vst [vmem:[#allocation3 + $0x2a8] sm:$0xff] %v644
        %677 = vst [vmem:[#allocation3 + $0x2f0] sm:$0xff] %v645
        %678 = vst [vmem:[#allocation3 + $0x338] sm:$0xff] %v646
        %679 = vst [vmem:[#allocation3 + $0x380] sm:$0xff] %v647
        %680 = vst [vmem:[#allocation3 + $0x3c8] sm:$0xff] %v648
        %681 = vst [vmem:[#allocation3 + $0x410] sm:$0xff] %v649
        %682 = vst [vmem:[#allocation3 + $0x458] sm:$0xff] %v650
        %683 = vst [vmem:[#allocation3 + $0x4a0] sm:$0xff] %v651
        %684 = vst [vmem:[#allocation3 + $0x4e8] sm:$0xff] %v652
        %685 = vst [vmem:[#allocation3 + $0x530] sm:$0xff] %v653
        %686 = vst [vmem:[#allocation3 + $0x578] sm:$0xff] %v654
        %687 = vst [vmem:[#allocation3 + $0x5c0] sm:$0xff] %v655
        %688 = vst [vmem:[#allocation3 + $0x608] sm:$0xff] %v656
        %689 = vst [vmem:[#allocation3 + $0x650] sm:$0xff] %v657
        %690 = vst [vmem:[#allocation3 + $0x698] sm:$0xff] %v658
        %691 = vst [vmem:[#allocation3 + $0x6e0] sm:$0xff] %v659
        %692 = vst [vmem:[#allocation3 + $0x728] sm:$0xff] %v660
        %693 = vst [vmem:[#allocation3 + $0x770] sm:$0xff] %v661
        %694 = vst [vmem:[#allocation3 + $0x7b8] sm:$0xff] %v662
        %695 = vst [vmem:[#allocation3 + $0x800] sm:$0xff] %v663
        %696 = vst [vmem:[#allocation3 + $0x848] sm:$0xff] %v664
        %697 = vst [vmem:[#allocation3 + $0x890] sm:$0xff] %v665
        %698 = vst [vmem:[#allocation3 + $0x8d8] sm:$0xff] %v666
        %v699 = vld [vmem:[%s346 + $0x2] sm:$0xff]
        %v700 = vld [vmem:[%s346 + $0xa] sm:$0xff]
        %v701 = vld [vmem:[%s346 + $0x1a] sm:$0xff]
        %v702 = vld [vmem:[%s346 + $0x22] sm:$0xff]
        %v703 = vld [vmem:[%s346 + $0x32] sm:$0xff]
        %v704 = vld [vmem:[%s346 + $0x3a] sm:$0xff]
        %v705 = vld [vmem:[%s346 + $0x4a] sm:$0xff]
        %v706 = vld [vmem:[%s346 + $0x52] sm:$0xff]
        %v707 = vld [vmem:[%s346 + $0x62] sm:$0xff]
        %v708 = vld [vmem:[%s346 + $0x6a] sm:$0xff]
        %v709 = vld [vmem:[%s346 + $0x7a] sm:$0xff]
        %v710 = vld [vmem:[%s346 + $0x82] sm:$0xff]
        %v711 = vld [vmem:[%s346 + $0x92] sm:$0xff]
        %v712 = vld [vmem:[%s346 + $0x9a] sm:$0xff]
        %v713 = vld [vmem:[%s346 + $0xaa] sm:$0xff]
        %v714 = vld [vmem:[%s346 + $0xb2] sm:$0xff]
        %v715 = vld [vmem:[%s346 + $0xc2] sm:$0xff]
        %v716 = vld [vmem:[%s346 + $0xca] sm:$0xff]
        %v717 = vld [vmem:[%s346 + $0xda] sm:$0xff]
        %v718 = vld [vmem:[%s346 + $0xe2] sm:$0xff]
        %v719 = vld [vmem:[%s346 + $0xf2] sm:$0xff]
        %v720 = vld [vmem:[%s346 + $0xfa] sm:$0xff]
        %v721 = vld [vmem:[%s346 + $0x10a] sm:$0xff]
        %v722 = vld [vmem:[%s346 + $0x112] sm:$0xff]
        %v723 = vld [vmem:[%s346 + $0x122] sm:$0xff]
        %v724 = vld [vmem:[%s346 + $0x12a] sm:$0xff]
        %v725 = vld [vmem:[%s346 + $0x13a] sm:$0xff]
        %v726 = vld [vmem:[%s346 + $0x142] sm:$0xff]
        %v727 = vld [vmem:[%s346 + $0x152] sm:$0xff]
        %v728 = vld [vmem:[%s346 + $0x15a] sm:$0xff]
        %v729 = vld [vmem:[%s346 + $0x16a] sm:$0xff]
        %v730 = vld [vmem:[%s346 + $0x172] sm:$0xff]
        %731 = vst [vmem:[#allocation3 + $0x28] sm:$0xff] %v699
        %732 = vst [vmem:[#allocation3 + $0x70] sm:$0xff] %v700
        %733 = vst [vmem:[#allocation3 + $0xb8] sm:$0xff] %v701
        %734 = vst [vmem:[#allocation3 + $0x100] sm:$0xff] %v702
        %735 = vst [vmem:[#allocation3 + $0x148] sm:$0xff] %v703
        %736 = vst [vmem:[#allocation3 + $0x190] sm:$0xff] %v704
        %737 = vst [vmem:[#allocation3 + $0x1d8] sm:$0xff] %v705
        %738 = vst [vmem:[#allocation3 + $0x220] sm:$0xff] %v706
        %739 = vst [vmem:[#allocation3 + $0x268] sm:$0xff] %v707
        %740 = vst [vmem:[#allocation3 + $0x2b0] sm:$0xff] %v708
        %741 = vst [vmem:[#allocation3 + $0x2f8] sm:$0xff] %v709
        %742 = vst [vmem:[#allocation3 + $0x340] sm:$0xff] %v710
        %743 = vst [vmem:[#allocation3 + $0x388] sm:$0xff] %v711
        %744 = vst [vmem:[#allocation3 + $0x3d0] sm:$0xff] %v712
        %745 = vst [vmem:[#allocation3 + $0x418] sm:$0xff] %v713
        %746 = vst [vmem:[#allocation3 + $0x460] sm:$0xff] %v714
        %747 = vst [vmem:[#allocation3 + $0x4a8] sm:$0xff] %v715
        %748 = vst [vmem:[#allocation3 + $0x4f0] sm:$0xff] %v716
        %749 = vst [vmem:[#allocation3 + $0x538] sm:$0xff] %v717
        %750 = vst [vmem:[#allocation3 + $0x580] sm:$0xff] %v718
        %751 = vst [vmem:[#allocation3 + $0x5c8] sm:$0xff] %v719
        %752 = vst [vmem:[#allocation3 + $0x610] sm:$0xff] %v720
        %753 = vst [vmem:[#allocation3 + $0x658] sm:$0xff] %v721
        %754 = vst [vmem:[#allocation3 + $0x6a0] sm:$0xff] %v722
        %755 = vst [vmem:[#allocation3 + $0x6e8] sm:$0xff] %v723
        %756 = vst [vmem:[#allocation3 + $0x730] sm:$0xff] %v724
        %757 = vst [vmem:[#allocation3 + $0x778] sm:$0xff] %v725
        %758 = vst [vmem:[#allocation3 + $0x7c0] sm:$0xff] %v726
        %759 = vst [vmem:[#allocation3 + $0x808] sm:$0xff] %v727
        %760 = vst [vmem:[#allocation3 + $0x850] sm:$0xff] %v728
        %761 = vst [vmem:[#allocation3 + $0x898] sm:$0xff] %v729
        %762 = vst [vmem:[#allocation3 + $0x8e0] sm:$0xff] %v730
        %s763 = scalar_lea.vmem [#allocation2], 48
        %v764 = vld [vmem:[%s763] sm:$0xff]
        %v765 = vld [vmem:[%s763 + $0x8] sm:$0xff]
        %v766 = vld [vmem:[%s763 + $0x18] sm:$0xff]
        %v767 = vld [vmem:[%s763 + $0x20] sm:$0xff]
        %v768 = vld [vmem:[%s763 + $0x30] sm:$0xff]
        %v769 = vld [vmem:[%s763 + $0x38] sm:$0xff]
        %v770 = vld [vmem:[%s763 + $0x48] sm:$0xff]
        %v771 = vld [vmem:[%s763 + $0x50] sm:$0xff]
        %v772 = vld [vmem:[%s763 + $0x60] sm:$0xff]
        %v773 = vld [vmem:[%s763 + $0x68] sm:$0xff]
        %v774 = vld [vmem:[%s763 + $0x78] sm:$0xff]
        %v775 = vld [vmem:[%s763 + $0x80] sm:$0xff]
        %v776 = vld [vmem:[%s763 + $0x90] sm:$0xff]
        %v777 = vld [vmem:[%s763 + $0x98] sm:$0xff]
        %v778 = vld [vmem:[%s763 + $0xa8] sm:$0xff]
        %v779 = vld [vmem:[%s763 + $0xb0] sm:$0xff]
        %v780 = vld [vmem:[%s763 + $0xc0] sm:$0xff]
        %v781 = vld [vmem:[%s763 + $0xc8] sm:$0xff]
        %v782 = vld [vmem:[%s763 + $0xd8] sm:$0xff]
        %v783 = vld [vmem:[%s763 + $0xe0] sm:$0xff]
        %v784 = vld [vmem:[%s763 + $0xf0] sm:$0xff]
        %v785 = vld [vmem:[%s763 + $0xf8] sm:$0xff]
        %v786 = vld [vmem:[%s763 + $0x108] sm:$0xff]
        %v787 = vld [vmem:[%s763 + $0x110] sm:$0xff]
        %v788 = vld [vmem:[%s763 + $0x120] sm:$0xff]
        %v789 = vld [vmem:[%s763 + $0x128] sm:$0xff]
        %v790 = vld [vmem:[%s763 + $0x138] sm:$0xff]
        %v791 = vld [vmem:[%s763 + $0x140] sm:$0xff]
        %v792 = vld [vmem:[%s763 + $0x150] sm:$0xff]
        %v793 = vld [vmem:[%s763 + $0x158] sm:$0xff]
        %v794 = vld [vmem:[%s763 + $0x168] sm:$0xff]
        %v795 = vld [vmem:[%s763 + $0x170] sm:$0xff]
        %796 = vst [vmem:[#allocation3 + $0x30] sm:$0xff] %v764
        %797 = vst [vmem:[#allocation3 + $0x78] sm:$0xff] %v765
        %798 = vst [vmem:[#allocation3 + $0xc0] sm:$0xff] %v766
        %799 = vst [vmem:[#allocation3 + $0x108] sm:$0xff] %v767
        %800 = vst [vmem:[#allocation3 + $0x150] sm:$0xff] %v768
        %801 = vst [vmem:[#allocation3 + $0x198] sm:$0xff] %v769
        %802 = vst [vmem:[#allocation3 + $0x1e0] sm:$0xff] %v770
        %803 = vst [vmem:[#allocation3 + $0x228] sm:$0xff] %v771
        %804 = vst [vmem:[#allocation3 + $0x270] sm:$0xff] %v772
        %805 = vst [vmem:[#allocation3 + $0x2b8] sm:$0xff] %v773
        %806 = vst [vmem:[#allocation3 + $0x300] sm:$0xff] %v774
        %807 = vst [vmem:[#allocation3 + $0x348] sm:$0xff] %v775
        %808 = vst [vmem:[#allocation3 + $0x390] sm:$0xff] %v776
        %809 = vst [vmem:[#allocation3 + $0x3d8] sm:$0xff] %v777
        %810 = vst [vmem:[#allocation3 + $0x420] sm:$0xff] %v778
        %811 = vst [vmem:[#allocation3 + $0x468] sm:$0xff] %v779
        %812 = vst [vmem:[#allocation3 + $0x4b0] sm:$0xff] %v780
        %813 = vst [vmem:[#allocation3 + $0x4f8] sm:$0xff] %v781
        %814 = vst [vmem:[#allocation3 + $0x540] sm:$0xff] %v782
        %815 = vst [vmem:[#allocation3 + $0x588] sm:$0xff] %v783
        %816 = vst [vmem:[#allocation3 + $0x5d0] sm:$0xff] %v784
        %817 = vst [vmem:[#allocation3 + $0x618] sm:$0xff] %v785
        %818 = vst [vmem:[#allocation3 + $0x660] sm:$0xff] %v786
        %819 = vst [vmem:[#allocation3 + $0x6a8] sm:$0xff] %v787
        %820 = vst [vmem:[#allocation3 + $0x6f0] sm:$0xff] %v788
        %821 = vst [vmem:[#allocation3 + $0x738] sm:$0xff] %v789
        %822 = vst [vmem:[#allocation3 + $0x780] sm:$0xff] %v790
        %823 = vst [vmem:[#allocation3 + $0x7c8] sm:$0xff] %v791
        %824 = vst [vmem:[#allocation3 + $0x810] sm:$0xff] %v792
        %825 = vst [vmem:[#allocation3 + $0x858] sm:$0xff] %v793
        %826 = vst [vmem:[#allocation3 + $0x8a0] sm:$0xff] %v794
        %827 = vst [vmem:[#allocation3 + $0x8e8] sm:$0xff] %v795
        %v828 = vld [vmem:[%s763 + $0x1] sm:$0xff]
        %v829 = vld [vmem:[%s763 + $0x9] sm:$0xff]
        %v830 = vld [vmem:[%s763 + $0x19] sm:$0xff]
        %v831 = vld [vmem:[%s763 + $0x21] sm:$0xff]
        %v832 = vld [vmem:[%s763 + $0x31] sm:$0xff]
        %v833 = vld [vmem:[%s763 + $0x39] sm:$0xff]
        %v834 = vld [vmem:[%s763 + $0x49] sm:$0xff]
        %v835 = vld [vmem:[%s763 + $0x51] sm:$0xff]
        %v836 = vld [vmem:[%s763 + $0x61] sm:$0xff]
        %v837 = vld [vmem:[%s763 + $0x69] sm:$0xff]
        %v838 = vld [vmem:[%s763 + $0x79] sm:$0xff]
        %v839 = vld [vmem:[%s763 + $0x81] sm:$0xff]
        %v840 = vld [vmem:[%s763 + $0x91] sm:$0xff]
        %v841 = vld [vmem:[%s763 + $0x99] sm:$0xff]
        %v842 = vld [vmem:[%s763 + $0xa9] sm:$0xff]
        %v843 = vld [vmem:[%s763 + $0xb1] sm:$0xff]
        %v844 = vld [vmem:[%s763 + $0xc1] sm:$0xff]
        %v845 = vld [vmem:[%s763 + $0xc9] sm:$0xff]
        %v846 = vld [vmem:[%s763 + $0xd9] sm:$0xff]
        %v847 = vld [vmem:[%s763 + $0xe1] sm:$0xff]
        %v848 = vld [vmem:[%s763 + $0xf1] sm:$0xff]
        %v849 = vld [vmem:[%s763 + $0xf9] sm:$0xff]
        %v850 = vld [vmem:[%s763 + $0x109] sm:$0xff]
        %v851 = vld [vmem:[%s763 + $0x111] sm:$0xff]
        %v852 = vld [vmem:[%s763 + $0x121] sm:$0xff]
        %v853 = vld [vmem:[%s763 + $0x129] sm:$0xff]
        %v854 = vld [vmem:[%s763 + $0x139] sm:$0xff]
        %v855 = vld [vmem:[%s763 + $0x141] sm:$0xff]
        %v856 = vld [vmem:[%s763 + $0x151] sm:$0xff]
        %v857 = vld [vmem:[%s763 + $0x159] sm:$0xff]
        %v858 = vld [vmem:[%s763 + $0x169] sm:$0xff]
        %v859 = vld [vmem:[%s763 + $0x171] sm:$0xff]
        %860 = vst [vmem:[#allocation3 + $0x38] sm:$0xff] %v828
        %861 = vst [vmem:[#allocation3 + $0x80] sm:$0xff] %v829
        %862 = vst [vmem:[#allocation3 + $0xc8] sm:$0xff] %v830
        %863 = vst [vmem:[#allocation3 + $0x110] sm:$0xff] %v831
        %864 = vst [vmem:[#allocation3 + $0x158] sm:$0xff] %v832
        %865 = vst [vmem:[#allocation3 + $0x1a0] sm:$0xff] %v833
        %866 = vst [vmem:[#allocation3 + $0x1e8] sm:$0xff] %v834
        %867 = vst [vmem:[#allocation3 + $0x230] sm:$0xff] %v835
        %868 = vst [vmem:[#allocation3 + $0x278] sm:$0xff] %v836
        %869 = vst [vmem:[#allocation3 + $0x2c0] sm:$0xff] %v837
        %870 = vst [vmem:[#allocation3 + $0x308] sm:$0xff] %v838
        %871 = vst [vmem:[#allocation3 + $0x350] sm:$0xff] %v839
        %872 = vst [vmem:[#allocation3 + $0x398] sm:$0xff] %v840
        %873 = vst [vmem:[#allocation3 + $0x3e0] sm:$0xff] %v841
        %874 = vst [vmem:[#allocation3 + $0x428] sm:$0xff] %v842
        %875 = vst [vmem:[#allocation3 + $0x470] sm:$0xff] %v843
        %876 = vst [vmem:[#allocation3 + $0x4b8] sm:$0xff] %v844
        %877 = vst [vmem:[#allocation3 + $0x500] sm:$0xff] %v845
        %878 = vst [vmem:[#allocation3 + $0x548] sm:$0xff] %v846
        %879 = vst [vmem:[#allocation3 + $0x590] sm:$0xff] %v847
        %880 = vst [vmem:[#allocation3 + $0x5d8] sm:$0xff] %v848
        %881 = vst [vmem:[#allocation3 + $0x620] sm:$0xff] %v849
        %882 = vst [vmem:[#allocation3 + $0x668] sm:$0xff] %v850
        %883 = vst [vmem:[#allocation3 + $0x6b0] sm:$0xff] %v851
        %884 = vst [vmem:[#allocation3 + $0x6f8] sm:$0xff] %v852
        %885 = vst [vmem:[#allocation3 + $0x740] sm:$0xff] %v853
        %886 = vst [vmem:[#allocation3 + $0x788] sm:$0xff] %v854
        %887 = vst [vmem:[#allocation3 + $0x7d0] sm:$0xff] %v855
        %888 = vst [vmem:[#allocation3 + $0x818] sm:$0xff] %v856
        %889 = vst [vmem:[#allocation3 + $0x860] sm:$0xff] %v857
        %890 = vst [vmem:[#allocation3 + $0x8a8] sm:$0xff] %v858
        %891 = vst [vmem:[#allocation3 + $0x8f0] sm:$0xff] %v859
        %v892 = vld [vmem:[%s763 + $0x2] sm:$0xff]
        %v893 = vld [vmem:[%s763 + $0xa] sm:$0xff]
        %v894 = vld [vmem:[%s763 + $0x1a] sm:$0xff]
        %v895 = vld [vmem:[%s763 + $0x22] sm:$0xff]
        %v896 = vld [vmem:[%s763 + $0x32] sm:$0xff]
        %v897 = vld [vmem:[%s763 + $0x3a] sm:$0xff]
        %v898 = vld [vmem:[%s763 + $0x4a] sm:$0xff]
        %v899 = vld [vmem:[%s763 + $0x52] sm:$0xff]
        %v900 = vld [vmem:[%s763 + $0x62] sm:$0xff]
        %v901 = vld [vmem:[%s763 + $0x6a] sm:$0xff]
        %v902 = vld [vmem:[%s763 + $0x7a] sm:$0xff]
        %v903 = vld [vmem:[%s763 + $0x82] sm:$0xff]
        %v904 = vld [vmem:[%s763 + $0x92] sm:$0xff]
        %v905 = vld [vmem:[%s763 + $0x9a] sm:$0xff]
        %v906 = vld [vmem:[%s763 + $0xaa] sm:$0xff]
        %v907 = vld [vmem:[%s763 + $0xb2] sm:$0xff]
        %v908 = vld [vmem:[%s763 + $0xc2] sm:$0xff]
        %v909 = vld [vmem:[%s763 + $0xca] sm:$0xff]
        %v910 = vld [vmem:[%s763 + $0xda] sm:$0xff]
        %v911 = vld [vmem:[%s763 + $0xe2] sm:$0xff]
        %v912 = vld [vmem:[%s763 + $0xf2] sm:$0xff]
        %v913 = vld [vmem:[%s763 + $0xfa] sm:$0xff]
        %v914 = vld [vmem:[%s763 + $0x10a] sm:$0xff]
        %v915 = vld [vmem:[%s763 + $0x112] sm:$0xff]
        %v916 = vld [vmem:[%s763 + $0x122] sm:$0xff]
        %v917 = vld [vmem:[%s763 + $0x12a] sm:$0xff]
        %v918 = vld [vmem:[%s763 + $0x13a] sm:$0xff]
        %v919 = vld [vmem:[%s763 + $0x142] sm:$0xff]
        %v920 = vld [vmem:[%s763 + $0x152] sm:$0xff]
        %v921 = vld [vmem:[%s763 + $0x15a] sm:$0xff]
        %v922 = vld [vmem:[%s763 + $0x16a] sm:$0xff]
        %v923 = vld [vmem:[%s763 + $0x172] sm:$0xff]
        %924 = vst [vmem:[#allocation3 + $0x40] sm:$0xff] %v892
        %925 = vst [vmem:[#allocation3 + $0x88] sm:$0xff] %v893
        %926 = vst [vmem:[#allocation3 + $0xd0] sm:$0xff] %v894
        %927 = vst [vmem:[#allocation3 + $0x118] sm:$0xff] %v895
        %928 = vst [vmem:[#allocation3 + $0x160] sm:$0xff] %v896
        %929 = vst [vmem:[#allocation3 + $0x1a8] sm:$0xff] %v897
        %930 = vst [vmem:[#allocation3 + $0x1f0] sm:$0xff] %v898
        %931 = vst [vmem:[#allocation3 + $0x238] sm:$0xff] %v899
        %932 = vst [vmem:[#allocation3 + $0x280] sm:$0xff] %v900
        %933 = vst [vmem:[#allocation3 + $0x2c8] sm:$0xff] %v901
        %934 = vst [vmem:[#allocation3 + $0x310] sm:$0xff] %v902
        %935 = vst [vmem:[#allocation3 + $0x358] sm:$0xff] %v903
        %936 = vst [vmem:[#allocation3 + $0x3a0] sm:$0xff] %v904
        %937 = vst [vmem:[#allocation3 + $0x3e8] sm:$0xff] %v905
        %938 = vst [vmem:[#allocation3 + $0x430] sm:$0xff] %v906
        %939 = vst [vmem:[#allocation3 + $0x478] sm:$0xff] %v907
        %940 = vst [vmem:[#allocation3 + $0x4c0] sm:$0xff] %v908
        %941 = vst [vmem:[#allocation3 + $0x508] sm:$0xff] %v909
        %942 = vst [vmem:[#allocation3 + $0x550] sm:$0xff] %v910
        %943 = vst [vmem:[#allocation3 + $0x598] sm:$0xff] %v911
        %944 = vst [vmem:[#allocation3 + $0x5e0] sm:$0xff] %v912
        %945 = vst [vmem:[#allocation3 + $0x628] sm:$0xff] %v913
        %946 = vst [vmem:[#allocation3 + $0x670] sm:$0xff] %v914
        %947 = vst [vmem:[#allocation3 + $0x6b8] sm:$0xff] %v915
        %948 = vst [vmem:[#allocation3 + $0x700] sm:$0xff] %v916
        %949 = vst [vmem:[#allocation3 + $0x748] sm:$0xff] %v917
        %950 = vst [vmem:[#allocation3 + $0x790] sm:$0xff] %v918
        %951 = vst [vmem:[#allocation3 + $0x7d8] sm:$0xff] %v919
        %952 = vst [vmem:[#allocation3 + $0x820] sm:$0xff] %v920
        %953 = vst [vmem:[#allocation3 + $0x868] sm:$0xff] %v921
        %954 = vst [vmem:[#allocation3 + $0x8b0] sm:$0xff] %v922
        %955 = vst [vmem:[#allocation3 + $0x8f8] sm:$0xff] %v923
        %v956 = vld [vmem:[#allocation3] sm:$0xff]
        %v957 = vld [vmem:[#allocation3 + $0x8] sm:$0xff]
        %v958 = vld [vmem:[#allocation3 + $0x10] sm:$0xff]
        %v959 = vld [vmem:[#allocation3 + $0x18] sm:$0xff]
        %v960 = vld [vmem:[#allocation3 + $0x20] sm:$0xff]
        %v961 = vld [vmem:[#allocation3 + $0x28] sm:$0xff]
        %v962 = vld [vmem:[#allocation3 + $0x30] sm:$0xff]
        %v963 = vld [vmem:[#allocation3 + $0x38] sm:$0xff]
        %v964 = vld [vmem:[#allocation3 + $0x40] sm:$0xff]
        %v965 = vld [vmem:[#allocation3 + $0x48] sm:$0xff]
        %v966 = vld [vmem:[#allocation3 + $0x50] sm:$0xff]
        %v967 = vld [vmem:[#allocation3 + $0x58] sm:$0xff]
        %v968 = vld [vmem:[#allocation3 + $0x60] sm:$0xff]
        %v969 = vld [vmem:[#allocation3 + $0x68] sm:$0xff]
        %v970 = vld [vmem:[#allocation3 + $0x70] sm:$0xff]
        %v971 = vld [vmem:[#allocation3 + $0x78] sm:$0xff]
        %v972 = vld [vmem:[#allocation3 + $0x80] sm:$0xff]
        %v973 = vld [vmem:[#allocation3 + $0x88] sm:$0xff]
        %v974 = vld [vmem:[#allocation3 + $0x90] sm:$0xff]
        %v975 = vld [vmem:[#allocation3 + $0x98] sm:$0xff]
        %v976 = vld [vmem:[#allocation3 + $0xa0] sm:$0xff]
        %v977 = vld [vmem:[#allocation3 + $0xa8] sm:$0xff]
        %v978 = vld [vmem:[#allocation3 + $0xb0] sm:$0xff]
        %v979 = vld [vmem:[#allocation3 + $0xb8] sm:$0xff]
        %v980 = vld [vmem:[#allocation3 + $0xc0] sm:$0xff]
        %v981 = vld [vmem:[#allocation3 + $0xc8] sm:$0xff]
        %v982 = vld [vmem:[#allocation3 + $0xd0] sm:$0xff]
        %v983 = vld [vmem:[#allocation3 + $0xd8] sm:$0xff]
        %v984 = vld [vmem:[#allocation3 + $0xe0] sm:$0xff]
        %v985 = vld [vmem:[#allocation3 + $0xe8] sm:$0xff]
        %v986 = vld [vmem:[#allocation3 + $0xf0] sm:$0xff]
        %v987 = vld [vmem:[#allocation3 + $0xf8] sm:$0xff]
        %v988 = vld [vmem:[#allocation3 + $0x100] sm:$0xff]
        %v989 = vld [vmem:[#allocation3 + $0x108] sm:$0xff]
        %v990 = vld [vmem:[#allocation3 + $0x110] sm:$0xff]
        %v991 = vld [vmem:[#allocation3 + $0x118] sm:$0xff]
        %v992 = vld [vmem:[#allocation3 + $0x120] sm:$0xff]
        %v993 = vld [vmem:[#allocation3 + $0x128] sm:$0xff]
        %v994 = vld [vmem:[#allocation3 + $0x130] sm:$0xff]
        %v995 = vld [vmem:[#allocation3 + $0x138] sm:$0xff]
        %v996 = vld [vmem:[#allocation3 + $0x140] sm:$0xff]
        %v997 = vld [vmem:[#allocation3 + $0x148] sm:$0xff]
        %v998 = vld [vmem:[#allocation3 + $0x150] sm:$0xff]
        %v999 = vld [vmem:[#allocation3 + $0x158] sm:$0xff]
        %v1000 = vld [vmem:[#allocation3 + $0x160] sm:$0xff]
        %v1001 = vld [vmem:[#allocation3 + $0x168] sm:$0xff]
        %v1002 = vld [vmem:[#allocation3 + $0x170] sm:$0xff]
        %v1003 = vld [vmem:[#allocation3 + $0x178] sm:$0xff]
        %v1004 = vld [vmem:[#allocation3 + $0x180] sm:$0xff]
        %v1005 = vld [vmem:[#allocation3 + $0x188] sm:$0xff]
        %v1006 = vld [vmem:[#allocation3 + $0x190] sm:$0xff]
        %v1007 = vld [vmem:[#allocation3 + $0x198] sm:$0xff]
        %v1008 = vld [vmem:[#allocation3 + $0x1a0] sm:$0xff]
        %v1009 = vld [vmem:[#allocation3 + $0x1a8] sm:$0xff]
        %v1010 = vld [vmem:[#allocation3 + $0x1b0] sm:$0xff]
        %v1011 = vld [vmem:[#allocation3 + $0x1b8] sm:$0xff]
        %v1012 = vld [vmem:[#allocation3 + $0x1c0] sm:$0xff]
        %v1013 = vld [vmem:[#allocation3 + $0x1c8] sm:$0xff]
        %v1014 = vld [vmem:[#allocation3 + $0x1d0] sm:$0xff]
        %v1015 = vld [vmem:[#allocation3 + $0x1d8] sm:$0xff]
        %v1016 = vld [vmem:[#allocation3 + $0x1e0] sm:$0xff]
        %v1017 = vld [vmem:[#allocation3 + $0x1e8] sm:$0xff]
        %v1018 = vld [vmem:[#allocation3 + $0x1f0] sm:$0xff]
        %v1019 = vld [vmem:[#allocation3 + $0x1f8] sm:$0xff]
        %v1020 = vld [vmem:[#allocation3 + $0x200] sm:$0xff]
        %v1021 = vld [vmem:[#allocation3 + $0x208] sm:$0xff]
        %v1022 = vld [vmem:[#allocation3 + $0x210] sm:$0xff]
        %v1023 = vld [vmem:[#allocation3 + $0x218] sm:$0xff]
        %v1024 = vld [vmem:[#allocation3 + $0x220] sm:$0xff]
        %v1025 = vld [vmem:[#allocation3 + $0x228] sm:$0xff]
        %v1026 = vld [vmem:[#allocation3 + $0x230] sm:$0xff]
        %v1027 = vld [vmem:[#allocation3 + $0x238] sm:$0xff]
        %v1028 = vld [vmem:[#allocation3 + $0x240] sm:$0xff]
        %v1029 = vld [vmem:[#allocation3 + $0x248] sm:$0xff]
        %v1030 = vld [vmem:[#allocation3 + $0x250] sm:$0xff]
        %v1031 = vld [vmem:[#allocation3 + $0x258] sm:$0xff]
        %v1032 = vld [vmem:[#allocation3 + $0x260] sm:$0xff]
        %v1033 = vld [vmem:[#allocation3 + $0x268] sm:$0xff]
        %v1034 = vld [vmem:[#allocation3 + $0x270] sm:$0xff]
        %v1035 = vld [vmem:[#allocation3 + $0x278] sm:$0xff]
        %v1036 = vld [vmem:[#allocation3 + $0x280] sm:$0xff]
        %v1037 = vld [vmem:[#allocation3 + $0x288] sm:$0xff]
        %v1038 = vld [vmem:[#allocation3 + $0x290] sm:$0xff]
        %v1039 = vld [vmem:[#allocation3 + $0x298] sm:$0xff]
        %v1040 = vld [vmem:[#allocation3 + $0x2a0] sm:$0xff]
        %v1041 = vld [vmem:[#allocation3 + $0x2a8] sm:$0xff]
        %v1042 = vld [vmem:[#allocation3 + $0x2b0] sm:$0xff]
        %v1043 = vld [vmem:[#allocation3 + $0x2b8] sm:$0xff]
        %v1044 = vld [vmem:[#allocation3 + $0x2c0] sm:$0xff]
        %v1045 = vld [vmem:[#allocation3 + $0x2c8] sm:$0xff]
        %v1046 = vld [vmem:[#allocation3 + $0x2d0] sm:$0xff]
        %v1047 = vld [vmem:[#allocation3 + $0x2d8] sm:$0xff]
        %v1048 = vld [vmem:[#allocation3 + $0x2e0] sm:$0xff]
        %v1049 = vld [vmem:[#allocation3 + $0x2e8] sm:$0xff]
        %v1050 = vld [vmem:[#allocation3 + $0x2f0] sm:$0xff]
        %v1051 = vld [vmem:[#allocation3 + $0x2f8] sm:$0xff]
        %v1052 = vld [vmem:[#allocation3 + $0x300] sm:$0xff]
        %v1053 = vld [vmem:[#allocation3 + $0x308] sm:$0xff]
        %v1054 = vld [vmem:[#allocation3 + $0x310] sm:$0xff]
        %v1055 = vld [vmem:[#allocation3 + $0x318] sm:$0xff]
        %v1056 = vld [vmem:[#allocation3 + $0x320] sm:$0xff]
        %v1057 = vld [vmem:[#allocation3 + $0x328] sm:$0xff]
        %v1058 = vld [vmem:[#allocation3 + $0x330] sm:$0xff]
        %v1059 = vld [vmem:[#allocation3 + $0x338] sm:$0xff]
        %v1060 = vld [vmem:[#allocation3 + $0x340] sm:$0xff]
        %v1061 = vld [vmem:[#allocation3 + $0x348] sm:$0xff]
        %v1062 = vld [vmem:[#allocation3 + $0x350] sm:$0xff]
        %v1063 = vld [vmem:[#allocation3 + $0x358] sm:$0xff]
        %v1064 = vld [vmem:[#allocation3 + $0x360] sm:$0xff]
        %v1065 = vld [vmem:[#allocation3 + $0x368] sm:$0xff]
        %v1066 = vld [vmem:[#allocation3 + $0x370] sm:$0xff]
        %v1067 = vld [vmem:[#allocation3 + $0x378] sm:$0xff]
        %v1068 = vld [vmem:[#allocation3 + $0x380] sm:$0xff]
        %v1069 = vld [vmem:[#allocation3 + $0x388] sm:$0xff]
        %v1070 = vld [vmem:[#allocation3 + $0x390] sm:$0xff]
        %v1071 = vld [vmem:[#allocation3 + $0x398] sm:$0xff]
        %v1072 = vld [vmem:[#allocation3 + $0x3a0] sm:$0xff]
        %v1073 = vld [vmem:[#allocation3 + $0x3a8] sm:$0xff]
        %v1074 = vld [vmem:[#allocation3 + $0x3b0] sm:$0xff]
        %v1075 = vld [vmem:[#allocation3 + $0x3b8] sm:$0xff]
        %v1076 = vld [vmem:[#allocation3 + $0x3c0] sm:$0xff]
        %v1077 = vld [vmem:[#allocation3 + $0x3c8] sm:$0xff]
        %v1078 = vld [vmem:[#allocation3 + $0x3d0] sm:$0xff]
        %v1079 = vld [vmem:[#allocation3 + $0x3d8] sm:$0xff]
        %v1080 = vld [vmem:[#allocation3 + $0x3e0] sm:$0xff]
        %v1081 = vld [vmem:[#allocation3 + $0x3e8] sm:$0xff]
        %v1082 = vld [vmem:[#allocation3 + $0x3f0] sm:$0xff]
        %v1083 = vld [vmem:[#allocation3 + $0x3f8] sm:$0xff]
        %v1084 = vld [vmem:[#allocation3 + $0x400] sm:$0xff]
        %v1085 = vld [vmem:[#allocation3 + $0x408] sm:$0xff]
        %v1086 = vld [vmem:[#allocation3 + $0x410] sm:$0xff]
        %v1087 = vld [vmem:[#allocation3 + $0x418] sm:$0xff]
        %v1088 = vld [vmem:[#allocation3 + $0x420] sm:$0xff]
        %v1089 = vld [vmem:[#allocation3 + $0x428] sm:$0xff]
        %v1090 = vld [vmem:[#allocation3 + $0x430] sm:$0xff]
        %v1091 = vld [vmem:[#allocation3 + $0x438] sm:$0xff]
        %v1092 = vld [vmem:[#allocation3 + $0x440] sm:$0xff]
        %v1093 = vld [vmem:[#allocation3 + $0x448] sm:$0xff]
        %v1094 = vld [vmem:[#allocation3 + $0x450] sm:$0xff]
        %v1095 = vld [vmem:[#allocation3 + $0x458] sm:$0xff]
        %v1096 = vld [vmem:[#allocation3 + $0x460] sm:$0xff]
        %v1097 = vld [vmem:[#allocation3 + $0x468] sm:$0xff]
        %v1098 = vld [vmem:[#allocation3 + $0x470] sm:$0xff]
        %v1099 = vld [vmem:[#allocation3 + $0x478] sm:$0xff]
        %v1100 = vld [vmem:[#allocation3 + $0x480] sm:$0xff]
        %v1101 = vld [vmem:[#allocation3 + $0x488] sm:$0xff]
        %v1102 = vld [vmem:[#allocation3 + $0x490] sm:$0xff]
        %v1103 = vld [vmem:[#allocation3 + $0x498] sm:$0xff]
        %v1104 = vld [vmem:[#allocation3 + $0x4a0] sm:$0xff]
        %v1105 = vld [vmem:[#allocation3 + $0x4a8] sm:$0xff]
        %v1106 = vld [vmem:[#allocation3 + $0x4b0] sm:$0xff]
        %v1107 = vld [vmem:[#allocation3 + $0x4b8] sm:$0xff]
        %v1108 = vld [vmem:[#allocation3 + $0x4c0] sm:$0xff]
        %v1109 = vld [vmem:[#allocation3 + $0x4c8] sm:$0xff]
        %v1110 = vld [vmem:[#allocation3 + $0x4d0] sm:$0xff]
        %v1111 = vld [vmem:[#allocation3 + $0x4d8] sm:$0xff]
        %v1112 = vld [vmem:[#allocation3 + $0x4e0] sm:$0xff]
        %v1113 = vld [vmem:[#allocation3 + $0x4e8] sm:$0xff]
        %v1114 = vld [vmem:[#allocation3 + $0x4f0] sm:$0xff]
        %v1115 = vld [vmem:[#allocation3 + $0x4f8] sm:$0xff]
        %v1116 = vld [vmem:[#allocation3 + $0x500] sm:$0xff]
        %v1117 = vld [vmem:[#allocation3 + $0x508] sm:$0xff]
        %v1118 = vld [vmem:[#allocation3 + $0x510] sm:$0xff]
        %v1119 = vld [vmem:[#allocation3 + $0x518] sm:$0xff]
        %v1120 = vld [vmem:[#allocation3 + $0x520] sm:$0xff]
        %v1121 = vld [vmem:[#allocation3 + $0x528] sm:$0xff]
        %v1122 = vld [vmem:[#allocation3 + $0x530] sm:$0xff]
        %v1123 = vld [vmem:[#allocation3 + $0x538] sm:$0xff]
        %v1124 = vld [vmem:[#allocation3 + $0x540] sm:$0xff]
        %v1125 = vld [vmem:[#allocation3 + $0x548] sm:$0xff]
        %v1126 = vld [vmem:[#allocation3 + $0x550] sm:$0xff]
        %v1127 = vld [vmem:[#allocation3 + $0x558] sm:$0xff]
        %v1128 = vld [vmem:[#allocation3 + $0x560] sm:$0xff]
        %v1129 = vld [vmem:[#allocation3 + $0x568] sm:$0xff]
        %v1130 = vld [vmem:[#allocation3 + $0x570] sm:$0xff]
        %v1131 = vld [vmem:[#allocation3 + $0x578] sm:$0xff]
        %v1132 = vld [vmem:[#allocation3 + $0x580] sm:$0xff]
        %v1133 = vld [vmem:[#allocation3 + $0x588] sm:$0xff]
        %v1134 = vld [vmem:[#allocation3 + $0x590] sm:$0xff]
        %v1135 = vld [vmem:[#allocation3 + $0x598] sm:$0xff]
        %v1136 = vld [vmem:[#allocation3 + $0x5a0] sm:$0xff]
        %v1137 = vld [vmem:[#allocation3 + $0x5a8] sm:$0xff]
        %v1138 = vld [vmem:[#allocation3 + $0x5b0] sm:$0xff]
        %v1139 = vld [vmem:[#allocation3 + $0x5b8] sm:$0xff]
        %v1140 = vld [vmem:[#allocation3 + $0x5c0] sm:$0xff]
        %v1141 = vld [vmem:[#allocation3 + $0x5c8] sm:$0xff]
        %v1142 = vld [vmem:[#allocation3 + $0x5d0] sm:$0xff]
        %v1143 = vld [vmem:[#allocation3 + $0x5d8] sm:$0xff]
        %v1144 = vld [vmem:[#allocation3 + $0x5e0] sm:$0xff]
        %v1145 = vld [vmem:[#allocation3 + $0x5e8] sm:$0xff]
        %v1146 = vld [vmem:[#allocation3 + $0x5f0] sm:$0xff]
        %v1147 = vld [vmem:[#allocation3 + $0x5f8] sm:$0xff]
        %v1148 = vld [vmem:[#allocation3 + $0x600] sm:$0xff]
        %v1149 = vld [vmem:[#allocation3 + $0x608] sm:$0xff]
        %v1150 = vld [vmem:[#allocation3 + $0x610] sm:$0xff]
        %v1151 = vld [vmem:[#allocation3 + $0x618] sm:$0xff]
        %v1152 = vld [vmem:[#allocation3 + $0x620] sm:$0xff]
        %v1153 = vld [vmem:[#allocation3 + $0x628] sm:$0xff]
        %v1154 = vld [vmem:[#allocation3 + $0x630] sm:$0xff]
        %v1155 = vld [vmem:[#allocation3 + $0x638] sm:$0xff]
        %v1156 = vld [vmem:[#allocation3 + $0x640] sm:$0xff]
        %v1157 = vld [vmem:[#allocation3 + $0x648] sm:$0xff]
        %v1158 = vld [vmem:[#allocation3 + $0x650] sm:$0xff]
        %v1159 = vld [vmem:[#allocation3 + $0x658] sm:$0xff]
        %v1160 = vld [vmem:[#allocation3 + $0x660] sm:$0xff]
        %v1161 = vld [vmem:[#allocation3 + $0x668] sm:$0xff]
        %v1162 = vld [vmem:[#allocation3 + $0x670] sm:$0xff]
        %v1163 = vld [vmem:[#allocation3 + $0x678] sm:$0xff]
        %v1164 = vld [vmem:[#allocation3 + $0x680] sm:$0xff]
        %v1165 = vld [vmem:[#allocation3 + $0x688] sm:$0xff]
        %v1166 = vld [vmem:[#allocation3 + $0x690] sm:$0xff]
        %v1167 = vld [vmem:[#allocation3 + $0x698] sm:$0xff]
        %v1168 = vld [vmem:[#allocation3 + $0x6a0] sm:$0xff]
        %v1169 = vld [vmem:[#allocation3 + $0x6a8] sm:$0xff]
        %v1170 = vld [vmem:[#allocation3 + $0x6b0] sm:$0xff]
        %v1171 = vld [vmem:[#allocation3 + $0x6b8] sm:$0xff]
        %v1172 = vld [vmem:[#allocation3 + $0x6c0] sm:$0xff]
        %v1173 = vld [vmem:[#allocation3 + $0x6c8] sm:$0xff]
        %v1174 = vld [vmem:[#allocation3 + $0x6d0] sm:$0xff]
        %v1175 = vld [vmem:[#allocation3 + $0x6d8] sm:$0xff]
        %v1176 = vld [vmem:[#allocation3 + $0x6e0] sm:$0xff]
        %v1177 = vld [vmem:[#allocation3 + $0x6e8] sm:$0xff]
        %v1178 = vld [vmem:[#allocation3 + $0x6f0] sm:$0xff]
        %v1179 = vld [vmem:[#allocation3 + $0x6f8] sm:$0xff]
        %v1180 = vld [vmem:[#allocation3 + $0x700] sm:$0xff]
        %v1181 = vld [vmem:[#allocation3 + $0x708] sm:$0xff]
        %v1182 = vld [vmem:[#allocation3 + $0x710] sm:$0xff]
        %v1183 = vld [vmem:[#allocation3 + $0x718] sm:$0xff]
        %v1184 = vld [vmem:[#allocation3 + $0x720] sm:$0xff]
        %v1185 = vld [vmem:[#allocation3 + $0x728] sm:$0xff]
        %v1186 = vld [vmem:[#allocation3 + $0x730] sm:$0xff]
        %v1187 = vld [vmem:[#allocation3 + $0x738] sm:$0xff]
        %v1188 = vld [vmem:[#allocation3 + $0x740] sm:$0xff]
        %v1189 = vld [vmem:[#allocation3 + $0x748] sm:$0xff]
        %v1190 = vld [vmem:[#allocation3 + $0x750] sm:$0xff]
        %v1191 = vld [vmem:[#allocation3 + $0x758] sm:$0xff]
        %v1192 = vld [vmem:[#allocation3 + $0x760] sm:$0xff]
        %v1193 = vld [vmem:[#allocation3 + $0x768] sm:$0xff]
        %v1194 = vld [vmem:[#allocation3 + $0x770] sm:$0xff]
        %v1195 = vld [vmem:[#allocation3 + $0x778] sm:$0xff]
        %v1196 = vld [vmem:[#allocation3 + $0x780] sm:$0xff]
        %v1197 = vld [vmem:[#allocation3 + $0x788] sm:$0xff]
        %v1198 = vld [vmem:[#allocation3 + $0x790] sm:$0xff]
        %v1199 = vld [vmem:[#allocation3 + $0x798] sm:$0xff]
        %v1200 = vld [vmem:[#allocation3 + $0x7a0] sm:$0xff]
        %v1201 = vld [vmem:[#allocation3 + $0x7a8] sm:$0xff]
        %v1202 = vld [vmem:[#allocation3 + $0x7b0] sm:$0xff]
        %v1203 = vld [vmem:[#allocation3 + $0x7b8] sm:$0xff]
        %v1204 = vld [vmem:[#allocation3 + $0x7c0] sm:$0xff]
        %v1205 = vld [vmem:[#allocation3 + $0x7c8] sm:$0xff]
        %v1206 = vld [vmem:[#allocation3 + $0x7d0] sm:$0xff]
        %v1207 = vld [vmem:[#allocation3 + $0x7d8] sm:$0xff]
        %v1208 = vld [vmem:[#allocation3 + $0x7e0] sm:$0xff]
        %v1209 = vld [vmem:[#allocation3 + $0x7e8] sm:$0xff]
        %v1210 = vld [vmem:[#allocation3 + $0x7f0] sm:$0xff]
        %v1211 = vld [vmem:[#allocation3 + $0x7f8] sm:$0xff]
        %v1212 = vld [vmem:[#allocation3 + $0x800] sm:$0xff]
        %v1213 = vld [vmem:[#allocation3 + $0x808] sm:$0xff]
        %v1214 = vld [vmem:[#allocation3 + $0x810] sm:$0xff]
        %v1215 = vld [vmem:[#allocation3 + $0x818] sm:$0xff]
        %v1216 = vld [vmem:[#allocation3 + $0x820] sm:$0xff]
        %v1217 = vld [vmem:[#allocation3 + $0x828] sm:$0xff]
        %v1218 = vld [vmem:[#allocation3 + $0x830] sm:$0xff]
        %v1219 = vld [vmem:[#allocation3 + $0x838] sm:$0xff]
        %v1220 = vld [vmem:[#allocation3 + $0x840] sm:$0xff]
        %v1221 = vld [vmem:[#allocation3 + $0x848] sm:$0xff]
        %v1222 = vld [vmem:[#allocation3 + $0x850] sm:$0xff]
        %v1223 = vld [vmem:[#allocation3 + $0x858] sm:$0xff]
        %v1224 = vld [vmem:[#allocation3 + $0x860] sm:$0xff]
        %v1225 = vld [vmem:[#allocation3 + $0x868] sm:$0xff]
        %v1226 = vld [vmem:[#allocation3 + $0x870] sm:$0xff]
        %v1227 = vld [vmem:[#allocation3 + $0x878] sm:$0xff]
        %v1228 = vld [vmem:[#allocation3 + $0x880] sm:$0xff]
        %v1229 = vld [vmem:[#allocation3 + $0x888] sm:$0xff]
        %v1230 = vld [vmem:[#allocation3 + $0x890] sm:$0xff]
        %v1231 = vld [vmem:[#allocation3 + $0x898] sm:$0xff]
        %v1232 = vld [vmem:[#allocation3 + $0x8a0] sm:$0xff]
        %v1233 = vld [vmem:[#allocation3 + $0x8a8] sm:$0xff]
        %v1234 = vld [vmem:[#allocation3 + $0x8b0] sm:$0xff]
        %v1235 = vld [vmem:[#allocation3 + $0x8b8] sm:$0xff]
        %v1236 = vld [vmem:[#allocation3 + $0x8c0] sm:$0xff]
        %v1237 = vld [vmem:[#allocation3 + $0x8c8] sm:$0xff]
        %v1238 = vld [vmem:[#allocation3 + $0x8d0] sm:$0xff]
        %v1239 = vld [vmem:[#allocation3 + $0x8d8] sm:$0xff]
        %v1240 = vld [vmem:[#allocation3 + $0x8e0] sm:$0xff]
        %v1241 = vld [vmem:[#allocation3 + $0x8e8] sm:$0xff]
        %v1242 = vld [vmem:[#allocation3 + $0x8f0] sm:$0xff]
        %v1243 = vld [vmem:[#allocation3 + $0x8f8] sm:$0xff]
        %v1244 = vld [vmem:[#allocation7] sm:$0xff]
        %v1245 = vld [vmem:[#allocation7 + $0x8] sm:$0xff]
        %v1246 = vld [vmem:[#allocation7 + $0x10] sm:$0xff]
        %v1247 = vld [vmem:[#allocation7 + $0x18] sm:$0xff]
        %v1248 = vld [vmem:[#allocation7 + $0x20] sm:$0xff]
        %v1249 = vld [vmem:[#allocation7 + $0x28] sm:$0xff]
        %v1250 = vld [vmem:[#allocation7 + $0x30] sm:$0xff]
        %v1251 = vld [vmem:[#allocation7 + $0x38] sm:$0xff]
        %v1252 = vld [vmem:[#allocation7 + $0x40] sm:$0xff]
        %v1253 = vld [vmem:[#allocation7 + $0x48] sm:$0xff]
        %v1254 = vld [vmem:[#allocation7 + $0x50] sm:$0xff]
        %v1255 = vld [vmem:[#allocation7 + $0x58] sm:$0xff]
        %v1256 = vld [vmem:[#allocation7 + $0x60] sm:$0xff]
        %v1257 = vld [vmem:[#allocation7 + $0x68] sm:$0xff]
        %v1258 = vld [vmem:[#allocation7 + $0x70] sm:$0xff]
        %v1259 = vld [vmem:[#allocation7 + $0x78] sm:$0xff]
        %v1260 = vld [vmem:[#allocation7 + $0x80] sm:$0xff]
        %v1261 = vld [vmem:[#allocation7 + $0x88] sm:$0xff]
        %v1262 = vld [vmem:[#allocation7 + $0x90] sm:$0xff]
        %v1263 = vld [vmem:[#allocation7 + $0x98] sm:$0xff]
        %v1264 = vld [vmem:[#allocation7 + $0xa0] sm:$0xff]
        %v1265 = vld [vmem:[#allocation7 + $0xa8] sm:$0xff]
        %v1266 = vld [vmem:[#allocation7 + $0xb0] sm:$0xff]
        %v1267 = vld [vmem:[#allocation7 + $0xb8] sm:$0xff]
        %v1268 = vld [vmem:[#allocation7 + $0xc0] sm:$0xff]
        %v1269 = vld [vmem:[#allocation7 + $0xc8] sm:$0xff]
        %v1270 = vld [vmem:[#allocation7 + $0xd0] sm:$0xff]
        %v1271 = vld [vmem:[#allocation7 + $0xd8] sm:$0xff]
        %v1272 = vld [vmem:[#allocation7 + $0xe0] sm:$0xff]
        %v1273 = vld [vmem:[#allocation7 + $0xe8] sm:$0xff]
        %v1274 = vld [vmem:[#allocation7 + $0xf0] sm:$0xff]
        %v1275 = vld [vmem:[#allocation7 + $0xf8] sm:$0xff]
        %v1276 = vld [vmem:[#allocation7 + $0x100] sm:$0xff]
        %v1277 = vld [vmem:[#allocation7 + $0x108] sm:$0xff]
        %v1278 = vld [vmem:[#allocation7 + $0x110] sm:$0xff]
        %v1279 = vld [vmem:[#allocation7 + $0x118] sm:$0xff]
        %v1280 = vld [vmem:[#allocation7 + $0x120] sm:$0xff]
        %v1281 = vld [vmem:[#allocation7 + $0x128] sm:$0xff]
        %v1282 = vld [vmem:[#allocation7 + $0x130] sm:$0xff]
        %v1283 = vld [vmem:[#allocation7 + $0x138] sm:$0xff]
        %v1284 = vld [vmem:[#allocation7 + $0x140] sm:$0xff]
        %v1285 = vld [vmem:[#allocation7 + $0x148] sm:$0xff]
        %v1286 = vld [vmem:[#allocation7 + $0x150] sm:$0xff]
        %v1287 = vld [vmem:[#allocation7 + $0x158] sm:$0xff]
        %v1288 = vld [vmem:[#allocation7 + $0x160] sm:$0xff]
        %v1289 = vld [vmem:[#allocation7 + $0x168] sm:$0xff]
        %v1290 = vld [vmem:[#allocation7 + $0x170] sm:$0xff]
        %v1291 = vld [vmem:[#allocation7 + $0x178] sm:$0xff]
        %v1292 = vld [vmem:[#allocation7 + $0x180] sm:$0xff]
        %v1293 = vld [vmem:[#allocation7 + $0x188] sm:$0xff]
        %v1294 = vld [vmem:[#allocation7 + $0x190] sm:$0xff]
        %v1295 = vld [vmem:[#allocation7 + $0x198] sm:$0xff]
        %v1296 = vld [vmem:[#allocation7 + $0x1a0] sm:$0xff]
        %v1297 = vld [vmem:[#allocation7 + $0x1a8] sm:$0xff]
        %v1298 = vld [vmem:[#allocation7 + $0x1b0] sm:$0xff]
        %v1299 = vld [vmem:[#allocation7 + $0x1b8] sm:$0xff]
        %v1300 = vld [vmem:[#allocation7 + $0x1c0] sm:$0xff]
        %v1301 = vld [vmem:[#allocation7 + $0x1c8] sm:$0xff]
        %v1302 = vld [vmem:[#allocation7 + $0x1d0] sm:$0xff]
        %v1303 = vld [vmem:[#allocation7 + $0x1d8] sm:$0xff]
        %v1304 = vld [vmem:[#allocation7 + $0x1e0] sm:$0xff]
        %v1305 = vld [vmem:[#allocation7 + $0x1e8] sm:$0xff]
        %v1306 = vld [vmem:[#allocation7 + $0x1f0] sm:$0xff]
        %v1307 = vld [vmem:[#allocation7 + $0x1f8] sm:$0xff]
        %v1308 = vld [vmem:[#allocation7 + $0x200] sm:$0xff]
        %v1309 = vld [vmem:[#allocation7 + $0x208] sm:$0xff]
        %v1310 = vld [vmem:[#allocation7 + $0x210] sm:$0xff]
        %v1311 = vld [vmem:[#allocation7 + $0x218] sm:$0xff]
        %v1312 = vld [vmem:[#allocation7 + $0x220] sm:$0xff]
        %v1313 = vld [vmem:[#allocation7 + $0x228] sm:$0xff]
        %v1314 = vld [vmem:[#allocation7 + $0x230] sm:$0xff]
        %v1315 = vld [vmem:[#allocation7 + $0x238] sm:$0xff]
        %v1316 = vld [vmem:[#allocation7 + $0x240] sm:$0xff]
        %v1317 = vld [vmem:[#allocation7 + $0x248] sm:$0xff]
        %v1318 = vld [vmem:[#allocation7 + $0x250] sm:$0xff]
        %v1319 = vld [vmem:[#allocation7 + $0x258] sm:$0xff]
        %v1320 = vld [vmem:[#allocation7 + $0x260] sm:$0xff]
        %v1321 = vld [vmem:[#allocation7 + $0x268] sm:$0xff]
        %v1322 = vld [vmem:[#allocation7 + $0x270] sm:$0xff]
        %v1323 = vld [vmem:[#allocation7 + $0x278] sm:$0xff]
        %v1324 = vld [vmem:[#allocation7 + $0x280] sm:$0xff]
        %v1325 = vld [vmem:[#allocation7 + $0x288] sm:$0xff]
        %v1326 = vld [vmem:[#allocation7 + $0x290] sm:$0xff]
        %v1327 = vld [vmem:[#allocation7 + $0x298] sm:$0xff]
        %v1328 = vld [vmem:[#allocation7 + $0x2a0] sm:$0xff]
        %v1329 = vld [vmem:[#allocation7 + $0x2a8] sm:$0xff]
        %v1330 = vld [vmem:[#allocation7 + $0x2b0] sm:$0xff]
        %v1331 = vld [vmem:[#allocation7 + $0x2b8] sm:$0xff]
        %v1332 = vld [vmem:[#allocation7 + $0x2c0] sm:$0xff]
        %v1333 = vld [vmem:[#allocation7 + $0x2c8] sm:$0xff]
        %v1334 = vld [vmem:[#allocation7 + $0x2d0] sm:$0xff]
        %v1335 = vld [vmem:[#allocation7 + $0x2d8] sm:$0xff]
        %v1336 = vld [vmem:[#allocation7 + $0x2e0] sm:$0xff]
        %v1337 = vld [vmem:[#allocation7 + $0x2e8] sm:$0xff]
        %v1338 = vld [vmem:[#allocation7 + $0x2f0] sm:$0xff]
        %v1339 = vld [vmem:[#allocation7 + $0x2f8] sm:$0xff]
        %v1340 = vld [vmem:[#allocation7 + $0x300] sm:$0xff]
        %v1341 = vld [vmem:[#allocation7 + $0x308] sm:$0xff]
        %v1342 = vld [vmem:[#allocation7 + $0x310] sm:$0xff]
        %v1343 = vld [vmem:[#allocation7 + $0x318] sm:$0xff]
        %v1344 = vld [vmem:[#allocation7 + $0x320] sm:$0xff]
        %v1345 = vld [vmem:[#allocation7 + $0x328] sm:$0xff]
        %v1346 = vld [vmem:[#allocation7 + $0x330] sm:$0xff]
        %v1347 = vld [vmem:[#allocation7 + $0x338] sm:$0xff]
        %v1348 = vld [vmem:[#allocation7 + $0x340] sm:$0xff]
        %v1349 = vld [vmem:[#allocation7 + $0x348] sm:$0xff]
        %v1350 = vld [vmem:[#allocation7 + $0x350] sm:$0xff]
        %v1351 = vld [vmem:[#allocation7 + $0x358] sm:$0xff]
        %v1352 = vld [vmem:[#allocation7 + $0x360] sm:$0xff]
        %v1353 = vld [vmem:[#allocation7 + $0x368] sm:$0xff]
        %v1354 = vld [vmem:[#allocation7 + $0x370] sm:$0xff]
        %v1355 = vld [vmem:[#allocation7 + $0x378] sm:$0xff]
        %v1356 = vld [vmem:[#allocation7 + $0x380] sm:$0xff]
        %v1357 = vld [vmem:[#allocation7 + $0x388] sm:$0xff]
        %v1358 = vld [vmem:[#allocation7 + $0x390] sm:$0xff]
        %v1359 = vld [vmem:[#allocation7 + $0x398] sm:$0xff]
        %v1360 = vld [vmem:[#allocation7 + $0x3a0] sm:$0xff]
        %v1361 = vld [vmem:[#allocation7 + $0x3a8] sm:$0xff]
        %v1362 = vld [vmem:[#allocation7 + $0x3b0] sm:$0xff]
        %v1363 = vld [vmem:[#allocation7 + $0x3b8] sm:$0xff]
        %v1364 = vld [vmem:[#allocation7 + $0x3c0] sm:$0xff]
        %v1365 = vld [vmem:[#allocation7 + $0x3c8] sm:$0xff]
        %v1366 = vld [vmem:[#allocation7 + $0x3d0] sm:$0xff]
        %v1367 = vld [vmem:[#allocation7 + $0x3d8] sm:$0xff]
        %v1368 = vld [vmem:[#allocation7 + $0x3e0] sm:$0xff]
        %v1369 = vld [vmem:[#allocation7 + $0x3e8] sm:$0xff]
        %v1370 = vld [vmem:[#allocation7 + $0x3f0] sm:$0xff]
        %v1371 = vld [vmem:[#allocation7 + $0x3f8] sm:$0xff]
        %v1372 = vld [vmem:[#allocation7 + $0x400] sm:$0xff]
        %v1373 = vld [vmem:[#allocation7 + $0x408] sm:$0xff]
        %v1374 = vld [vmem:[#allocation7 + $0x410] sm:$0xff]
        %v1375 = vld [vmem:[#allocation7 + $0x418] sm:$0xff]
        %v1376 = vld [vmem:[#allocation7 + $0x420] sm:$0xff]
        %v1377 = vld [vmem:[#allocation7 + $0x428] sm:$0xff]
        %v1378 = vld [vmem:[#allocation7 + $0x430] sm:$0xff]
        %v1379 = vld [vmem:[#allocation7 + $0x438] sm:$0xff]
        %v1380 = vld [vmem:[#allocation7 + $0x440] sm:$0xff]
        %v1381 = vld [vmem:[#allocation7 + $0x448] sm:$0xff]
        %v1382 = vld [vmem:[#allocation7 + $0x450] sm:$0xff]
        %v1383 = vld [vmem:[#allocation7 + $0x458] sm:$0xff]
        %v1384 = vld [vmem:[#allocation7 + $0x460] sm:$0xff]
        %v1385 = vld [vmem:[#allocation7 + $0x468] sm:$0xff]
        %v1386 = vld [vmem:[#allocation7 + $0x470] sm:$0xff]
        %v1387 = vld [vmem:[#allocation7 + $0x478] sm:$0xff]
        %1388 = vmatprep.subr.mxu0 0.0
        %1389 = vmatpush1.msra.mxu0 %v1244
        %1390 = vmatprep.subr.mxu0 0.0
        %1391 = vmatpush1.msra.mxu0 %v1245
        %1392 = vmatprep.subr.mxu0 0.0
        %1393 = vmatpush1.msra.mxu0 %v1246
        %1394 = vmatprep.subr.mxu0 0.0
        %1395 = vmatpush1.msra.mxu0 %v1247
        %1396 = vmatprep.subr.mxu0 0.0
        %1397 = vmatpush1.msra.mxu0 %v1248
        %1398 = vmatprep.subr.mxu0 0.0
        %1399 = vmatpush1.msra.mxu0 %v1249
        %1400 = vmatprep.subr.mxu0 0.0
        %1401 = vmatpush1.msra.mxu0 %v1250
        %1402 = vmatprep.subr.mxu0 0.0
        %1403 = vmatpush1.msra.mxu0 %v1251
        %1404 = vmatprep.subr.mxu0 0.0
        %1405 = vmatpush1.msra.mxu0 %v1252
        %1406 = vmatprep.subr.mxu0 0.0
        %1407 = vmatpush1.msra.mxu0 %v1253
        %1408 = vmatprep.subr.mxu0 0.0
        %1409 = vmatpush1.msra.mxu0 %v1254
        %1410 = vmatprep.subr.mxu0 0.0
        %1411 = vmatpush1.msra.mxu0 %v1255
        %1412 = vmatprep.subr.mxu0 0.0
        %1413 = vmatpush1.msra.mxu0 %v1256
        %1414 = vmatprep.subr.mxu0 0.0
        %1415 = vmatpush1.msra.mxu0 %v1257
        %1416 = vmatprep.subr.mxu0 0.0
        %1417 = vmatpush1.msra.mxu0 %v1258
        %1418 = vmatprep.subr.mxu0 0.0
        %1419 = vmatpush1.msra.mxu0 %v1259
        %1420 = vmatprep.subr.mxu0 0.0
        %1421 = vmatpush1.msra.mxu0 %v1260
        %1422 = vmatprep.subr.mxu0 0.0
        %1423 = vmatpush1.msra.mxu0 %v1261
        %1424 = vmatprep.subr.mxu0 0.0
        %1425 = vmatpush1.msra.mxu0 %v1262
        %1426 = vmatprep.subr.mxu0 0.0
        %1427 = vmatpush1.msra.mxu0 %v1263
        %1428 = vmatprep.subr.mxu0 0.0
        %1429 = vmatpush1.msra.mxu0 %v1264
        %1430 = vmatprep.subr.mxu0 0.0
        %1431 = vmatpush1.msra.mxu0 %v1265
        %1432 = vmatprep.subr.mxu0 0.0
        %1433 = vmatpush1.msra.mxu0 %v1266
        %1434 = vmatprep.subr.mxu0 0.0
        %1435 = vmatpush1.msra.mxu0 %v1267
        %1436 = vmatprep.subr.mxu0 0.0
        %1437 = vmatpush1.msra.mxu0 %v1268
        %1438 = vmatprep.subr.mxu0 0.0
        %1439 = vmatpush1.msra.mxu0 %v1269
        %1440 = vmatprep.subr.mxu0 0.0
        %1441 = vmatpush1.msra.mxu0 %v1270
        %1442 = vmatprep.subr.mxu0 0.0
        %1443 = vmatpush1.msra.mxu0 %v1271
        %1444 = vmatprep.subr.mxu0 0.0
        %1445 = vmatpush1.msra.mxu0 %v1272
        %1446 = vmatprep.subr.mxu0 0.0
        %1447 = vmatpush1.msra.mxu0 %v1273
        %1448 = vmatprep.subr.mxu0 0.0
        %1449 = vmatpush1.msra.mxu0 %v1274
        %1450 = vmatprep.subr.mxu0 0.0
        %1451 = vmatpush1.msra.mxu0 %v1275
        %1452 = vmatprep.mubr.f32.mxu0 %v957
        %1453 = vmatmul.mubr.f32.gmra.mrb[0].mxu0 %v956
        %v1454 = vpop.f32.mrb[0].mxu0
        %v1455 = vadd.f32 0.0, %v1454
        %v1456 = vpop.f32.mrb[0].mxu0
        %1457 = vmatprep.mubr.f32.mxu0 %v966
        %1458 = vmatmul.mubr.f32.gmra.mrb[0].mxu0 %v965
        %v1459 = vpop.f32.mrb[0].mxu0
        %v1460 = vadd.f32 0.0, %v1459
        %v1461 = vpop.f32.mrb[0].mxu0
        %1462 = vmatprep.mubr.f32.mxu0 %v975
        %1463 = vmatmul.mubr.f32.gmra.mrb[0].mxu0 %v974
        %v1464 = vpop.f32.mrb[0].mxu0
        %v1465 = vadd.f32 0.0, %v1464
        %v1466 = vpop.f32.mrb[0].mxu0
        %1467 = vmatprep.mubr.f32.mxu0 %v984
        %1468 = vmatmul.mubr.f32.gmra.mrb[0].mxu0 %v983
        %v1469 = vpop.f32.mrb[0].mxu0
        %v1470 = vadd.f32 0.0, %v1469
        %v1471 = vpop.f32.mrb[0].mxu0
        %1472 = vmatprep.mubr.f32.mxu0 %v993
        %1473 = vmatmul.mubr.f32.gmra.mrb[0].mxu0 %v992
        %v1474 = vpop.f32.mrb[0].mxu0
        %v1475 = vadd.f32 0.0, %v1474
        %v1476 = vpop.f32.mrb[0].mxu0
        %1477 = vmatprep.mubr.f32.mxu0 %v1002
        %1478 = vmatmul.mubr.f32.gmra.mrb[0].mxu0 %v1001
        %v1479 = vpop.f32.mrb[0].mxu0
        %v1480 = vadd.f32 0.0, %v1479
        %v1481 = vpop.f32.mrb[0].mxu0
        %1482 = vmatprep.mubr.f32.mxu0 %v1011
        %1483 = vmatmul.mubr.f32.gmra.mrb[0].mxu0 %v1010
        %v1484 = vpop.f32.mrb[0].mxu0
        %v1485 = vadd.f32 0.0, %v1484
        %v1486 = vpop.f32.mrb[0].mxu0
        %1487 = vmatprep.mubr.f32.mxu0 %v1020
        %1488 = vmatmul.mubr.f32.gmra.mrb[0].mxu0 %v1019
        %v1489 = vpop.f32.mrb[0].mxu0
        %v1490 = vadd.f32 0.0, %v1489
        %v1491 = vpop.f32.mrb[0].mxu0
        %1492 = vmatprep.mubr.f32.mxu0 %v1029
        %1493 = vmatmul.mubr.f32.gmra.mrb[0].mxu0 %v1028
        %v1494 = vpop.f32.mrb[0].mxu0
        %v1495 = vadd.f32 0.0, %v1494
        %v1496 = vpop.f32.mrb[0].mxu0
        %1497 = vmatprep.mubr.f32.mxu0 %v1038
        %1498 = vmatmul.mubr.f32.gmra.mrb[0].mxu0 %v1037
        %v1499 = vpop.f32.mrb[0].mxu0
        %v1500 = vadd.f32 0.0, %v1499
        %v1501 = vpop.f32.mrb[0].mxu0
        %1502 = vmatprep.mubr.f32.mxu0 %v1047
        %1503 = vmatmul.mubr.f32.gmra.mrb[0].mxu0 %v1046
        %v1504 = vpop.f32.mrb[0].mxu0
        %v1505 = vadd.f32 0.0, %v1504
        %v1506 = vpop.f32.mrb[0].mxu0
        %1507 = vmatprep.mubr.f32.mxu0 %v1056
        %1508 = vmatmul.mubr.f32.gmra.mrb[0].mxu0 %v1055
        %v1509 = vpop.f32.mrb[0].mxu0
        %v1510 = vadd.f32 0.0, %v1509
        %v1511 = vpop.f32.mrb[0].mxu0
        %1512 = vmatprep.mubr.f32.mxu0 %v1065
        %1513 = vmatmul.mubr.f32.gmra.mrb[0].mxu0 %v1064
        %v1514 = vpop.f32.mrb[0].mxu0
        %v1515 = vadd.f32 0.0, %v1514
        %v1516 = vpop.f32.mrb[0].mxu0
        %1517 = vmatprep.mubr.f32.mxu0 %v1074
        %1518 = vmatmul.mubr.f32.gmra.mrb[0].mxu0 %v1073
        %v1519 = vpop.f32.mrb[0].mxu0
        %v1520 = vadd.f32 0.0, %v1519
        %v1521 = vpop.f32.mrb[0].mxu0
        %1522 = vmatprep.mubr.f32.mxu0 %v1083
        %1523 = vmatmul.mubr.f32.gmra.mrb[0].mxu0 %v1082
        %v1524 = vpop.f32.mrb[0].mxu0
        %v1525 = vadd.f32 0.0, %v1524
        %v1526 = vpop.f32.mrb[0].mxu0
        %1527 = vmatprep.mubr.f32.mxu0 %v1092
        %1528 = vmatmul.mubr.f32.gmra.mrb[0].mxu0 %v1091
        %v1529 = vpop.f32.mrb[0].mxu0
        %v1530 = vadd.f32 0.0, %v1529
        %v1531 = vpop.f32.mrb[0].mxu0
        %1532 = vmatprep.mubr.f32.mxu0 %v1101
        %1533 = vmatmul.mubr.f32.gmra.mrb[0].mxu0 %v1100
        %v1534 = vpop.f32.mrb[0].mxu0
        %v1535 = vadd.f32 0.0, %v1534
        %v1536 = vpop.f32.mrb[0].mxu0
        %1537 = vmatprep.mubr.f32.mxu0 %v1110
        %1538 = vmatmul.mubr.f32.gmra.mrb[0].mxu0 %v1109
        %v1539 = vpop.f32.mrb[0].mxu0
        %v1540 = vadd.f32 0.0, %v1539
        %v1541 = vpop.f32.mrb[0].mxu0
        %1542 = vmatprep.mubr.f32.mxu0 %v1119
        %1543 = vmatmul.mubr.f32.gmra.mrb[0].mxu0 %v1118
        %v1544 = vpop.f32.mrb[0].mxu0
        %v1545 = vadd.f32 0.0, %v1544
        %v1546 = vpop.f32.mrb[0].mxu0
        %1547 = vmatprep.mubr.f32.mxu0 %v1128
        %1548 = vmatmul.mubr.f32.gmra.mrb[0].mxu0 %v1127
        %v1549 = vpop.f32.mrb[0].mxu0
        %v1550 = vadd.f32 0.0, %v1549
        %v1551 = vpop.f32.mrb[0].mxu0
        %1552 = vmatprep.mubr.f32.mxu0 %v1137
        %1553 = vmatmul.mubr.f32.gmra.mrb[0].mxu0 %v1136
        %v1554 = vpop.f32.mrb[0].mxu0
        %v1555 = vadd.f32 0.0, %v1554
        %v1556 = vpop.f32.mrb[0].mxu0
        %1557 = vmatprep.mubr.f32.mxu0 %v1146
        %1558 = vmatmul.mubr.f32.gmra.mrb[0].mxu0 %v1145
        %v1559 = vpop.f32.mrb[0].mxu0
        %v1560 = vadd.f32 0.0, %v1559
        %v1561 = vpop.f32.mrb[0].mxu0
        %1562 = vmatprep.mubr.f32.mxu0 %v1155
        %1563 = vmatmul.mubr.f32.gmra.mrb[0].mxu0 %v1154
        %v1564 = vpop.f32.mrb[0].mxu0
        %v1565 = vadd.f32 0.0, %v1564
        %v1566 = vpop.f32.mrb[0].mxu0
        %1567 = vmatprep.mubr.f32.mxu0 %v1164
        %1568 = vmatmul.mubr.f32.gmra.mrb[0].mxu0 %v1163
        %v1569 = vpop.f32.mrb[0].mxu0
        %v1570 = vadd.f32 0.0, %v1569
        %v1571 = vpop.f32.mrb[0].mxu0
        %1572 = vmatprep.mubr.f32.mxu0 %v1173
        %1573 = vmatmul.mubr.f32.gmra.mrb[0].mxu0 %v1172
        %v1574 = vpop.f32.mrb[0].mxu0
        %v1575 = vadd.f32 0.0, %v1574
        %v1576 = vpop.f32.mrb[0].mxu0
        %1577 = vmatprep.mubr.f32.mxu0 %v1182
        %1578 = vmatmul.mubr.f32.gmra.mrb[0].mxu0 %v1181
        %v1579 = vpop.f32.mrb[0].mxu0
        %v1580 = vadd.f32 0.0, %v1579
        %v1581 = vpop.f32.mrb[0].mxu0
        %1582 = vmatprep.mubr.f32.mxu0 %v1191
        %1583 = vmatmul.mubr.f32.gmra.mrb[0].mxu0 %v1190
        %v1584 = vpop.f32.mrb[0].mxu0
        %v1585 = vadd.f32 0.0, %v1584
        %v1586 = vpop.f32.mrb[0].mxu0
        %1587 = vmatprep.mubr.f32.mxu0 %v1200
        %1588 = vmatmul.mubr.f32.gmra.mrb[0].mxu0 %v1199
        %v1589 = vpop.f32.mrb[0].mxu0
        %v1590 = vadd.f32 0.0, %v1589
        %v1591 = vpop.f32.mrb[0].mxu0
        %1592 = vmatprep.mubr.f32.mxu0 %v1209
        %1593 = vmatmul.mubr.f32.gmra.mrb[0].mxu0 %v1208
        %v1594 = vpop.f32.mrb[0].mxu0
        %v1595 = vadd.f32 0.0, %v1594
        %v1596 = vpop.f32.mrb[0].mxu0
        %1597 = vmatprep.mubr.f32.mxu0 %v1218
        %1598 = vmatmul.mubr.f32.gmra.mrb[0].mxu0 %v1217
        %v1599 = vpop.f32.mrb[0].mxu0
        %v1600 = vadd.f32 0.0, %v1599
        %v1601 = vpop.f32.mrb[0].mxu0
        %1602 = vmatprep.mubr.f32.mxu0 %v1227
        %1603 = vmatmul.mubr.f32.gmra.mrb[0].mxu0 %v1226
        %v1604 = vpop.f32.mrb[0].mxu0
        %v1605 = vadd.f32 0.0, %v1604
        %v1606 = vpop.f32.mrb[0].mxu0
        %1607 = vmatprep.mubr.f32.mxu0 %v1236
        %1608 = vmatmul.mubr.f32.gmra.mrb[0].mxu0 %v1235
        %v1609 = vpop.f32.mrb[0].mxu0
        %v1610 = vadd.f32 0.0, %v1609
        %v1611 = vpop.f32.mrb[0].mxu0
        %1612 = vdwg.mxu0
        %1613 = vmatprep.subr.mxu0 0.0
        %1614 = vmatpush1.msra.mxu0 %v1276
        %1615 = vmatprep.subr.mxu0 0.0
        %1616 = vmatpush1.msra.mxu0 %v1277
        %1617 = vmatprep.subr.mxu0 0.0
        %1618 = vmatpush1.msra.mxu0 %v1278
        %1619 = vmatprep.subr.mxu0 0.0
        %1620 = vmatpush1.msra.mxu0 %v1279
        %1621 = vmatprep.subr.mxu0 0.0
        %1622 = vmatpush1.msra.mxu0 %v1280
        %1623 = vmatprep.subr.mxu0 0.0
        %1624 = vmatpush1.msra.mxu0 %v1281
        %1625 = vmatprep.subr.mxu0 0.0
        %1626 = vmatpush1.msra.mxu0 %v1282
        %1627 = vmatprep.subr.mxu0 0.0
        %1628 = vmatpush1.msra.mxu0 %v1283
        %1629 = vmatprep.subr.mxu0 0.0
        %1630 = vmatpush1.msra.mxu0 %v1284
        %1631 = vmatprep.subr.mxu0 0.0
        %1632 = vmatpush1.msra.mxu0 %v1285
        %1633 = vmatprep.subr.mxu0 0.0
        %1634 = vmatpush1.msra.mxu0 %v1286
        %1635 = vmatprep.subr.mxu0 0.0
        %1636 = vmatpush1.msra.mxu0 %v1287
        %1637 = vmatprep.subr.mxu0 0.0
        %1638 = vmatpush1.msra.mxu0 %v1288
        %1639 = vmatprep.subr.mxu0 0.0
        %1640 = vmatpush1.msra.mxu0 %v1289
        %1641 = vmatprep.subr.mxu0 0.0
        %1642 = vmatpush1.msra.mxu0 %v1290
        %1643 = vmatprep.subr.mxu0 0.0
        %1644 = vmatpush1.msra.mxu0 %v1291
        %1645 = vmatprep.subr.mxu0 0.0
        %1646 = vmatpush1.msra.mxu0 %v1292
        %1647 = vmatprep.subr.mxu0 0.0
        %1648 = vmatpush1.msra.mxu0 %v1293
        %1649 = vmatprep.subr.mxu0 0.0
        %1650 = vmatpush1.msra.mxu0 %v1294
        %1651 = vmatprep.subr.mxu0 0.0
        %1652 = vmatpush1.msra.mxu0 %v1295
        %1653 = vmatprep.subr.mxu0 0.0
        %1654 = vmatpush1.msra.mxu0 %v1296
        %1655 = vmatprep.subr.mxu0 0.0
        %1656 = vmatpush1.msra.mxu0 %v1297
        %1657 = vmatprep.subr.mxu0 0.0
        %1658 = vmatpush1.msra.mxu0 %v1298
        %1659 = vmatprep.subr.mxu0 0.0
        %1660 = vmatpush1.msra.mxu0 %v1299
        %1661 = vmatprep.subr.mxu0 0.0
        %1662 = vmatpush1.msra.mxu0 %v1300
        %1663 = vmatprep.subr.mxu0 0.0
        %1664 = vmatpush1.msra.mxu0 %v1301
        %1665 = vmatprep.subr.mxu0 0.0
        %1666 = vmatpush1.msra.mxu0 %v1302
        %1667 = vmatprep.subr.mxu0 0.0
        %1668 = vmatpush1.msra.mxu0 %v1303
        %1669 = vmatprep.subr.mxu0 0.0
        %1670 = vmatpush1.msra.mxu0 %v1304
        %1671 = vmatprep.subr.mxu0 0.0
        %1672 = vmatpush1.msra.mxu0 %v1305
        %1673 = vmatprep.subr.mxu0 0.0
        %1674 = vmatpush1.msra.mxu0 %v1306
        %1675 = vmatprep.subr.mxu0 0.0
        %1676 = vmatpush1.msra.mxu0 %v1307
        %1677 = vmatprep.mubr.f32.mxu0 %v959
        %1678 = vmatmul.mubr.f32.gmra.mrb[0].mxu0 %v958
        %v1679 = vpop.f32.mrb[0].mxu0
        %v1680 = vadd.f32 %v1455, %v1679
        %v1681 = vpop.f32.mrb[0].mxu0
        %1682 = vmatprep.mubr.f32.mxu0 %v968
        %1683 = vmatmul.mubr.f32.gmra.mrb[0].mxu0 %v967
        %v1684 = vpop.f32.mrb[0].mxu0
        %v1685 = vadd.f32 %v1460, %v1684
        %v1686 = vpop.f32.mrb[0].mxu0
        %1687 = vmatprep.mubr.f32.mxu0 %v977
        %1688 = vmatmul.mubr.f32.gmra.mrb[0].mxu0 %v976
        %v1689 = vpop.f32.mrb[0].mxu0
        %v1690 = vadd.f32 %v1465, %v1689
        %v1691 = vpop.f32.mrb[0].mxu0
        %1692 = vmatprep.mubr.f32.mxu0 %v986
        %1693 = vmatmul.mubr.f32.gmra.mrb[0].mxu0 %v985
        %v1694 = vpop.f32.mrb[0].mxu0
        %v1695 = vadd.f32 %v1470, %v1694
        %v1696 = vpop.f32.mrb[0].mxu0
        %1697 = vmatprep.mubr.f32.mxu0 %v995
        %1698 = vmatmul.mubr.f32.gmra.mrb[0].mxu0 %v994
        %v1699 = vpop.f32.mrb[0].mxu0
        %v1700 = vadd.f32 %v1475, %v1699
        %v1701 = vpop.f32.mrb[0].mxu0
        %1702 = vmatprep.mubr.f32.mxu0 %v1004
        %1703 = vmatmul.mubr.f32.gmra.mrb[0].mxu0 %v1003
        %v1704 = vpop.f32.mrb[0].mxu0
        %v1705 = vadd.f32 %v1480, %v1704
        %v1706 = vpop.f32.mrb[0].mxu0
        %1707 = vmatprep.mubr.f32.mxu0 %v1013
        %1708 = vmatmul.mubr.f32.gmra.mrb[0].mxu0 %v1012
        %v1709 = vpop.f32.mrb[0].mxu0
        %v1710 = vadd.f32 %v1485, %v1709
        %v1711 = vpop.f32.mrb[0].mxu0
        %1712 = vmatprep.mubr.f32.mxu0 %v1022
        %1713 = vmatmul.mubr.f32.gmra.mrb[0].mxu0 %v1021
        %v1714 = vpop.f32.mrb[0].mxu0
        %v1715 = vadd.f32 %v1490, %v1714
        %v1716 = vpop.f32.mrb[0].mxu0
        %1717 = vmatprep.mubr.f32.mxu0 %v1031
        %1718 = vmatmul.mubr.f32.gmra.mrb[0].mxu0 %v1030
        %v1719 = vpop.f32.mrb[0].mxu0
        %v1720 = vadd.f32 %v1495, %v1719
        %v1721 = vpop.f32.mrb[0].mxu0
        %1722 = vmatprep.mubr.f32.mxu0 %v1040
        %1723 = vmatmul.mubr.f32.gmra.mrb[0].mxu0 %v1039
        %v1724 = vpop.f32.mrb[0].mxu0
        %v1725 = vadd.f32 %v1500, %v1724
        %v1726 = vpop.f32.mrb[0].mxu0
        %1727 = vmatprep.mubr.f32.mxu0 %v1049
        %1728 = vmatmul.mubr.f32.gmra.mrb[0].mxu0 %v1048
        %v1729 = vpop.f32.mrb[0].mxu0
        %v1730 = vadd.f32 %v1505, %v1729
        %v1731 = vpop.f32.mrb[0].mxu0
        %1732 = vmatprep.mubr.f32.mxu0 %v1058
        %1733 = vmatmul.mubr.f32.gmra.mrb[0].mxu0 %v1057
        %v1734 = vpop.f32.mrb[0].mxu0
        %v1735 = vadd.f32 %v1510, %v1734
        %v1736 = vpop.f32.mrb[0].mxu0
        %1737 = vmatprep.mubr.f32.mxu0 %v1067
        %1738 = vmatmul.mubr.f32.gmra.mrb[0].mxu0 %v1066
        %v1739 = vpop.f32.mrb[0].mxu0
        %v1740 = vadd.f32 %v1515, %v1739
        %v1741 = vpop.f32.mrb[0].mxu0
        %1742 = vmatprep.mubr.f32.mxu0 %v1076
        %1743 = vmatmul.mubr.f32.gmra.mrb[0].mxu0 %v1075
        %v1744 = vpop.f32.mrb[0].mxu0
        %v1745 = vadd.f32 %v1520, %v1744
        %v1746 = vpop.f32.mrb[0].mxu0
        %1747 = vmatprep.mubr.f32.mxu0 %v1085
        %1748 = vmatmul.mubr.f32.gmra.mrb[0].mxu0 %v1084
        %v1749 = vpop.f32.mrb[0].mxu0
        %v1750 = vadd.f32 %v1525, %v1749
        %v1751 = vpop.f32.mrb[0].mxu0
        %1752 = vmatprep.mubr.f32.mxu0 %v1094
        %1753 = vmatmul.mubr.f32.gmra.mrb[0].mxu0 %v1093
        %v1754 = vpop.f32.mrb[0].mxu0
        %v1755 = vadd.f32 %v1530, %v1754
        %v1756 = vpop.f32.mrb[0].mxu0
        %1757 = vmatprep.mubr.f32.mxu0 %v1103
        %1758 = vmatmul.mubr.f32.gmra.mrb[0].mxu0 %v1102
        %v1759 = vpop.f32.mrb[0].mxu0
        %v1760 = vadd.f32 %v1535, %v1759
        %v1761 = vpop.f32.mrb[0].mxu0
        %1762 = vmatprep.mubr.f32.mxu0 %v1112
        %1763 = vmatmul.mubr.f32.gmra.mrb[0].mxu0 %v1111
        %v1764 = vpop.f32.mrb[0].mxu0
        %v1765 = vadd.f32 %v1540, %v1764
        %v1766 = vpop.f32.mrb[0].mxu0
        %1767 = vmatprep.mubr.f32.mxu0 %v1121
        %1768 = vmatmul.mubr.f32.gmra.mrb[0].mxu0 %v1120
        %v1769 = vpop.f32.mrb[0].mxu0
        %v1770 = vadd.f32 %v1545, %v1769
        %v1771 = vpop.f32.mrb[0].mxu0
        %1772 = vmatprep.mubr.f32.mxu0 %v1130
        %1773 = vmatmul.mubr.f32.gmra.mrb[0].mxu0 %v1129
        %v1774 = vpop.f32.mrb[0].mxu0
        %v1775 = vadd.f32 %v1550, %v1774
        %v1776 = vpop.f32.mrb[0].mxu0
        %1777 = vmatprep.mubr.f32.mxu0 %v1139
        %1778 = vmatmul.mubr.f32.gmra.mrb[0].mxu0 %v1138
        %v1779 = vpop.f32.mrb[0].mxu0
        %v1780 = vadd.f32 %v1555, %v1779
        %v1781 = vpop.f32.mrb[0].mxu0
        %1782 = vmatprep.mubr.f32.mxu0 %v1148
        %1783 = vmatmul.mubr.f32.gmra.mrb[0].mxu0 %v1147
        %v1784 = vpop.f32.mrb[0].mxu0
        %v1785 = vadd.f32 %v1560, %v1784
        %v1786 = vpop.f32.mrb[0].mxu0
        %1787 = vmatprep.mubr.f32.mxu0 %v1157
        %1788 = vmatmul.mubr.f32.gmra.mrb[0].mxu0 %v1156
        %v1789 = vpop.f32.mrb[0].mxu0
        %v1790 = vadd.f32 %v1565, %v1789
        %v1791 = vpop.f32.mrb[0].mxu0
        %1792 = vmatprep.mubr.f32.mxu0 %v1166
        %1793 = vmatmul.mubr.f32.gmra.mrb[0].mxu0 %v1165
        %v1794 = vpop.f32.mrb[0].mxu0
        %v1795 = vadd.f32 %v1570, %v1794
        %v1796 = vpop.f32.mrb[0].mxu0
        %1797 = vmatprep.mubr.f32.mxu0 %v1175
        %1798 = vmatmul.mubr.f32.gmra.mrb[0].mxu0 %v1174
        %v1799 = vpop.f32.mrb[0].mxu0
        %v1800 = vadd.f32 %v1575, %v1799
        %v1801 = vpop.f32.mrb[0].mxu0
        %1802 = vmatprep.mubr.f32.mxu0 %v1184
        %1803 = vmatmul.mubr.f32.gmra.mrb[0].mxu0 %v1183
        %v1804 = vpop.f32.mrb[0].mxu0
        %v1805 = vadd.f32 %v1580, %v1804
        %v1806 = vpop.f32.mrb[0].mxu0
        %1807 = vmatprep.mubr.f32.mxu0 %v1193
        %1808 = vmatmul.mubr.f32.gmra.mrb[0].mxu0 %v1192
        %v1809 = vpop.f32.mrb[0].mxu0
        %v1810 = vadd.f32 %v1585, %v1809
        %v1811 = vpop.f32.mrb[0].mxu0
        %1812 = vmatprep.mubr.f32.mxu0 %v1202
        %1813 = vmatmul.mubr.f32.gmra.mrb[0].mxu0 %v1201
        %v1814 = vpop.f32.mrb[0].mxu0
        %v1815 = vadd.f32 %v1590, %v1814
        %v1816 = vpop.f32.mrb[0].mxu0
        %1817 = vmatprep.mubr.f32.mxu0 %v1211
        %1818 = vmatmul.mubr.f32.gmra.mrb[0].mxu0 %v1210
        %v1819 = vpop.f32.mrb[0].mxu0
        %v1820 = vadd.f32 %v1595, %v1819
        %v1821 = vpop.f32.mrb[0].mxu0
        %1822 = vmatprep.mubr.f32.mxu0 %v1220
        %1823 = vmatmul.mubr.f32.gmra.mrb[0].mxu0 %v1219
        %v1824 = vpop.f32.mrb[0].mxu0
        %v1825 = vadd.f32 %v1600, %v1824
        %v1826 = vpop.f32.mrb[0].mxu0
        %1827 = vmatprep.mubr.f32.mxu0 %v1229
        %1828 = vmatmul.mubr.f32.gmra.mrb[0].mxu0 %v1228
        %v1829 = vpop.f32.mrb[0].mxu0
        %v1830 = vadd.f32 %v1605, %v1829
        %v1831 = vpop.f32.mrb[0].mxu0
        %1832 = vmatprep.mubr.f32.mxu0 %v1238
        %1833 = vmatmul.mubr.f32.gmra.mrb[0].mxu0 %v1237
        %v1834 = vpop.f32.mrb[0].mxu0
        %v1835 = vadd.f32 %v1610, %v1834
        %v1836 = vpop.f32.mrb[0].mxu0
        %1837 = vdwg.mxu0
        %1838 = vmatprep.subr.mxu0 0.0
        %1839 = vmatpush1.msra.mxu0 %v1308
        %1840 = vmatprep.subr.mxu0 0.0
        %1841 = vmatpush1.msra.mxu0 %v1309
        %1842 = vmatprep.subr.mxu0 0.0
        %1843 = vmatpush1.msra.mxu0 %v1310
        %1844 = vmatprep.subr.mxu0 0.0
        %1845 = vmatpush1.msra.mxu0 %v1311
        %1846 = vmatprep.subr.mxu0 0.0
        %1847 = vmatpush1.msra.mxu0 %v1312
        %1848 = vmatprep.subr.mxu0 0.0
        %1849 = vmatpush1.msra.mxu0 %v1313
        %1850 = vmatprep.subr.mxu0 0.0
        %1851 = vmatpush1.msra.mxu0 %v1314
        %1852 = vmatprep.subr.mxu0 0.0
        %1853 = vmatpush1.msra.mxu0 %v1315
        %1854 = vmatprep.subr.mxu0 0.0
        %1855 = vmatpush1.msra.mxu0 %v1316
        %1856 = vmatprep.subr.mxu0 0.0
        %1857 = vmatpush1.msra.mxu0 %v1317
        %1858 = vmatprep.subr.mxu0 0.0
        %1859 = vmatpush1.msra.mxu0 %v1318
        %1860 = vmatprep.subr.mxu0 0.0
        %1861 = vmatpush1.msra.mxu0 %v1319
        %1862 = vmatprep.subr.mxu0 0.0
        %1863 = vmatpush1.msra.mxu0 %v1320
        %1864 = vmatprep.subr.mxu0 0.0
        %1865 = vmatpush1.msra.mxu0 %v1321
        %1866 = vmatprep.subr.mxu0 0.0
        %1867 = vmatpush1.msra.mxu0 %v1322
        %1868 = vmatprep.subr.mxu0 0.0
        %1869 = vmatpush1.msra.mxu0 %v1323
        %1870 = vmatprep.subr.mxu0 0.0
        %1871 = vmatpush1.msra.mxu0 %v1324
        %1872 = vmatprep.subr.mxu0 0.0
        %1873 = vmatpush1.msra.mxu0 %v1325
        %1874 = vmatprep.subr.mxu0 0.0
        %1875 = vmatpush1.msra.mxu0 %v1326
        %1876 = vmatprep.subr.mxu0 0.0
        %1877 = vmatpush1.msra.mxu0 %v1327
        %1878 = vmatprep.subr.mxu0 0.0
        %1879 = vmatpush1.msra.mxu0 %v1328
        %1880 = vmatprep.subr.mxu0 0.0
        %1881 = vmatpush1.msra.mxu0 %v1329
        %1882 = vmatprep.subr.mxu0 0.0
        %1883 = vmatpush1.msra.mxu0 %v1330
        %1884 = vmatprep.subr.mxu0 0.0
        %1885 = vmatpush1.msra.mxu0 %v1331
        %1886 = vmatprep.subr.mxu0 0.0
        %1887 = vmatpush1.msra.mxu0 %v1332
        %1888 = vmatprep.subr.mxu0 0.0
        %1889 = vmatpush1.msra.mxu0 %v1333
        %1890 = vmatprep.subr.mxu0 0.0
        %1891 = vmatpush1.msra.mxu0 %v1334
        %1892 = vmatprep.subr.mxu0 0.0
        %1893 = vmatpush1.msra.mxu0 %v1335
        %1894 = vmatprep.subr.mxu0 0.0
        %1895 = vmatpush1.msra.mxu0 %v1336
        %1896 = vmatprep.subr.mxu0 0.0
        %1897 = vmatpush1.msra.mxu0 %v1337
        %1898 = vmatprep.subr.mxu0 0.0
        %1899 = vmatpush1.msra.mxu0 %v1338
        %1900 = vmatprep.subr.mxu0 0.0
        %1901 = vmatpush1.msra.mxu0 %v1339
        %1902 = vmatprep.mubr.f32.mxu0 %v961
        %1903 = vmatmul.mubr.f32.gmra.mrb[0].mxu0 %v960
        %v1904 = vpop.f32.mrb[0].mxu0
        %v1905 = vadd.f32 %v1680, %v1904
        %v1906 = vpop.f32.mrb[0].mxu0
        %1907 = vmatprep.mubr.f32.mxu0 %v970
        %1908 = vmatmul.mubr.f32.gmra.mrb[0].mxu0 %v969
        %v1909 = vpop.f32.mrb[0].mxu0
        %v1910 = vadd.f32 %v1685, %v1909
        %v1911 = vpop.f32.mrb[0].mxu0
        %1912 = vmatprep.mubr.f32.mxu0 %v979
        %1913 = vmatmul.mubr.f32.gmra.mrb[0].mxu0 %v978
        %v1914 = vpop.f32.mrb[0].mxu0
        %v1915 = vadd.f32 %v1690, %v1914
        %v1916 = vpop.f32.mrb[0].mxu0
        %1917 = vmatprep.mubr.f32.mxu0 %v988
        %1918 = vmatmul.mubr.f32.gmra.mrb[0].mxu0 %v987
        %v1919 = vpop.f32.mrb[0].mxu0
        %v1920 = vadd.f32 %v1695, %v1919
        %v1921 = vpop.f32.mrb[0].mxu0
        %1922 = vmatprep.mubr.f32.mxu0 %v997
        %1923 = vmatmul.mubr.f32.gmra.mrb[0].mxu0 %v996
        %v1924 = vpop.f32.mrb[0].mxu0
        %v1925 = vadd.f32 %v1700, %v1924
        %v1926 = vpop.f32.mrb[0].mxu0
        %1927 = vmatprep.mubr.f32.mxu0 %v1006
        %1928 = vmatmul.mubr.f32.gmra.mrb[0].mxu0 %v1005
        %v1929 = vpop.f32.mrb[0].mxu0
        %v1930 = vadd.f32 %v1705, %v1929
        %v1931 = vpop.f32.mrb[0].mxu0
        %1932 = vmatprep.mubr.f32.mxu0 %v1015
        %1933 = vmatmul.mubr.f32.gmra.mrb[0].mxu0 %v1014
        %v1934 = vpop.f32.mrb[0].mxu0
        %v1935 = vadd.f32 %v1710, %v1934
        %v1936 = vpop.f32.mrb[0].mxu0
        %1937 = vmatprep.mubr.f32.mxu0 %v1024
        %1938 = vmatmul.mubr.f32.gmra.mrb[0].mxu0 %v1023
        %v1939 = vpop.f32.mrb[0].mxu0
        %v1940 = vadd.f32 %v1715, %v1939
        %v1941 = vpop.f32.mrb[0].mxu0
        %1942 = vmatprep.mubr.f32.mxu0 %v1033
        %1943 = vmatmul.mubr.f32.gmra.mrb[0].mxu0 %v1032
        %v1944 = vpop.f32.mrb[0].mxu0
        %v1945 = vadd.f32 %v1720, %v1944
        %v1946 = vpop.f32.mrb[0].mxu0
        %1947 = vmatprep.mubr.f32.mxu0 %v1042
        %1948 = vmatmul.mubr.f32.gmra.mrb[0].mxu0 %v1041
        %v1949 = vpop.f32.mrb[0].mxu0
        %v1950 = vadd.f32 %v1725, %v1949
        %v1951 = vpop.f32.mrb[0].mxu0
        %1952 = vmatprep.mubr.f32.mxu0 %v1051
        %1953 = vmatmul.mubr.f32.gmra.mrb[0].mxu0 %v1050
        %v1954 = vpop.f32.mrb[0].mxu0
        %v1955 = vadd.f32 %v1730, %v1954
        %v1956 = vpop.f32.mrb[0].mxu0
        %1957 = vmatprep.mubr.f32.mxu0 %v1060
        %1958 = vmatmul.mubr.f32.gmra.mrb[0].mxu0 %v1059
        %v1959 = vpop.f32.mrb[0].mxu0
        %v1960 = vadd.f32 %v1735, %v1959
        %v1961 = vpop.f32.mrb[0].mxu0
        %1962 = vmatprep.mubr.f32.mxu0 %v1069
        %1963 = vmatmul.mubr.f32.gmra.mrb[0].mxu0 %v1068
        %v1964 = vpop.f32.mrb[0].mxu0
        %v1965 = vadd.f32 %v1740, %v1964
        %v1966 = vpop.f32.mrb[0].mxu0
        %1967 = vmatprep.mubr.f32.mxu0 %v1078
        %1968 = vmatmul.mubr.f32.gmra.mrb[0].mxu0 %v1077
        %v1969 = vpop.f32.mrb[0].mxu0
        %v1970 = vadd.f32 %v1745, %v1969
        %v1971 = vpop.f32.mrb[0].mxu0
        %1972 = vmatprep.mubr.f32.mxu0 %v1087
        %1973 = vmatmul.mubr.f32.gmra.mrb[0].mxu0 %v1086
        %v1974 = vpop.f32.mrb[0].mxu0
        %v1975 = vadd.f32 %v1750, %v1974
        %v1976 = vpop.f32.mrb[0].mxu0
        %1977 = vmatprep.mubr.f32.mxu0 %v1096
        %1978 = vmatmul.mubr.f32.gmra.mrb[0].mxu0 %v1095
        %v1979 = vpop.f32.mrb[0].mxu0
        %v1980 = vadd.f32 %v1755, %v1979
        %v1981 = vpop.f32.mrb[0].mxu0
        %1982 = vmatprep.mubr.f32.mxu0 %v1105
        %1983 = vmatmul.mubr.f32.gmra.mrb[0].mxu0 %v1104
        %v1984 = vpop.f32.mrb[0].mxu0
        %v1985 = vadd.f32 %v1760, %v1984
        %v1986 = vpop.f32.mrb[0].mxu0
        %1987 = vmatprep.mubr.f32.mxu0 %v1114
        %1988 = vmatmul.mubr.f32.gmra.mrb[0].mxu0 %v1113
        %v1989 = vpop.f32.mrb[0].mxu0
        %v1990 = vadd.f32 %v1765, %v1989
        %v1991 = vpop.f32.mrb[0].mxu0
        %1992 = vmatprep.mubr.f32.mxu0 %v1123
        %1993 = vmatmul.mubr.f32.gmra.mrb[0].mxu0 %v1122
        %v1994 = vpop.f32.mrb[0].mxu0
        %v1995 = vadd.f32 %v1770, %v1994
        %v1996 = vpop.f32.mrb[0].mxu0
        %1997 = vmatprep.mubr.f32.mxu0 %v1132
        %1998 = vmatmul.mubr.f32.gmra.mrb[0].mxu0 %v1131
        %v1999 = vpop.f32.mrb[0].mxu0
        %v2000 = vadd.f32 %v1775, %v1999
        %v2001 = vpop.f32.mrb[0].mxu0
        %2002 = vmatprep.mubr.f32.mxu0 %v1141
        %2003 = vmatmul.mubr.f32.gmra.mrb[0].mxu0 %v1140
        %v2004 = vpop.f32.mrb[0].mxu0
        %v2005 = vadd.f32 %v1780, %v2004
        %v2006 = vpop.f32.mrb[0].mxu0
        %2007 = vmatprep.mubr.f32.mxu0 %v1150
        %2008 = vmatmul.mubr.f32.gmra.mrb[0].mxu0 %v1149
        %v2009 = vpop.f32.mrb[0].mxu0
        %v2010 = vadd.f32 %v1785, %v2009
        %v2011 = vpop.f32.mrb[0].mxu0
        %2012 = vmatprep.mubr.f32.mxu0 %v1159
        %2013 = vmatmul.mubr.f32.gmra.mrb[0].mxu0 %v1158
        %v2014 = vpop.f32.mrb[0].mxu0
        %v2015 = vadd.f32 %v1790, %v2014
        %v2016 = vpop.f32.mrb[0].mxu0
        %2017 = vmatprep.mubr.f32.mxu0 %v1168
        %2018 = vmatmul.mubr.f32.gmra.mrb[0].mxu0 %v1167
        %v2019 = vpop.f32.mrb[0].mxu0
        %v2020 = vadd.f32 %v1795, %v2019
        %v2021 = vpop.f32.mrb[0].mxu0
        %2022 = vmatprep.mubr.f32.mxu0 %v1177
        %2023 = vmatmul.mubr.f32.gmra.mrb[0].mxu0 %v1176
        %v2024 = vpop.f32.mrb[0].mxu0
        %v2025 = vadd.f32 %v1800, %v2024
        %v2026 = vpop.f32.mrb[0].mxu0
        %2027 = vmatprep.mubr.f32.mxu0 %v1186
        %2028 = vmatmul.mubr.f32.gmra.mrb[0].mxu0 %v1185
        %v2029 = vpop.f32.mrb[0].mxu0
        %v2030 = vadd.f32 %v1805, %v2029
        %v2031 = vpop.f32.mrb[0].mxu0
        %2032 = vmatprep.mubr.f32.mxu0 %v1195
        %2033 = vmatmul.mubr.f32.gmra.mrb[0].mxu0 %v1194
        %v2034 = vpop.f32.mrb[0].mxu0
        %v2035 = vadd.f32 %v1810, %v2034
        %v2036 = vpop.f32.mrb[0].mxu0
        %2037 = vmatprep.mubr.f32.mxu0 %v1204
        %2038 = vmatmul.mubr.f32.gmra.mrb[0].mxu0 %v1203
        %v2039 = vpop.f32.mrb[0].mxu0
        %v2040 = vadd.f32 %v1815, %v2039
        %v2041 = vpop.f32.mrb[0].mxu0
        %2042 = vmatprep.mubr.f32.mxu0 %v1213
        %2043 = vmatmul.mubr.f32.gmra.mrb[0].mxu0 %v1212
        %v2044 = vpop.f32.mrb[0].mxu0
        %v2045 = vadd.f32 %v1820, %v2044
        %v2046 = vpop.f32.mrb[0].mxu0
        %2047 = vmatprep.mubr.f32.mxu0 %v1222
        %2048 = vmatmul.mubr.f32.gmra.mrb[0].mxu0 %v1221
        %v2049 = vpop.f32.mrb[0].mxu0
        %v2050 = vadd.f32 %v1825, %v2049
        %v2051 = vpop.f32.mrb[0].mxu0
        %2052 = vmatprep.mubr.f32.mxu0 %v1231
        %2053 = vmatmul.mubr.f32.gmra.mrb[0].mxu0 %v1230
        %v2054 = vpop.f32.mrb[0].mxu0
        %v2055 = vadd.f32 %v1830, %v2054
        %v2056 = vpop.f32.mrb[0].mxu0
        %2057 = vmatprep.mubr.f32.mxu0 %v1240
        %2058 = vmatmul.mubr.f32.gmra.mrb[0].mxu0 %v1239
        %v2059 = vpop.f32.mrb[0].mxu0
        %v2060 = vadd.f32 %v1835, %v2059
        %v2061 = vpop.f32.mrb[0].mxu0
        %2062 = vdwg.mxu0
        %2063 = vmatprep.subr.mxu0 0.0
        %2064 = vmatpush1.msra.mxu0 %v1340
        %2065 = vmatprep.subr.mxu0 0.0
        %2066 = vmatpush1.msra.mxu0 %v1341
        %2067 = vmatprep.subr.mxu0 0.0
        %2068 = vmatpush1.msra.mxu0 %v1342
        %2069 = vmatprep.subr.mxu0 0.0
        %2070 = vmatpush1.msra.mxu0 %v1343
        %2071 = vmatprep.subr.mxu0 0.0
        %2072 = vmatpush1.msra.mxu0 %v1344
        %2073 = vmatprep.subr.mxu0 0.0
        %2074 = vmatpush1.msra.mxu0 %v1345
        %2075 = vmatprep.subr.mxu0 0.0
        %2076 = vmatpush1.msra.mxu0 %v1346
        %2077 = vmatprep.subr.mxu0 0.0
        %2078 = vmatpush1.msra.mxu0 %v1347
        %2079 = vmatprep.subr.mxu0 0.0
        %2080 = vmatpush1.msra.mxu0 %v1348
        %2081 = vmatprep.subr.mxu0 0.0
        %2082 = vmatpush1.msra.mxu0 %v1349
        %2083 = vmatprep.subr.mxu0 0.0
        %2084 = vmatpush1.msra.mxu0 %v1350
        %2085 = vmatprep.subr.mxu0 0.0
        %2086 = vmatpush1.msra.mxu0 %v1351
        %2087 = vmatprep.subr.mxu0 0.0
        %2088 = vmatpush1.msra.mxu0 %v1352
        %2089 = vmatprep.subr.mxu0 0.0
        %2090 = vmatpush1.msra.mxu0 %v1353
        %2091 = vmatprep.subr.mxu0 0.0
        %2092 = vmatpush1.msra.mxu0 %v1354
        %2093 = vmatprep.subr.mxu0 0.0
        %2094 = vmatpush1.msra.mxu0 %v1355
        %2095 = vmatprep.subr.mxu0 0.0
        %2096 = vmatpush1.msra.mxu0 %v1356
        %2097 = vmatprep.subr.mxu0 0.0
        %2098 = vmatpush1.msra.mxu0 %v1357
        %2099 = vmatprep.subr.mxu0 0.0
        %2100 = vmatpush1.msra.mxu0 %v1358
        %2101 = vmatprep.subr.mxu0 0.0
        %2102 = vmatpush1.msra.mxu0 %v1359
        %2103 = vmatprep.subr.mxu0 0.0
        %2104 = vmatpush1.msra.mxu0 %v1360
        %2105 = vmatprep.subr.mxu0 0.0
        %2106 = vmatpush1.msra.mxu0 %v1361
        %2107 = vmatprep.subr.mxu0 0.0
        %2108 = vmatpush1.msra.mxu0 %v1362
        %2109 = vmatprep.subr.mxu0 0.0
        %2110 = vmatpush1.msra.mxu0 %v1363
        %2111 = vmatprep.subr.mxu0 0.0
        %2112 = vmatpush1.msra.mxu0 %v1364
        %2113 = vmatprep.subr.mxu0 0.0
        %2114 = vmatpush1.msra.mxu0 %v1365
        %2115 = vmatprep.subr.mxu0 0.0
        %2116 = vmatpush1.msra.mxu0 %v1366
        %2117 = vmatprep.subr.mxu0 0.0
        %2118 = vmatpush1.msra.mxu0 %v1367
        %2119 = vmatprep.subr.mxu0 0.0
        %2120 = vmatpush1.msra.mxu0 %v1368
        %2121 = vmatprep.subr.mxu0 0.0
        %2122 = vmatpush1.msra.mxu0 %v1369
        %2123 = vmatprep.subr.mxu0 0.0
        %2124 = vmatpush1.msra.mxu0 %v1370
        %2125 = vmatprep.subr.mxu0 0.0
        %2126 = vmatpush1.msra.mxu0 %v1371
        %2127 = vmatprep.mubr.f32.mxu0 %v963
        %2128 = vmatmul.mubr.f32.gmra.mrb[0].mxu0 %v962
        %v2129 = vpop.f32.mrb[0].mxu0
        %v2130 = vadd.f32 %v1905, %v2129
        %v2131 = vpop.f32.mrb[0].mxu0
        %2132 = vmatprep.mubr.f32.mxu0 %v972
        %2133 = vmatmul.mubr.f32.gmra.mrb[0].mxu0 %v971
        %v2134 = vpop.f32.mrb[0].mxu0
        %v2135 = vadd.f32 %v1910, %v2134
        %v2136 = vpop.f32.mrb[0].mxu0
        %2137 = vmatprep.mubr.f32.mxu0 %v981
        %2138 = vmatmul.mubr.f32.gmra.mrb[0].mxu0 %v980
        %v2139 = vpop.f32.mrb[0].mxu0
        %v2140 = vadd.f32 %v1915, %v2139
        %v2141 = vpop.f32.mrb[0].mxu0
        %2142 = vmatprep.mubr.f32.mxu0 %v990
        %2143 = vmatmul.mubr.f32.gmra.mrb[0].mxu0 %v989
        %v2144 = vpop.f32.mrb[0].mxu0
        %v2145 = vadd.f32 %v1920, %v2144
        %v2146 = vpop.f32.mrb[0].mxu0
        %2147 = vmatprep.mubr.f32.mxu0 %v999
        %2148 = vmatmul.mubr.f32.gmra.mrb[0].mxu0 %v998
        %v2149 = vpop.f32.mrb[0].mxu0
        %v2150 = vadd.f32 %v1925, %v2149
        %v2151 = vpop.f32.mrb[0].mxu0
        %2152 = vmatprep.mubr.f32.mxu0 %v1008
        %2153 = vmatmul.mubr.f32.gmra.mrb[0].mxu0 %v1007
        %v2154 = vpop.f32.mrb[0].mxu0
        %v2155 = vadd.f32 %v1930, %v2154
        %v2156 = vpop.f32.mrb[0].mxu0
        %2157 = vmatprep.mubr.f32.mxu0 %v1017
        %2158 = vmatmul.mubr.f32.gmra.mrb[0].mxu0 %v1016
        %v2159 = vpop.f32.mrb[0].mxu0
        %v2160 = vadd.f32 %v1935, %v2159
        %v2161 = vpop.f32.mrb[0].mxu0
        %2162 = vmatprep.mubr.f32.mxu0 %v1026
        %2163 = vmatmul.mubr.f32.gmra.mrb[0].mxu0 %v1025
        %v2164 = vpop.f32.mrb[0].mxu0
        %v2165 = vadd.f32 %v1940, %v2164
        %v2166 = vpop.f32.mrb[0].mxu0
        %2167 = vmatprep.mubr.f32.mxu0 %v1035
        %2168 = vmatmul.mubr.f32.gmra.mrb[0].mxu0 %v1034
        %v2169 = vpop.f32.mrb[0].mxu0
        %v2170 = vadd.f32 %v1945, %v2169
        %v2171 = vpop.f32.mrb[0].mxu0
        %2172 = vmatprep.mubr.f32.mxu0 %v1044
        %2173 = vmatmul.mubr.f32.gmra.mrb[0].mxu0 %v1043
        %v2174 = vpop.f32.mrb[0].mxu0
        %v2175 = vadd.f32 %v1950, %v2174
        %v2176 = vpop.f32.mrb[0].mxu0
        %2177 = vmatprep.mubr.f32.mxu0 %v1053
        %2178 = vmatmul.mubr.f32.gmra.mrb[0].mxu0 %v1052
        %v2179 = vpop.f32.mrb[0].mxu0
        %v2180 = vadd.f32 %v1955, %v2179
        %v2181 = vpop.f32.mrb[0].mxu0
        %2182 = vmatprep.mubr.f32.mxu0 %v1062
        %2183 = vmatmul.mubr.f32.gmra.mrb[0].mxu0 %v1061
        %v2184 = vpop.f32.mrb[0].mxu0
        %v2185 = vadd.f32 %v1960, %v2184
        %v2186 = vpop.f32.mrb[0].mxu0
        %2187 = vmatprep.mubr.f32.mxu0 %v1071
        %2188 = vmatmul.mubr.f32.gmra.mrb[0].mxu0 %v1070
        %v2189 = vpop.f32.mrb[0].mxu0
        %v2190 = vadd.f32 %v1965, %v2189
        %v2191 = vpop.f32.mrb[0].mxu0
        %2192 = vmatprep.mubr.f32.mxu0 %v1080
        %2193 = vmatmul.mubr.f32.gmra.mrb[0].mxu0 %v1079
        %v2194 = vpop.f32.mrb[0].mxu0
        %v2195 = vadd.f32 %v1970, %v2194
        %v2196 = vpop.f32.mrb[0].mxu0
        %2197 = vmatprep.mubr.f32.mxu0 %v1089
        %2198 = vmatmul.mubr.f32.gmra.mrb[0].mxu0 %v1088
        %v2199 = vpop.f32.mrb[0].mxu0
        %v2200 = vadd.f32 %v1975, %v2199
        %v2201 = vpop.f32.mrb[0].mxu0
        %2202 = vmatprep.mubr.f32.mxu0 %v1098
        %2203 = vmatmul.mubr.f32.gmra.mrb[0].mxu0 %v1097
        %v2204 = vpop.f32.mrb[0].mxu0
        %v2205 = vadd.f32 %v1980, %v2204
        %v2206 = vpop.f32.mrb[0].mxu0
        %2207 = vmatprep.mubr.f32.mxu0 %v1107
        %2208 = vmatmul.mubr.f32.gmra.mrb[0].mxu0 %v1106
        %v2209 = vpop.f32.mrb[0].mxu0
        %v2210 = vadd.f32 %v1985, %v2209
        %v2211 = vpop.f32.mrb[0].mxu0
        %2212 = vmatprep.mubr.f32.mxu0 %v1116
        %2213 = vmatmul.mubr.f32.gmra.mrb[0].mxu0 %v1115
        %v2214 = vpop.f32.mrb[0].mxu0
        %v2215 = vadd.f32 %v1990, %v2214
        %v2216 = vpop.f32.mrb[0].mxu0
        %2217 = vmatprep.mubr.f32.mxu0 %v1125
        %2218 = vmatmul.mubr.f32.gmra.mrb[0].mxu0 %v1124
        %v2219 = vpop.f32.mrb[0].mxu0
        %v2220 = vadd.f32 %v1995, %v2219
        %v2221 = vpop.f32.mrb[0].mxu0
        %2222 = vmatprep.mubr.f32.mxu0 %v1134
        %2223 = vmatmul.mubr.f32.gmra.mrb[0].mxu0 %v1133
        %v2224 = vpop.f32.mrb[0].mxu0
        %v2225 = vadd.f32 %v2000, %v2224
        %v2226 = vpop.f32.mrb[0].mxu0
        %2227 = vmatprep.mubr.f32.mxu0 %v1143
        %2228 = vmatmul.mubr.f32.gmra.mrb[0].mxu0 %v1142
        %v2229 = vpop.f32.mrb[0].mxu0
        %v2230 = vadd.f32 %v2005, %v2229
        %v2231 = vpop.f32.mrb[0].mxu0
        %2232 = vmatprep.mubr.f32.mxu0 %v1152
        %2233 = vmatmul.mubr.f32.gmra.mrb[0].mxu0 %v1151
        %v2234 = vpop.f32.mrb[0].mxu0
        %v2235 = vadd.f32 %v2010, %v2234
        %v2236 = vpop.f32.mrb[0].mxu0
        %2237 = vmatprep.mubr.f32.mxu0 %v1161
        %2238 = vmatmul.mubr.f32.gmra.mrb[0].mxu0 %v1160
        %v2239 = vpop.f32.mrb[0].mxu0
        %v2240 = vadd.f32 %v2015, %v2239
        %v2241 = vpop.f32.mrb[0].mxu0
        %2242 = vmatprep.mubr.f32.mxu0 %v1170
        %2243 = vmatmul.mubr.f32.gmra.mrb[0].mxu0 %v1169
        %v2244 = vpop.f32.mrb[0].mxu0
        %v2245 = vadd.f32 %v2020, %v2244
        %v2246 = vpop.f32.mrb[0].mxu0
        %2247 = vmatprep.mubr.f32.mxu0 %v1179
        %2248 = vmatmul.mubr.f32.gmra.mrb[0].mxu0 %v1178
        %v2249 = vpop.f32.mrb[0].mxu0
        %v2250 = vadd.f32 %v2025, %v2249
        %v2251 = vpop.f32.mrb[0].mxu0
        %2252 = vmatprep.mubr.f32.mxu0 %v1188
        %2253 = vmatmul.mubr.f32.gmra.mrb[0].mxu0 %v1187
        %v2254 = vpop.f32.mrb[0].mxu0
        %v2255 = vadd.f32 %v2030, %v2254
        %v2256 = vpop.f32.mrb[0].mxu0
        %2257 = vmatprep.mubr.f32.mxu0 %v1197
        %2258 = vmatmul.mubr.f32.gmra.mrb[0].mxu0 %v1196
        %v2259 = vpop.f32.mrb[0].mxu0
        %v2260 = vadd.f32 %v2035, %v2259
        %v2261 = vpop.f32.mrb[0].mxu0
        %2262 = vmatprep.mubr.f32.mxu0 %v1206
        %2263 = vmatmul.mubr.f32.gmra.mrb[0].mxu0 %v1205
        %v2264 = vpop.f32.mrb[0].mxu0
        %v2265 = vadd.f32 %v2040, %v2264
        %v2266 = vpop.f32.mrb[0].mxu0
        %2267 = vmatprep.mubr.f32.mxu0 %v1215
        %2268 = vmatmul.mubr.f32.gmra.mrb[0].mxu0 %v1214
        %v2269 = vpop.f32.mrb[0].mxu0
        %v2270 = vadd.f32 %v2045, %v2269
        %v2271 = vpop.f32.mrb[0].mxu0
        %2272 = vmatprep.mubr.f32.mxu0 %v1224
        %2273 = vmatmul.mubr.f32.gmra.mrb[0].mxu0 %v1223
        %v2274 = vpop.f32.mrb[0].mxu0
        %v2275 = vadd.f32 %v2050, %v2274
        %v2276 = vpop.f32.mrb[0].mxu0
        %2277 = vmatprep.mubr.f32.mxu0 %v1233
        %2278 = vmatmul.mubr.f32.gmra.mrb[0].mxu0 %v1232
        %v2279 = vpop.f32.mrb[0].mxu0
        %v2280 = vadd.f32 %v2055, %v2279
        %v2281 = vpop.f32.mrb[0].mxu0
        %2282 = vmatprep.mubr.f32.mxu0 %v1242
        %2283 = vmatmul.mubr.f32.gmra.mrb[0].mxu0 %v1241
        %v2284 = vpop.f32.mrb[0].mxu0
        %v2285 = vadd.f32 %v2060, %v2284
        %v2286 = vpop.f32.mrb[0].mxu0
        %2287 = vdwg.mxu0
        %2288 = vmatprep.subr.mxu0 0.0
        %2289 = vmatpush1.msra.mxu0 %v1372
        %2290 = vmatprep.subr.mxu0 0.0
        %2291 = vmatpush1.msra.mxu0 %v1373
        %2292 = vmatprep.subr.mxu0 0.0
        %2293 = vmatpush1.msra.mxu0 %v1374
        %2294 = vmatprep.subr.mxu0 0.0
        %2295 = vmatpush1.msra.mxu0 %v1375
        %2296 = vmatprep.subr.mxu0 0.0
        %2297 = vmatpush1.msra.mxu0 %v1376
        %2298 = vmatprep.subr.mxu0 0.0
        %2299 = vmatpush1.msra.mxu0 %v1377
        %2300 = vmatprep.subr.mxu0 0.0
        %2301 = vmatpush1.msra.mxu0 %v1378
        %2302 = vmatprep.subr.mxu0 0.0
        %2303 = vmatpush1.msra.mxu0 %v1379
        %2304 = vmatprep.subr.mxu0 0.0
        %2305 = vmatpush1.msra.mxu0 %v1380
        %2306 = vmatprep.subr.mxu0 0.0
        %2307 = vmatpush1.msra.mxu0 %v1381
        %2308 = vmatprep.subr.mxu0 0.0
        %2309 = vmatpush1.msra.mxu0 %v1382
        %2310 = vmatprep.subr.mxu0 0.0
        %2311 = vmatpush1.msra.mxu0 %v1383
        %2312 = vmatprep.subr.mxu0 0.0
        %2313 = vmatpush1.msra.mxu0 %v1384
        %2314 = vmatprep.subr.mxu0 0.0
        %2315 = vmatpush1.msra.mxu0 %v1385
        %2316 = vmatprep.subr.mxu0 0.0
        %2317 = vmatpush1.msra.mxu0 %v1386
        %2318 = vmatprep.subr.mxu0 0.0
        %2319 = vmatpush1.msra.mxu0 %v1387
        %2320 = vmatprep.subr.mxu0 0.0
        %2321 = vmatpush1.msra.mxu0 0.0
        %2322 = vmatprep.subr.mxu0 0.0
        %2323 = vmatpush1.msra.mxu0 0.0
        %2324 = vmatprep.subr.mxu0 0.0
        %2325 = vmatpush1.msra.mxu0 0.0
        %2326 = vmatprep.subr.mxu0 0.0
        %2327 = vmatpush1.msra.mxu0 0.0
        %2328 = vmatprep.subr.mxu0 0.0
        %2329 = vmatpush1.msra.mxu0 0.0
        %2330 = vmatprep.subr.mxu0 0.0
        %2331 = vmatpush1.msra.mxu0 0.0
        %2332 = vmatprep.subr.mxu0 0.0
        %2333 = vmatpush1.msra.mxu0 0.0
        %2334 = vmatprep.subr.mxu0 0.0
        %2335 = vmatpush1.msra.mxu0 0.0
        %2336 = vmatprep.subr.mxu0 0.0
        %2337 = vmatpush1.msra.mxu0 0.0
        %2338 = vmatprep.subr.mxu0 0.0
        %2339 = vmatpush1.msra.mxu0 0.0
        %2340 = vmatprep.subr.mxu0 0.0
        %2341 = vmatpush1.msra.mxu0 0.0
        %2342 = vmatprep.subr.mxu0 0.0
        %2343 = vmatpush1.msra.mxu0 0.0
        %2344 = vmatprep.subr.mxu0 0.0
        %2345 = vmatpush1.msra.mxu0 0.0
        %2346 = vmatprep.subr.mxu0 0.0
        %2347 = vmatpush1.msra.mxu0 0.0
        %2348 = vmatprep.subr.mxu0 0.0
        %2349 = vmatpush1.msra.mxu0 0.0
        %2350 = vmatprep.subr.mxu0 0.0
        %2351 = vmatpush1.msra.mxu0 0.0
        %2352 = vmatprep.mubr.f32.mxu0 0.0
        %2353 = vmatmul.mubr.f32.gmra.mrb[0].mxu0 %v964
        %v2354 = vpop.f32.mrb[0].mxu0
        %v2355 = vadd.f32 %v2130, %v2354
        %v2356 = vpop.f32.mrb[0].mxu0
        %2357 = vmatprep.mubr.f32.mxu0 0.0
        %2358 = vmatmul.mubr.f32.gmra.mrb[0].mxu0 %v973
        %v2359 = vpop.f32.mrb[0].mxu0
        %v2360 = vadd.f32 %v2135, %v2359
        %v2361 = vpop.f32.mrb[0].mxu0
        %2362 = vmatprep.mubr.f32.mxu0 0.0
        %2363 = vmatmul.mubr.f32.gmra.mrb[0].mxu0 %v982
        %v2364 = vpop.f32.mrb[0].mxu0
        %v2365 = vadd.f32 %v2140, %v2364
        %v2366 = vpop.f32.mrb[0].mxu0
        %2367 = vmatprep.mubr.f32.mxu0 0.0
        %2368 = vmatmul.mubr.f32.gmra.mrb[0].mxu0 %v991
        %v2369 = vpop.f32.mrb[0].mxu0
        %v2370 = vadd.f32 %v2145, %v2369
        %v2371 = vpop.f32.mrb[0].mxu0
        %2372 = vmatprep.mubr.f32.mxu0 0.0
        %2373 = vmatmul.mubr.f32.gmra.mrb[0].mxu0 %v1000
        %v2374 = vpop.f32.mrb[0].mxu0
        %v2375 = vadd.f32 %v2150, %v2374
        %v2376 = vpop.f32.mrb[0].mxu0
        %2377 = vmatprep.mubr.f32.mxu0 0.0
        %2378 = vmatmul.mubr.f32.gmra.mrb[0].mxu0 %v1009
        %v2379 = vpop.f32.mrb[0].mxu0
        %v2380 = vadd.f32 %v2155, %v2379
        %v2381 = vpop.f32.mrb[0].mxu0
        %2382 = vmatprep.mubr.f32.mxu0 0.0
        %2383 = vmatmul.mubr.f32.gmra.mrb[0].mxu0 %v1018
        %v2384 = vpop.f32.mrb[0].mxu0
        %v2385 = vadd.f32 %v2160, %v2384
        %v2386 = vpop.f32.mrb[0].mxu0
        %2387 = vmatprep.mubr.f32.mxu0 0.0
        %2388 = vmatmul.mubr.f32.gmra.mrb[0].mxu0 %v1027
        %v2389 = vpop.f32.mrb[0].mxu0
        %v2390 = vadd.f32 %v2165, %v2389
        %v2391 = vpop.f32.mrb[0].mxu0
        %2392 = vmatprep.mubr.f32.mxu0 0.0
        %2393 = vmatmul.mubr.f32.gmra.mrb[0].mxu0 %v1036
        %v2394 = vpop.f32.mrb[0].mxu0
        %v2395 = vadd.f32 %v2170, %v2394
        %v2396 = vpop.f32.mrb[0].mxu0
        %2397 = vmatprep.mubr.f32.mxu0 0.0
        %2398 = vmatmul.mubr.f32.gmra.mrb[0].mxu0 %v1045
        %v2399 = vpop.f32.mrb[0].mxu0
        %v2400 = vadd.f32 %v2175, %v2399
        %v2401 = vpop.f32.mrb[0].mxu0
        %2402 = vmatprep.mubr.f32.mxu0 0.0
        %2403 = vmatmul.mubr.f32.gmra.mrb[0].mxu0 %v1054
        %v2404 = vpop.f32.mrb[0].mxu0
        %v2405 = vadd.f32 %v2180, %v2404
        %v2406 = vpop.f32.mrb[0].mxu0
        %2407 = vmatprep.mubr.f32.mxu0 0.0
        %2408 = vmatmul.mubr.f32.gmra.mrb[0].mxu0 %v1063
        %v2409 = vpop.f32.mrb[0].mxu0
        %v2410 = vadd.f32 %v2185, %v2409
        %v2411 = vpop.f32.mrb[0].mxu0
        %2412 = vmatprep.mubr.f32.mxu0 0.0
        %2413 = vmatmul.mubr.f32.gmra.mrb[0].mxu0 %v1072
        %v2414 = vpop.f32.mrb[0].mxu0
        %v2415 = vadd.f32 %v2190, %v2414
        %v2416 = vpop.f32.mrb[0].mxu0
        %2417 = vmatprep.mubr.f32.mxu0 0.0
        %2418 = vmatmul.mubr.f32.gmra.mrb[0].mxu0 %v1081
        %v2419 = vpop.f32.mrb[0].mxu0
        %v2420 = vadd.f32 %v2195, %v2419
        %v2421 = vpop.f32.mrb[0].mxu0
        %2422 = vmatprep.mubr.f32.mxu0 0.0
        %2423 = vmatmul.mubr.f32.gmra.mrb[0].mxu0 %v1090
        %v2424 = vpop.f32.mrb[0].mxu0
        %v2425 = vadd.f32 %v2200, %v2424
        %v2426 = vpop.f32.mrb[0].mxu0
        %2427 = vmatprep.mubr.f32.mxu0 0.0
        %2428 = vmatmul.mubr.f32.gmra.mrb[0].mxu0 %v1099
        %v2429 = vpop.f32.mrb[0].mxu0
        %v2430 = vadd.f32 %v2205, %v2429
        %v2431 = vpop.f32.mrb[0].mxu0
        %2432 = vmatprep.mubr.f32.mxu0 0.0
        %2433 = vmatmul.mubr.f32.gmra.mrb[0].mxu0 %v1108
        %v2434 = vpop.f32.mrb[0].mxu0
        %v2435 = vadd.f32 %v2210, %v2434
        %v2436 = vpop.f32.mrb[0].mxu0
        %2437 = vmatprep.mubr.f32.mxu0 0.0
        %2438 = vmatmul.mubr.f32.gmra.mrb[0].mxu0 %v1117
        %v2439 = vpop.f32.mrb[0].mxu0
        %v2440 = vadd.f32 %v2215, %v2439
        %v2441 = vpop.f32.mrb[0].mxu0
        %2442 = vmatprep.mubr.f32.mxu0 0.0
        %2443 = vmatmul.mubr.f32.gmra.mrb[0].mxu0 %v1126
        %v2444 = vpop.f32.mrb[0].mxu0
        %v2445 = vadd.f32 %v2220, %v2444
        %v2446 = vpop.f32.mrb[0].mxu0
        %2447 = vmatprep.mubr.f32.mxu0 0.0
        %2448 = vmatmul.mubr.f32.gmra.mrb[0].mxu0 %v1135
        %v2449 = vpop.f32.mrb[0].mxu0
        %v2450 = vadd.f32 %v2225, %v2449
        %v2451 = vpop.f32.mrb[0].mxu0
        %2452 = vmatprep.mubr.f32.mxu0 0.0
        %2453 = vmatmul.mubr.f32.gmra.mrb[0].mxu0 %v1144
        %v2454 = vpop.f32.mrb[0].mxu0
        %v2455 = vadd.f32 %v2230, %v2454
        %v2456 = vpop.f32.mrb[0].mxu0
        %2457 = vmatprep.mubr.f32.mxu0 0.0
        %2458 = vmatmul.mubr.f32.gmra.mrb[0].mxu0 %v1153
        %v2459 = vpop.f32.mrb[0].mxu0
        %v2460 = vadd.f32 %v2235, %v2459
        %v2461 = vpop.f32.mrb[0].mxu0
        %2462 = vmatprep.mubr.f32.mxu0 0.0
        %2463 = vmatmul.mubr.f32.gmra.mrb[0].mxu0 %v1162
        %v2464 = vpop.f32.mrb[0].mxu0
        %v2465 = vadd.f32 %v2240, %v2464
        %v2466 = vpop.f32.mrb[0].mxu0
        %2467 = vmatprep.mubr.f32.mxu0 0.0
        %2468 = vmatmul.mubr.f32.gmra.mrb[0].mxu0 %v1171
        %v2469 = vpop.f32.mrb[0].mxu0
        %v2470 = vadd.f32 %v2245, %v2469
        %v2471 = vpop.f32.mrb[0].mxu0
        %2472 = vmatprep.mubr.f32.mxu0 0.0
        %2473 = vmatmul.mubr.f32.gmra.mrb[0].mxu0 %v1180
        %v2474 = vpop.f32.mrb[0].mxu0
        %v2475 = vadd.f32 %v2250, %v2474
        %v2476 = vpop.f32.mrb[0].mxu0
        %2477 = vmatprep.mubr.f32.mxu0 0.0
        %2478 = vmatmul.mubr.f32.gmra.mrb[0].mxu0 %v1189
        %v2479 = vpop.f32.mrb[0].mxu0
        %v2480 = vadd.f32 %v2255, %v2479
        %v2481 = vpop.f32.mrb[0].mxu0
        %2482 = vmatprep.mubr.f32.mxu0 0.0
        %2483 = vmatmul.mubr.f32.gmra.mrb[0].mxu0 %v1198
        %v2484 = vpop.f32.mrb[0].mxu0
        %v2485 = vadd.f32 %v2260, %v2484
        %v2486 = vpop.f32.mrb[0].mxu0
        %2487 = vmatprep.mubr.f32.mxu0 0.0
        %2488 = vmatmul.mubr.f32.gmra.mrb[0].mxu0 %v1207
        %v2489 = vpop.f32.mrb[0].mxu0
        %v2490 = vadd.f32 %v2265, %v2489
        %v2491 = vpop.f32.mrb[0].mxu0
        %2492 = vmatprep.mubr.f32.mxu0 0.0
        %2493 = vmatmul.mubr.f32.gmra.mrb[0].mxu0 %v1216
        %v2494 = vpop.f32.mrb[0].mxu0
        %v2495 = vadd.f32 %v2270, %v2494
        %v2496 = vpop.f32.mrb[0].mxu0
        %2497 = vmatprep.mubr.f32.mxu0 0.0
        %2498 = vmatmul.mubr.f32.gmra.mrb[0].mxu0 %v1225
        %v2499 = vpop.f32.mrb[0].mxu0
        %v2500 = vadd.f32 %v2275, %v2499
        %v2501 = vpop.f32.mrb[0].mxu0
        %2502 = vmatprep.mubr.f32.mxu0 0.0
        %2503 = vmatmul.mubr.f32.gmra.mrb[0].mxu0 %v1234
        %v2504 = vpop.f32.mrb[0].mxu0
        %v2505 = vadd.f32 %v2280, %v2504
        %v2506 = vpop.f32.mrb[0].mxu0
        %2507 = vmatprep.mubr.f32.mxu0 0.0
        %2508 = vmatmul.mubr.f32.gmra.mrb[0].mxu0 %v1243
        %v2509 = vpop.f32.mrb[0].mxu0
        %v2510 = vadd.f32 %v2285, %v2509
        %v2511 = vpop.f32.mrb[0].mxu0
        %2512 = vdwg.mxu0
        %2513 = vst [vmem:[%s261] sm:$0xff] %v2355
        %2514 = vst [vmem:[%s261 + $0x8] sm:$0xff] %v2360
        %2515 = vst [vmem:[%s261 + $0x10] sm:$0xff] %v2365
        %2516 = vst [vmem:[%s261 + $0x18] sm:$0xff] %v2370
        %2517 = vst [vmem:[%s261 + $0x20] sm:$0xff] %v2375
        %2518 = vst [vmem:[%s261 + $0x28] sm:$0xff] %v2380
        %2519 = vst [vmem:[%s261 + $0x30] sm:$0xff] %v2385
        %2520 = vst [vmem:[%s261 + $0x38] sm:$0xff] %v2390
        %2521 = vst [vmem:[%s261 + $0x40] sm:$0xff] %v2395
        %2522 = vst [vmem:[%s261 + $0x48] sm:$0xff] %v2400
        %2523 = vst [vmem:[%s261 + $0x50] sm:$0xff] %v2405
        %2524 = vst [vmem:[%s261 + $0x58] sm:$0xff] %v2410
        %2525 = vst [vmem:[%s261 + $0x60] sm:$0xff] %v2415
        %2526 = vst [vmem:[%s261 + $0x68] sm:$0xff] %v2420
        %2527 = vst [vmem:[%s261 + $0x70] sm:$0xff] %v2425
        %2528 = vst [vmem:[%s261 + $0x78] sm:$0xff] %v2430
        %2529 = vst [vmem:[%s261 + $0x80] sm:$0xff] %v2435
        %2530 = vst [vmem:[%s261 + $0x88] sm:$0xff] %v2440
        %2531 = vst [vmem:[%s261 + $0x90] sm:$0xff] %v2445
        %2532 = vst [vmem:[%s261 + $0x98] sm:$0xff] %v2450
        %2533 = vst [vmem:[%s261 + $0xa0] sm:$0xff] %v2455
        %2534 = vst [vmem:[%s261 + $0xa8] sm:$0xff] %v2460
        %2535 = vst [vmem:[%s261 + $0xb0] sm:$0xff] %v2465
        %2536 = vst [vmem:[%s261 + $0xb8] sm:$0xff] %v2470
        %2537 = vst [vmem:[%s261 + $0xc0] sm:$0xff] %v2475
        %2538 = vst [vmem:[%s261 + $0xc8] sm:$0xff] %v2480
        %2539 = vst [vmem:[%s261 + $0xd0] sm:$0xff] %v2485
        %2540 = vst [vmem:[%s261 + $0xd8] sm:$0xff] %v2490
        %2541 = vst [vmem:[%s261 + $0xe0] sm:$0xff] %v2495
        %2542 = vst [vmem:[%s261 + $0xe8] sm:$0xff] %v2500
        %2543 = vst [vmem:[%s261 + $0xf0] sm:$0xff] %v2505
        %2544 = vst [vmem:[%s261 + $0xf8] sm:$0xff] %v2510
        %v2545 = vadd.f32 %v2355, %v2360
        %v2546 = vadd.f32 %v2545, %v2365
        %v2547 = vadd.f32 %v2546, %v2370
        %v2548 = vadd.f32 %v2547, %v2375
        %v2549 = vadd.f32 %v2548, %v2380
        %v2550 = vadd.f32 %v2549, %v2385
        %v2551 = vadd.f32 %v2550, %v2390
        %v2552 = vadd.f32 %v2551, %v2395
        %v2553 = vadd.f32 %v2552, %v2400
        %v2554 = vadd.f32 %v2553, %v2405
        %v2555 = vadd.f32 %v2554, %v2410
        %v2556 = vadd.f32 %v2555, %v2415
        %v2557 = vadd.f32 %v2556, %v2420
        %v2558 = vadd.f32 %v2557, %v2425
        %v2559 = vadd.f32 %v2558, %v2430
        %v2560 = vadd.f32 %v2559, %v2435
        %v2561 = vadd.f32 %v2560, %v2440
        %v2562 = vadd.f32 %v2561, %v2445
        %v2563 = vadd.f32 %v2562, %v2450
        %v2564 = vadd.f32 %v2563, %v2455
        %v2565 = vadd.f32 %v2564, %v2460
        %v2566 = vadd.f32 %v2565, %v2465
        %v2567 = vadd.f32 %v2566, %v2470
        %v2568 = vadd.f32 %v2567, %v2475
        %v2569 = vadd.f32 %v2568, %v2480
        %v2570 = vadd.f32 %v2569, %v2485
        %v2571 = vadd.f32 %v2570, %v2490
        %v2572 = vadd.f32 %v2571, %v2495
        %v2573 = vadd.f32 %v2572, %v2500
        %v2574 = vadd.f32 %v2573, %v2505
        %v2575 = vadd.f32 %v2574, %v2510
        %v2576 = vrot.slane %v2575, 4
        %v2577 = vadd.f32 %v2575, %v2576
        %v2578 = vrot.slane %v2577, 2
        %v2579 = vadd.f32 %v2577, %v2578
        %v2580 = vrot.slane %v2579, 1
        %v2581 = vadd.f32 %v2579, %v2580
        %v2582 = vmul.f32 %v2355, %v2355
        %v2583 = vmul.f32 %v2360, %v2360
        %v2584 = vmul.f32 %v2365, %v2365
        %v2585 = vmul.f32 %v2370, %v2370
        %v2586 = vmul.f32 %v2375, %v2375
        %v2587 = vmul.f32 %v2380, %v2380
        %v2588 = vmul.f32 %v2385, %v2385
        %v2589 = vmul.f32 %v2390, %v2390
        %v2590 = vmul.f32 %v2395, %v2395
        %v2591 = vmul.f32 %v2400, %v2400
        %v2592 = vmul.f32 %v2405, %v2405
        %v2593 = vmul.f32 %v2410, %v2410
        %v2594 = vmul.f32 %v2415, %v2415
        %v2595 = vmul.f32 %v2420, %v2420
        %v2596 = vmul.f32 %v2425, %v2425
        %v2597 = vmul.f32 %v2430, %v2430
        %v2598 = vmul.f32 %v2435, %v2435
        %v2599 = vmul.f32 %v2440, %v2440
        %v2600 = vmul.f32 %v2445, %v2445
        %v2601 = vmul.f32 %v2450, %v2450
        %v2602 = vmul.f32 %v2455, %v2455
        %v2603 = vmul.f32 %v2460, %v2460
        %v2604 = vmul.f32 %v2465, %v2465
        %v2605 = vmul.f32 %v2470, %v2470
        %v2606 = vmul.f32 %v2475, %v2475
        %v2607 = vmul.f32 %v2480, %v2480
        %v2608 = vmul.f32 %v2485, %v2485
        %v2609 = vmul.f32 %v2490, %v2490
        %v2610 = vmul.f32 %v2495, %v2495
        %v2611 = vmul.f32 %v2500, %v2500
        %v2612 = vmul.f32 %v2505, %v2505
        %v2613 = vmul.f32 %v2510, %v2510
        %v2614 = vadd.f32 %v2582, %v2583
        %v2615 = vadd.f32 %v2614, %v2584
        %v2616 = vadd.f32 %v2615, %v2585
        %v2617 = vadd.f32 %v2616, %v2586
        %v2618 = vadd.f32 %v2617, %v2587
        %v2619 = vadd.f32 %v2618, %v2588
        %v2620 = vadd.f32 %v2619, %v2589
        %v2621 = vadd.f32 %v2620, %v2590
        %v2622 = vadd.f32 %v2621, %v2591
        %v2623 = vadd.f32 %v2622, %v2592
        %v2624 = vadd.f32 %v2623, %v2593
        %v2625 = vadd.f32 %v2624, %v2594
        %v2626 = vadd.f32 %v2625, %v2595
        %v2627 = vadd.f32 %v2626, %v2596
        %v2628 = vadd.f32 %v2627, %v2597
        %v2629 = vadd.f32 %v2628, %v2598
        %v2630 = vadd.f32 %v2629, %v2599
        %v2631 = vadd.f32 %v2630, %v2600
        %v2632 = vadd.f32 %v2631, %v2601
        %v2633 = vadd.f32 %v2632, %v2602
        %v2634 = vadd.f32 %v2633, %v2603
        %v2635 = vadd.f32 %v2634, %v2604
        %v2636 = vadd.f32 %v2635, %v2605
        %v2637 = vadd.f32 %v2636, %v2606
        %v2638 = vadd.f32 %v2637, %v2607
        %v2639 = vadd.f32 %v2638, %v2608
        %v2640 = vadd.f32 %v2639, %v2609
        %v2641 = vadd.f32 %v2640, %v2610
        %v2642 = vadd.f32 %v2641, %v2611
        %v2643 = vadd.f32 %v2642, %v2612
        %v2644 = vadd.f32 %v2643, %v2613
        %v2645 = vrot.slane %v2644, 4
        %v2646 = vadd.f32 %v2644, %v2645
        %v2647 = vrot.slane %v2646, 2
        %v2648 = vadd.f32 %v2646, %v2647
        %v2649 = vrot.slane %v2648, 1
        %v2650 = vadd.f32 %v2648, %v2649
        %v2651 = vlaneseq
        %v2652 = vshrl.u32 %v2651, 7
        %vm2653 = vcmp.eq.s32.totalorder %v2652, 0
        %vm2654 = vcmp.eq.s32.totalorder %v2652, 1
        %v2655 = vsel %vm2654, %v2650, 0.0
        %v2656 = vsel %vm2653, %v2581, %v2655
        %2657 = vst [vmem:[%s268] sm:$0xff] %v2656
        %s2658 = sand.u32 %s124, 1
        %s2659 = scalar_lea.sflag [#allocation6], %s2658
        %s2660 = sand.u32 %s124, 1
        %s2661 = smul.addr %s2660, 256
        %s2662 = scalar_lea.vmem [#allocation9], %s2661
        %s2663 = sand.u32 %s150, 1
        %s2664 = scalar_lea.sflag [#allocation11], %s2663
        %s2665 = sand.u32 %s150, 1
        %s2666 = smul.addr %s2665, 8
        %s2667 = scalar_lea.vmem [#allocation10], %s2666
        // Predicated region
        $region45: #{tpu_custom_call.1} parent=35 // pred_check
          %p2668 = pneg %p134
        $region46: #{tpu_custom_call.1} parent=35 // pred_check_branch
          %2670 = sbr.rel (%p2668) target = $region48
        $region47: #{tpu_custom_call.1} parent=35 // pred_region
          %s2671 = smul.u32 32, %s27
          %s2673 = ssub.s32 4096, 4096
          %2674 = vsyncadd %s2659, %s2673
          %s2675 = smul.addr %s2671, 128
          %s2676 = scalar_lea.hbm %s4, %s2675
          %s2677 = sshll.u32 %s2662, 4
          %s2678 = int_to_ptr.vmem [resolvable:$true] %s2677
          %2683 = dma.vmem_to_hbm [thread:$0]  %s2678, 4096, %s2676, %s2659, 128, 128, 8
        $region48: #{tpu_custom_call.1} parent=35 // pred_fallthru
          _
        // Predicated region
        $region49: #{tpu_custom_call.1} parent=35 // pred_check
          %p2684 = pneg %p160
        $region50: #{tpu_custom_call.1} parent=35 // pred_check_branch
          %2686 = sbr.rel (%p2684) target = $region52
        $region51: #{tpu_custom_call.1} parent=35 // pred_region
          %s2688 = ssub.s32 128, 128
          %2689 = vsyncadd %s2664, %s2688
          %s2690 = smul.addr %s27, 128
          %s2691 = scalar_lea.hbm %s5, %s2690
          %s2693 = sshll.u32 %s2667, 4
          %s2694 = int_to_ptr.vmem [resolvable:$true] %s2693
          %2696 = dma.vmem_to_hbm [thread:$0]  %s2694, 128, %s2691, %s2664
        $region52: #{tpu_custom_call.1} parent=35 // pred_fallthru
          _
      $region36: #{tpu_custom_call.1} parent=5 // pred_fallthru
        _
      %p2697 = scmp.le.s32.totalorder 2, %s22
      // Predicated region
      $region53: #{tpu_custom_call.1} parent=5 // pred_check
        %p2698 = pneg %p2697
      $region54: #{tpu_custom_call.1} parent=5 // pred_check_branch
        %2700 = sbr.rel (%p2698) target = $region56
      $region55: #{tpu_custom_call.1} parent=5 // pred_region
        %s2701 = ssub.s32 %s22, 2
        // Predicated region
        $region57: #{tpu_custom_call.1} parent=55 // pred_check
          %p2702 = pneg %p140
        $region58: #{tpu_custom_call.1} parent=55 // pred_check_branch
          %2704 = sbr.rel (%p2702) target = $region60
        $region59: #{tpu_custom_call.1} parent=55 // pred_region
          %s2705 = sand.u32 %s125, 1
          %s2706 = scalar_lea.sflag [#allocation6], %s2705
          %s2707 = sand.u32 %s125, 1
          %s2708 = smul.addr %s2707, 256
          %s2709 = scalar_lea.vmem [#allocation9], %s2708
          %2710 = dma.done %s2706, 4096
        $region60: #{tpu_custom_call.1} parent=55 // pred_fallthru
          _
        // Predicated region
        $region61: #{tpu_custom_call.1} parent=55 // pred_check
          %p2711 = pneg %p166
        $region62: #{tpu_custom_call.1} parent=55 // pred_check_branch
          %2713 = sbr.rel (%p2711) target = $region64
        $region63: #{tpu_custom_call.1} parent=55 // pred_region
          %s2714 = sand.u32 %s151, 1
          %s2715 = scalar_lea.sflag [#allocation11], %s2714
          %s2716 = sand.u32 %s151, 1
          %s2717 = smul.addr %s2716, 8
          %s2718 = scalar_lea.vmem [#allocation10], %s2717
          %2719 = dma.done %s2715, 128
        $region64: #{tpu_custom_call.1} parent=55 // pred_fallthru
          _
      $region56: #{tpu_custom_call.1} parent=5 // pred_fallthru
        _
    $region6: #{tpu_custom_call.1} parent=1 // loop_footer
      %s26 = sadd.s32 1, %s22
    $region7: #{tpu_custom_call.1} parent=1 // loop_footer_branch
      %21 = sbr.rel target = $region3
    $region8: #{tpu_custom_call.1} parent=1 // loop_exit
      _
    %2720 = vsyncpa [#allocation5], 1
    %s2721 = scalar_lea.sflag [#allocation5], 1
    %2722 = vsyncpa %s2721, 1
    %2723 = vsyncpa [#allocation8], 1
    %2724 = vsyncpa [#allocation6], 1
    %s2725 = scalar_lea.sflag [#allocation6], 1
    %2726 = vsyncpa %s2725, 1
    %2727 = vsyncpa [#allocation11], 1
    %s2728 = scalar_lea.sflag [#allocation11], 1
    %2729 = vsyncpa %s2728, 1

</llo_original>
